<compile_context>
chip_gen: v7x
topology: tpu7x:2x2x1
jax: 0.10.0
libtpu: 0.0.40
codegen_flags: <defaults>
</compile_context>

<pallas_src>
import numpy as np
import jax
import jax.numpy as jnp
from jax.experimental import pallas as pl
from jax.experimental.pallas import tpu as pltpu

_VMEM_LIMIT = 32 * 1024 * 1024   # explicit scoped-VMEM limit (v5e default is 16 MiB)


# ----------------------------- Pallas kernels ------------------------------

def _fused_decoder_kernel(len_ref,               # (Bt, 1)  int32
                          gf_ref,                # (Bt, F)  bf16
                          visw_ref, visb_ref,    # (F, E) bf16, (1, E) f32
                          xemb_ref,              # (T-1, Bt, E) bf16
                          wih0_ref, whh0_ref, b0_ref,   # (E,4H) (H,4H) (1,4H)
                          wih1_ref, whh1_ref, b1_ref,   # (H,4H) (H,4H) (1,4H)
                          outw_ref, outb_ref,    # (H, V) bf16, (1, V) f32
                          logp_ref,              # (Bt, T, V) f32
                          pred_ref,              # (Bt, T)    int32
                          h2_scr):               # VMEM (Bt, T, H) f32
    Tm1, Bt, E = xemb_ref.shape
    T = Tm1 + 1
    H = whh0_ref.shape[0]
    V = outw_ref.shape[1]
    f32 = jnp.float32
    bf16 = jnp.bfloat16

    # vis_embed Linear fused in (decoder input at t == 0).
    vis = (jnp.dot(gf_ref[...], visw_ref[...], preferred_element_type=f32)
           + visb_ref[...])                                      # (Bt, E) f32

    # Layer-1 input projection hoisted out of the recurrence: one big matmul
    # over all word steps + one matmul for the vis row (no concatenate).
    b0 = b0_ref[...]
    g1_t0 = (jnp.dot(vis.astype(bf16), wih0_ref[...],
                     preferred_element_type=f32) + b0)           # (Bt, 4H)
    xw = xemb_ref[...].reshape(Tm1 * Bt, E)                      # ((T-1)*Bt, E)
    gx_words = (jnp.dot(xw, wih0_ref[...],
                        preferred_element_type=f32) + b0)        # ((T-1)*Bt, 4H)

    whh0 = whh0_ref[...]
    wih1 = wih1_ref[...]
    whh1 = whh1_ref[...]
    b1 = b1_ref[...]

    def cell(gates, c):
        # Gate columns reordered host-side to [i | f | o | g]: sigmoid covers
        # one contiguous 3H slice, tanh only the g slice (~45% less EUP/step).
        sg = jax.nn.sigmoid(gates[:, :3 * H])
        gg = jnp.tanh(gates[:, 3 * H:])
        c_new = sg[:, H:2 * H] * c + sg[:, :H] * gg
        h_new = sg[:, 2 * H:3 * H] * jnp.tanh(c_new)
        return h_new, c_new

    zero = jnp.zeros((Bt, H), f32)
    h1, c1, h2, c2 = zero, zero, zero, zero
    h1b = jnp.zeros((Bt, H), bf16)
    h2b = jnp.zeros((Bt, H), bf16)

    # Interleaved 2-layer recurrence (fully unrolled, T is small & static):
    # at unroll step t, layer-1 step t and layer-2 step t-1 only read the
    # pre-update h1/h2, so the two chains overlap on MXU/EUP.
    # TODO(synk): inter-layer dropout (p=0.01) treated as identity (eval).
    for t in range(T):
        gx_t = g1_t0 if t == 0 else gx_words[(t - 1) * Bt:t * Bt, :]
        g1 = gx_t + jnp.dot(h1b, whh0, preferred_element_type=f32)
        if t > 0:
            g2 = (jnp.dot(h1b, wih1, preferred_element_type=f32)
                  + jnp.dot(h2b, whh1, preferred_element_type=f32) + b1)
        h1, c1 = cell(g1, c1)
        if t > 0:
            h2, c2 = cell(g2, c2)
            h2_scr[:, t - 1:t, :] = h2[:, None, :]
            h2b = h2.astype(bf16)
        h1b = h1.astype(bf16)
    # Tail: layer-2 step T-1.
    g2 = (jnp.dot(h1b, wih1, preferred_element_type=f32)
          + jnp.dot(h2b, whh1, preferred_element_type=f32) + b1)
    h2, _ = cell(g2, c2)
    h2_scr[:, T - 1:T, :] = h2[:, None, :]

    # pad_packed_sequence emulation: zero hidden states past each length.
    lens = len_ref[...]                                           # (Bt, 1)
    t_ids = jax.lax.broadcasted_iota(jnp.int32, (1, T), 1)
    mask = (t_ids < lens).astype(f32)                             # (Bt, T)
    h2_all = h2_scr[...] * mask[:, :, None]                       # (Bt, T, H)

    # Flattened lane-dense output projection + log_softmax epilogue.
    h_flat = h2_all.reshape(Bt * T, H).astype(bf16)
    logits = (jnp.dot(h_flat, outw_ref[...], preferred_element_type=f32)
              + outb_ref[...])                                    # (Bt*T, V)
    m = jnp.max(logits, axis=-1, keepdims=True)
    z = logits - m
    lse = jnp.log(jnp.sum(jnp.exp(z), axis=-1, keepdims=True))
    logp3 = (z - lse).reshape(Bt, T, V)
    logp_ref[...] = logp3.astype(logp_ref.dtype)

    # Fused argmax over V (first max index, like torch.max).
    m3 = jnp.max(logp3, axis=-1, keepdims=True)
    v_ids = jax.lax.broadcasted_iota(jnp.int32, (Bt, T, V), 2)
    pred_ref[...] = jnp.min(jnp.where(logp3 == m3, v_ids, V), axis=-1)


def _topic_kernel(x_ref, w_ref, b_ref, o_ref):
    # x: (Bt, T+2, E) bf16 zero-padded embeddings; w: (3, E, C) bf16;
    # b: (1, C) f32; o: (Bt, C).  Conv1d(k=3,pad=1) as 3 static-offset dots
    # (no im2col), ReLU, max over time.
    T = x_ref.shape[1] - 2
    x = x_ref[...]
    w = w_ref[...]
    acc = None
    for k in range(3):
        yk = jax.lax.dot_general(x[:, k:k + T, :], w[k],
                                 dimension_numbers=(((2,), (0,)), ((), ())),
                                 preferred_element_type=jnp.float32)
        acc = yk if acc is None else acc + yk                     # (Bt, T, C)
    y = jnp.maximum(acc + b_ref[...][None, :, :], 0.0)
    o_ref[...] = jnp.max(y, axis=1).astype(o_ref.dtype)


# ------------------------------- wrappers -----------------------------------

def fused_decoder(len_arr, gf, vis_w, vis_b, x_emb_tb,
                  wih0, whh0, b0, wih1, whh1, b1, out_w, out_b, *, b_tile=16):
    B, F = gf.shape
    Tm1, _, E = x_emb_tb.shape
    T = Tm1 + 1
    H = whh0.shape[0]
    V = out_w.shape[1]
    # Batch tiled inside the kernel; pad B to a multiple of b_tile (multiple
    # of 16 keeps bf16 sublane tiles aligned).  Padded rows get length 0.
    B_pad = ((B + b_tile - 1) // b_tile) * b_tile
    pb = B_pad - B
    gf_p = jnp.pad(gf, ((0, pb), (0, 0)))
    x_p = jnp.pad(x_emb_tb, ((0, 0), (0, pb), (0, 0)))
    len_p = jnp.pad(len_arr.reshape(B, 1), ((0, pb), (0, 0)))

    const2 = lambda b: (0, 0)
    logp, pred = pl.pallas_call(
        _fused_decoder_kernel,
        out_shape=(jax.ShapeDtypeStruct((B_pad, T, V), jnp.float32),
                   jax.ShapeDtypeStruct((B_pad, T), jnp.int32)),
        grid=(B_pad // b_tile,),
        in_specs=[
            pl.BlockSpec((b_tile, 1), lambda b: (b, 0)),           # lengths
            pl.BlockSpec((b_tile, F), lambda b: (b, 0)),           # global feat
            pl.BlockSpec((F, E), const2),                          # vis W
            pl.BlockSpec((1, E), const2),                          # vis b
            pl.BlockSpec((Tm1, b_tile, E), lambda b: (0, b, 0)),   # word embeds
            pl.BlockSpec((E, 4 * H), const2),                      # l0 W_ih
            pl.BlockSpec((H, 4 * H), const2),                      # l0 W_hh
            pl.BlockSpec((1, 4 * H), const2),                      # l0 bias
            pl.BlockSpec((H, 4 * H), const2),                      # l1 W_ih
            pl.BlockSpec((H, 4 * H), const2),                      # l1 W_hh
            pl.BlockSpec((1, 4 * H), const2),                      # l1 bias
            pl.BlockSpec((H, V), const2),                          # out W
            pl.BlockSpec((1, V), const2),                          # out b
        ],
        out_specs=(pl.BlockSpec((b_tile, T, V), lambda b: (b, 0, 0)),
                   pl.BlockSpec((b_tile, T), lambda b: (b, 0))),
        scratch_shapes=[pltpu.VMEM((b_tile, T, H), jnp.float32)],
        compiler_params=pltpu.CompilerParams(
            dimension_semantics=("parallel",),
            vmem_limit_bytes=_VMEM_LIMIT),
    )(len_p, gf_p, vis_w, vis_b, x_p,
      wih0, whh0, b0, wih1, whh1, b1, out_w, out_b)
    return logp[:B], pred[:B]


def topic_encoder(params, ids, *, b_tile=16):
    emb = jnp.take(params["enc_embed"], ids, axis=0).astype(jnp.bfloat16)
    B, T, E = emb.shape
    B_pad = ((B + b_tile - 1) // b_tile) * b_tile
    xp = jnp.pad(emb, ((0, B_pad - B), (1, 1), (0, 0)))           # (B_pad,T+2,E)
    w = params["enc_conv_w"].astype(jnp.bfloat16)                 # (3, E, C)
    C = w.shape[-1]
    # TODO(synk): at very large C, tile C on a second grid axis as well.
    out = pl.pallas_call(
        _topic_kernel,
        out_shape=jax.ShapeDtypeStruct((B_pad, C), jnp.float32),
        grid=(B_pad // b_tile,),
        in_specs=[pl.BlockSpec((b_tile, T + 2, E), lambda b: (b, 0, 0)),
                  pl.BlockSpec((3, E, C), lambda b: (0, 0, 0)),
                  pl.BlockSpec((1, C), lambda b: (0, 0))],
        out_specs=pl.BlockSpec((b_tile, C), lambda b: (b, 0)),
        compiler_params=pltpu.CompilerParams(
            dimension_semantics=("parallel",),
            vmem_limit_bytes=_VMEM_LIMIT),
    )(xp, w, params["enc_conv_b"])
    return out[:B]


# ------------------------------- glue / host --------------------------------

def pack_indices(lengths):
    """(batch, time) gather indices matching torch pack_padded_sequence
    (batch_first=True, enforce_sorted=False) data ordering."""
    lengths = np.asarray(lengths)
    sorted_idx = np.argsort(-lengths, kind="stable")
    b_idx, t_idx = [], []
    for t in range(int(lengths.max())):
        for b in sorted_idx:
            if lengths[b] > t:
                b_idx.append(int(b))
                t_idx.append(t)
    return np.array(b_idx), np.array(t_idx)


def _reorder_gates(a, H):
    # PyTorch LSTM packs gate columns as [i | f | g | o]; the kernel expects
    # [i | f | o | g] so sigmoid/tanh each cover one contiguous slice.
    return jnp.concatenate([a[..., :2 * H], a[..., 3 * H:], a[..., 2 * H:3 * H]],
                           axis=-1)


def init_params(key, embed, hidden, vocab, num_layers, num_gf, num_conv_out):
    ks = jax.random.split(key, 8 + 3 * num_layers)

    def u(k, shape, scale):
        return jax.random.uniform(k, shape, jnp.float32, -scale, scale)

    p, kidx = {}, 0
    s_vis = 1.0 / np.sqrt(num_gf)
    p["vis_w"] = u(ks[kidx], (num_gf, embed), s_vis); kidx += 1
    p["vis_b"] = u(ks[kidx], (1, embed), s_vis); kidx += 1
    p["word_embed"] = jax.random.normal(ks[kidx], (vocab, embed), jnp.float32); kidx += 1
    s_h = 1.0 / np.sqrt(hidden)
    lstm = []
    for layer in range(num_layers):
        in_size = embed if layer == 0 else hidden
        wih = u(ks[kidx], (in_size, 4 * hidden), s_h); kidx += 1
        whh = u(ks[kidx], (hidden, 4 * hidden), s_h); kidx += 1
        b = u(ks[kidx], (1, 4 * hidden), s_h); kidx += 1   # b_ih + b_hh combined
        lstm.append((wih, whh, b))
    p["lstm"] = lstm
    p["out_w"] = u(ks[kidx], (hidden, vocab), s_h); kidx += 1
    p["out_b"] = u(ks[kidx], (1, vocab), s_h); kidx += 1
    p["enc_embed"] = jax.random.normal(ks[kidx], (vocab, embed), jnp.float32); kidx += 1
    s_c = 1.0 / np.sqrt(3 * embed)
    # Stand-in conv weight stored as (k, C_in, C_out).
    # TODO(synk): real torch Conv1d weights are (C_out, C_in, k) -> transpose first.
    p["enc_conv_w"] = u(ks[kidx], (3, embed, num_conv_out), s_c); kidx += 1
    p["enc_conv_b"] = u(ks[kidx], (1, num_conv_out), s_c); kidx += 1
    return p


def sgm_decoder_forward(params, global_features, impressions, imp_lengths):
    assert len(params["lstm"]) == 2, "fused kernel implements num_layers=2"
    lengths = [int(l) for l in imp_lengths]
    # TODO(synk): T_out is a Python int, so each distinct max length recompiles.
    T_out = max(lengths)
    H = params["lstm"][0][1].shape[0]
    bf = lambda a: a.astype(jnp.bfloat16)

    # decoder_input time t: t==0 -> vis_embed(global_features),
    # t>=1 -> word_embed(impressions[:, t-1]).  Gather in (time, batch) layout
    # so the kernel's per-step gx slices are contiguous sublane blocks.
    ids_tb = impressions[:, :T_out - 1].T                          # (T-1, B)
    imp_emb = bf(jnp.take(params["word_embed"], ids_tb, axis=0))   # (T-1, B, E)
    len_arr = jnp.asarray(lengths, dtype=jnp.int32)

    (wih0, whh0, b0), (wih1, whh1, b1) = params["lstm"]
    ro = lambda a: _reorder_gates(a, H)

    logp, pred = fused_decoder(
        len_arr, bf(global_features), bf(params["vis_w"]), params["vis_b"],
        imp_emb,
        bf(ro(wih0)), bf(ro(whh0)), ro(b0),
        bf(ro(wih1)), bf(ro(whh1)), ro(b1),
        bf(params["out_w"]), params["out_b"])                      # (B,T,V),(B,T)

    b_idx, t_idx = pack_indices(lengths)
    decoder_output_packed = logp[b_idx, t_idx]                     # (sum(len), V)
    gt_packed = impressions[b_idx, t_idx]                          # (sum(len),)

    # TODO(synk): teacher-forcing branch taken deterministically (predicted ids).
    topic_vec = topic_encoder(params, pred)                        # (B, C)
    return gt_packed, decoder_output_packed, topic_vec


# ---------------------------------- main ------------------------------------

if __name__ == "__main__":
    B = 2                    # batch
    F = 64                   # num_global_features
    E = 32                   # embedding_size
    H = 32                   # hidden_size
    V = 128                  # vocab_size
    NUM_LAYERS = 2
    C_OUT = 256              # num_conv1d_out (scaled down from 1024)
    L = 8                    # impression sequence length

    key = jax.random.PRNGKey(0)
    kp, kg, ki = jax.random.split(key, 3)
    params = init_params(kp, E, H, V, NUM_LAYERS, F, C_OUT)

    global_features = jax.random.normal(kg, (B, F), jnp.float32)
    impressions = jax.random.randint(ki, (B, L), 0, V, dtype=jnp.int32)
    imp_lengths = [8, 5]

    gt_packed, dec_out_packed, topic_vec = sgm_decoder_forward(
        params, global_features, impressions, imp_lengths)
    jax.block_until_ready((gt_packed, dec_out_packed, topic_vec))

    assert gt_packed.shape == (sum(imp_lengths),)
    assert dec_out_packed.shape == (sum(imp_lengths), V)
    assert topic_vec.shape == (B, C_OUT)
    assert bool(jnp.all(jnp.isfinite(dec_out_packed)))
    assert bool(jnp.all(jnp.isfinite(topic_vec)))
    print("KERNEL_OK")
</pallas_src>

<mosaic_0001>
module attributes {stable_mosaic.version = 11 : i64} {
  func.func @_fused_decoder_kernel(%arg0: i32, %arg1: memref<16x1xi32, #tpu.memory_space<vmem>>, %arg2: memref<16x64xbf16, #tpu.memory_space<vmem>>, %arg3: memref<64x32xbf16, #tpu.memory_space<vmem>>, %arg4: memref<1x32xf32, #tpu.memory_space<vmem>>, %arg5: memref<7x16x32xbf16, #tpu.memory_space<vmem>>, %arg6: memref<32x128xbf16, #tpu.memory_space<vmem>>, %arg7: memref<32x128xbf16, #tpu.memory_space<vmem>>, %arg8: memref<1x128xf32, #tpu.memory_space<vmem>>, %arg9: memref<32x128xbf16, #tpu.memory_space<vmem>>, %arg10: memref<32x128xbf16, #tpu.memory_space<vmem>>, %arg11: memref<1x128xf32, #tpu.memory_space<vmem>>, %arg12: memref<32x128xbf16, #tpu.memory_space<vmem>>, %arg13: memref<1x128xf32, #tpu.memory_space<vmem>>, %arg14: memref<16x8x128xf32, #tpu.memory_space<vmem>>, %arg15: memref<16x8xi32, #tpu.memory_space<vmem>>, %arg16: memref<16x8x32xf32, #tpu.memory_space<vmem>>) attributes {dimension_semantics = [#tpu.dimension_semantics<parallel>], iteration_bounds = array<i64: 1>, scalar_prefetch = 0 : i64, scratch_operands = 1 : i64, tpu.core_type = #tpu.core_type<tc>, window_params = [{transform_indices = @transform_0, window_bounds = array<i64: 16, 1>}, {transform_indices = @transform_1, window_bounds = array<i64: 16, 64>}, {pipeline_mode = #tpu.pipeline_mode<synchronous>, transform_indices = @transform_2, window_bounds = array<i64: 64, 32>}, {pipeline_mode = #tpu.pipeline_mode<synchronous>, transform_indices = @transform_3, window_bounds = array<i64: 1, 32>}, {transform_indices = @transform_4, window_bounds = array<i64: 7, 16, 32>}, {pipeline_mode = #tpu.pipeline_mode<synchronous>, transform_indices = @transform_5, window_bounds = array<i64: 32, 128>}, {pipeline_mode = #tpu.pipeline_mode<synchronous>, transform_indices = @transform_6, window_bounds = array<i64: 32, 128>}, {pipeline_mode = #tpu.pipeline_mode<synchronous>, transform_indices = @transform_7, window_bounds = array<i64: 1, 128>}, {pipeline_mode = #tpu.pipeline_mode<synchronous>, transform_indices = @transform_8, window_bounds = array<i64: 32, 128>}, {pipeline_mode = #tpu.pipeline_mode<synchronous>, transform_indices = @transform_9, window_bounds = array<i64: 32, 128>}, {pipeline_mode = #tpu.pipeline_mode<synchronous>, transform_indices = @transform_10, window_bounds = array<i64: 1, 128>}, {pipeline_mode = #tpu.pipeline_mode<synchronous>, transform_indices = @transform_11, window_bounds = array<i64: 32, 128>}, {pipeline_mode = #tpu.pipeline_mode<synchronous>, transform_indices = @transform_12, window_bounds = array<i64: 1, 128>}, {transform_indices = @transform_13, window_bounds = array<i64: 16, 8, 128>}, {transform_indices = @transform_14, window_bounds = array<i64: 16, 8>}]} {
    %c0 = arith.constant 0 : index
    %c0_0 = arith.constant 0 : index
    %0 = vector.load %arg2[%c0, %c0_0] : memref<16x64xbf16, #tpu.memory_space<vmem>>, vector<16x64xbf16>
    %c0_1 = arith.constant 0 : index
    %c0_2 = arith.constant 0 : index
    %1 = vector.load %arg3[%c0_1, %c0_2] : memref<64x32xbf16, #tpu.memory_space<vmem>>, vector<64x32xbf16>
    %cst = arith.constant dense<0.000000e+00> : vector<16x32xf32>
    %2 = tpu.matmul %0, %1, %cst {dimension_numbers = #tpu.dot_dimension_numbers<[1], [0], [0], [1], [0, 0, 1, 1], [], []>} : vector<16x64xbf16>, vector<64x32xbf16>, vector<16x32xf32> -> vector<16x32xf32>
    %c0_3 = arith.constant 0 : index
    %c0_4 = arith.constant 0 : index
    %3 = vector.load %arg4[%c0_3, %c0_4] : memref<1x32xf32, #tpu.memory_space<vmem>>, vector<1x32xf32>
    %4 = vector.broadcast %3 : vector<1x32xf32> to vector<16x32xf32>
    %5 = arith.addf %2, %4 : vector<16x32xf32>
    %c0_5 = arith.constant 0 : index
    %c0_6 = arith.constant 0 : index
    %6 = vector.load %arg8[%c0_5, %c0_6] : memref<1x128xf32, #tpu.memory_space<vmem>>, vector<1x128xf32>
    %7 = arith.truncf %5 : vector<16x32xf32> to vector<16x32xbf16>
    %c0_7 = arith.constant 0 : index
    %c0_8 = arith.constant 0 : index
    %8 = vector.load %arg6[%c0_7, %c0_8] : memref<32x128xbf16, #tpu.memory_space<vmem>>, vector<32x128xbf16>
    %cst_9 = arith.constant dense<0.000000e+00> : vector<16x128xf32>
    %9 = tpu.matmul %7, %8, %cst_9 {dimension_numbers = #tpu.dot_dimension_numbers<[1], [0], [0], [1], [0, 0, 1, 1], [], []>} : vector<16x32xbf16>, vector<32x128xbf16>, vector<16x128xf32> -> vector<16x128xf32>
    %10 = vector.broadcast %6 : vector<1x128xf32> to vector<16x128xf32>
    %11 = arith.addf %9, %10 : vector<16x128xf32>
    %c0_10 = arith.constant 0 : index
    %c0_11 = arith.constant 0 : index
    %c0_12 = arith.constant 0 : index
    %12 = vector.load %arg5[%c0_10, %c0_11, %c0_12] : memref<7x16x32xbf16, #tpu.memory_space<vmem>>, vector<7x16x32xbf16>
    %13 = vector.shape_cast %12 : vector<7x16x32xbf16> to vector<112x32xbf16>
    %c0_13 = arith.constant 0 : index
    %c0_14 = arith.constant 0 : index
    %14 = vector.load %arg6[%c0_13, %c0_14] : memref<32x128xbf16, #tpu.memory_space<vmem>>, vector<32x128xbf16>
    %cst_15 = arith.constant dense<0.000000e+00> : vector<112x128xf32>
    %15 = tpu.matmul %13, %14, %cst_15 {dimension_numbers = #tpu.dot_dimension_numbers<[1], [0], [0], [1], [0, 0, 1, 1], [], []>} : vector<112x32xbf16>, vector<32x128xbf16>, vector<112x128xf32> -> vector<112x128xf32>
    %16 = vector.broadcast %6 : vector<1x128xf32> to vector<112x128xf32>
    %17 = arith.addf %15, %16 : vector<112x128xf32>
    %c0_16 = arith.constant 0 : index
    %c0_17 = arith.constant 0 : index
    %18 = vector.load %arg7[%c0_16, %c0_17] : memref<32x128xbf16, #tpu.memory_space<vmem>>, vector<32x128xbf16>
    %c0_18 = arith.constant 0 : index
    %c0_19 = arith.constant 0 : index
    %19 = vector.load %arg9[%c0_18, %c0_19] : memref<32x128xbf16, #tpu.memory_space<vmem>>, vector<32x128xbf16>
    %c0_20 = arith.constant 0 : index
    %c0_21 = arith.constant 0 : index
    %20 = vector.load %arg10[%c0_20, %c0_21] : memref<32x128xbf16, #tpu.memory_space<vmem>>, vector<32x128xbf16>
    %c0_22 = arith.constant 0 : index
    %c0_23 = arith.constant 0 : index
    %21 = vector.load %arg11[%c0_22, %c0_23] : memref<1x128xf32, #tpu.memory_space<vmem>>, vector<1x128xf32>
    %cst_24 = arith.constant 0.000000e+00 : f32
    %22 = vector.broadcast %cst_24 : f32 to vector<16x32xf32>
    %cst_25 = arith.constant 0.000000e+00 : bf16
    %23 = vector.broadcast %cst_25 : bf16 to vector<16x32xbf16>
    %cst_26 = arith.constant 0.000000e+00 : bf16
    %24 = vector.broadcast %cst_26 : bf16 to vector<16x32xbf16>
    %cst_27 = arith.constant dense<0.000000e+00> : vector<16x128xf32>
    %25 = tpu.matmul %23, %18, %cst_27 {dimension_numbers = #tpu.dot_dimension_numbers<[1], [0], [0], [1], [0, 0, 1, 1], [], []>} : vector<16x32xbf16>, vector<32x128xbf16>, vector<16x128xf32> -> vector<16x128xf32>
    %26 = arith.addf %11, %25 : vector<16x128xf32>
    %27 = vector.extract_strided_slice %26 {offsets = [0, 0], sizes = [16, 96], strides = [1, 1]} : vector<16x128xf32> to vector<16x96xf32>
    %28 = arith.negf %27 : vector<16x96xf32>
    %29 = math.exp %28 : vector<16x96xf32>
    %cst_28 = arith.constant 1.000000e+00 : f32
    %30 = vector.broadcast %cst_28 : f32 to vector<16x96xf32>
    %31 = arith.addf %30, %29 : vector<16x96xf32>
    %32 = arith.divf %30, %31 : vector<16x96xf32>
    %33 = vector.extract_strided_slice %26 {offsets = [0, 96], sizes = [16, 32], strides = [1, 1]} : vector<16x128xf32> to vector<16x32xf32>
    %34 = math.tanh %33 : vector<16x32xf32>
    %35 = vector.extract_strided_slice %32 {offsets = [0, 32], sizes = [16, 32], strides = [1, 1]} : vector<16x96xf32> to vector<16x32xf32>
    %36 = arith.mulf %35, %22 : vector<16x32xf32>
    %37 = vector.extract_strided_slice %32 {offsets = [0, 0], sizes = [16, 32], strides = [1, 1]} : vector<16x96xf32> to vector<16x32xf32>
    %38 = arith.mulf %37, %34 : vector<16x32xf32>
    %39 = arith.addf %36, %38 : vector<16x32xf32>
    %40 = vector.extract_strided_slice %32 {offsets = [0, 64], sizes = [16, 32], strides = [1, 1]} : vector<16x96xf32> to vector<16x32xf32>
    %41 = math.tanh %39 : vector<16x32xf32>
    %42 = arith.mulf %40, %41 : vector<16x32xf32>
    %43 = arith.truncf %42 : vector<16x32xf32> to vector<16x32xbf16>
    %44 = vector.extract_strided_slice %17 {offsets = [0, 0], sizes = [16, 128], strides = [1, 1]} : vector<112x128xf32> to vector<16x128xf32>
    %cst_29 = arith.constant dense<0.000000e+00> : vector<16x128xf32>
    %45 = tpu.matmul %43, %18, %cst_29 {dimension_numbers = #tpu.dot_dimension_numbers<[1], [0], [0], [1], [0, 0, 1, 1], [], []>} : vector<16x32xbf16>, vector<32x128xbf16>, vector<16x128xf32> -> vector<16x128xf32>
    %46 = arith.addf %44, %45 : vector<16x128xf32>
    %cst_30 = arith.constant dense<0.000000e+00> : vector<16x128xf32>
    %47 = tpu.matmul %43, %19, %cst_30 {dimension_numbers = #tpu.dot_dimension_numbers<[1], [0], [0], [1], [0, 0, 1, 1], [], []>} : vector<16x32xbf16>, vector<32x128xbf16>, vector<16x128xf32> -> vector<16x128xf32>
    %cst_31 = arith.constant dense<0.000000e+00> : vector<16x128xf32>
    %48 = tpu.matmul %24, %20, %cst_31 {dimension_numbers = #tpu.dot_dimension_numbers<[1], [0], [0], [1], [0, 0, 1, 1], [], []>} : vector<16x32xbf16>, vector<32x128xbf16>, vector<16x128xf32> -> vector<16x128xf32>
    %49 = arith.addf %47, %48 : vector<16x128xf32>
    %50 = vector.broadcast %21 : vector<1x128xf32> to vector<16x128xf32>
    %51 = arith.addf %49, %50 : vector<16x128xf32>
    %52 = vector.extract_strided_slice %46 {offsets = [0, 0], sizes = [16, 96], strides = [1, 1]} : vector<16x128xf32> to vector<16x96xf32>
    %53 = arith.negf %52 : vector<16x96xf32>
    %54 = math.exp %53 : vector<16x96xf32>
    %cst_32 = arith.constant 1.000000e+00 : f32
    %55 = vector.broadcast %cst_32 : f32 to vector<16x96xf32>
    %56 = arith.addf %55, %54 : vector<16x96xf32>
    %57 = arith.divf %55, %56 : vector<16x96xf32>
    %58 = vector.extract_strided_slice %46 {offsets = [0, 96], sizes = [16, 32], strides = [1, 1]} : vector<16x128xf32> to vector<16x32xf32>
    %59 = math.tanh %58 : vector<16x32xf32>
    %60 = vector.extract_strided_slice %57 {offsets = [0, 32], sizes = [16, 32], strides = [1, 1]} : vector<16x96xf32> to vector<16x32xf32>
    %61 = arith.mulf %60, %39 : vector<16x32xf32>
    %62 = vector.extract_strided_slice %57 {offsets = [0, 0], sizes = [16, 32], strides = [1, 1]} : vector<16x96xf32> to vector<16x32xf32>
    %63 = arith.mulf %62, %59 : vector<16x32xf32>
    %64 = arith.addf %61, %63 : vector<16x32xf32>
    %65 = vector.extract_strided_slice %57 {offsets = [0, 64], sizes = [16, 32], strides = [1, 1]} : vector<16x96xf32> to vector<16x32xf32>
    %66 = math.tanh %64 : vector<16x32xf32>
    %67 = arith.mulf %65, %66 : vector<16x32xf32>
    %68 = vector.extract_strided_slice %51 {offsets = [0, 0], sizes = [16, 96], strides = [1, 1]} : vector<16x128xf32> to vector<16x96xf32>
    %69 = arith.negf %68 : vector<16x96xf32>
    %70 = math.exp %69 : vector<16x96xf32>
    %cst_33 = arith.constant 1.000000e+00 : f32
    %71 = vector.broadcast %cst_33 : f32 to vector<16x96xf32>
    %72 = arith.addf %71, %70 : vector<16x96xf32>
    %73 = arith.divf %71, %72 : vector<16x96xf32>
    %74 = vector.extract_strided_slice %51 {offsets = [0, 96], sizes = [16, 32], strides = [1, 1]} : vector<16x128xf32> to vector<16x32xf32>
    %75 = math.tanh %74 : vector<16x32xf32>
    %76 = vector.extract_strided_slice %73 {offsets = [0, 32], sizes = [16, 32], strides = [1, 1]} : vector<16x96xf32> to vector<16x32xf32>
    %77 = arith.mulf %76, %22 : vector<16x32xf32>
    %78 = vector.extract_strided_slice %73 {offsets = [0, 0], sizes = [16, 32], strides = [1, 1]} : vector<16x96xf32> to vector<16x32xf32>
    %79 = arith.mulf %78, %75 : vector<16x32xf32>
    %80 = arith.addf %77, %79 : vector<16x32xf32>
    %81 = vector.extract_strided_slice %73 {offsets = [0, 64], sizes = [16, 32], strides = [1, 1]} : vector<16x96xf32> to vector<16x32xf32>
    %82 = math.tanh %80 : vector<16x32xf32>
    %83 = arith.mulf %81, %82 : vector<16x32xf32>
    %84 = vector.shape_cast %83 : vector<16x32xf32> to vector<16x1x32xf32>
    %c0_34 = arith.constant 0 : index
    %c0_35 = arith.constant 0 : index
    %c0_36 = arith.constant 0 : index
    %85 = vector.load %arg16[%c0_34, %c0_35, %c0_36] : memref<16x8x32xf32, #tpu.memory_space<vmem>>, vector<16x1x32xf32>
    tpu.vector_store %arg16[%c0_34, %c0_35, %c0_36], %84 {strides = array<i32>} : memref<16x8x32xf32, #tpu.memory_space<vmem>>, vector<16x1x32xf32>,
    %86 = arith.truncf %83 : vector<16x32xf32> to vector<16x32xbf16>
    %87 = arith.truncf %67 : vector<16x32xf32> to vector<16x32xbf16>
    %88 = vector.extract_strided_slice %17 {offsets = [16, 0], sizes = [16, 128], strides = [1, 1]} : vector<112x128xf32> to vector<16x128xf32>
    %cst_37 = arith.constant dense<0.000000e+00> : vector<16x128xf32>
    %89 = tpu.matmul %87, %18, %cst_37 {dimension_numbers = #tpu.dot_dimension_numbers<[1], [0], [0], [1], [0, 0, 1, 1], [], []>} : vector<16x32xbf16>, vector<32x128xbf16>, vector<16x128xf32> -> vector<16x128xf32>
    %90 = arith.addf %88, %89 : vector<16x128xf32>
    %cst_38 = arith.constant dense<0.000000e+00> : vector<16x128xf32>
    %91 = tpu.matmul %87, %19, %cst_38 {dimension_numbers = #tpu.dot_dimension_numbers<[1], [0], [0], [1], [0, 0, 1, 1], [], []>} : vector<16x32xbf16>, vector<32x128xbf16>, vector<16x128xf32> -> vector<16x128xf32>
    %cst_39 = arith.constant dense<0.000000e+00> : vector<16x128xf32>
    %92 = tpu.matmul %86, %20, %cst_39 {dimension_numbers = #tpu.dot_dimension_numbers<[1], [0], [0], [1], [0, 0, 1, 1], [], []>} : vector<16x32xbf16>, vector<32x128xbf16>, vector<16x128xf32> -> vector<16x128xf32>
    %93 = arith.addf %91, %92 : vector<16x128xf32>
    %94 = vector.broadcast %21 : vector<1x128xf32> to vector<16x128xf32>
    %95 = arith.addf %93, %94 : vector<16x128xf32>
    %96 = vector.extract_strided_slice %90 {offsets = [0, 0], sizes = [16, 96], strides = [1, 1]} : vector<16x128xf32> to vector<16x96xf32>
    %97 = arith.negf %96 : vector<16x96xf32>
    %98 = math.exp %97 : vector<16x96xf32>
    %cst_40 = arith.constant 1.000000e+00 : f32
    %99 = vector.broadcast %cst_40 : f32 to vector<16x96xf32>
    %100 = arith.addf %99, %98 : vector<16x96xf32>
    %101 = arith.divf %99, %100 : vector<16x96xf32>
    %102 = vector.extract_strided_slice %90 {offsets = [0, 96], sizes = [16, 32], strides = [1, 1]} : vector<16x128xf32> to vector<16x32xf32>
    %103 = math.tanh %102 : vector<16x32xf32>
    %104 = vector.extract_strided_slice %101 {offsets = [0, 32], sizes = [16, 32], strides = [1, 1]} : vector<16x96xf32> to vector<16x32xf32>
    %105 = arith.mulf %104, %64 : vector<16x32xf32>
    %106 = vector.extract_strided_slice %101 {offsets = [0, 0], sizes = [16, 32], strides = [1, 1]} : vector<16x96xf32> to vector<16x32xf32>
    %107 = arith.mulf %106, %103 : vector<16x32xf32>
    %108 = arith.addf %105, %107 : vector<16x32xf32>
    %109 = vector.extract_strided_slice %101 {offsets = [0, 64], sizes = [16, 32], strides = [1, 1]} : vector<16x96xf32> to vector<16x32xf32>
    %110 = math.tanh %108 : vector<16x32xf32>
    %111 = arith.mulf %109, %110 : vector<16x32xf32>
    %112 = vector.extract_strided_slice %95 {offsets = [0, 0], sizes = [16, 96], strides = [1, 1]} : vector<16x128xf32> to vector<16x96xf32>
    %113 = arith.negf %112 : vector<16x96xf32>
    %114 = math.exp %113 : vector<16x96xf32>
    %cst_41 = arith.constant 1.000000e+00 : f32
    %115 = vector.broadcast %cst_41 : f32 to vector<16x96xf32>
    %116 = arith.addf %115, %114 : vector<16x96xf32>
    %117 = arith.divf %115, %116 : vector<16x96xf32>
    %118 = vector.extract_strided_slice %95 {offsets = [0, 96], sizes = [16, 32], strides = [1, 1]} : vector<16x128xf32> to vector<16x32xf32>
    %119 = math.tanh %118 : vector<16x32xf32>
    %120 = vector.extract_strided_slice %117 {offsets = [0, 32], sizes = [16, 32], strides = [1, 1]} : vector<16x96xf32> to vector<16x32xf32>
    %121 = arith.mulf %120, %80 : vector<16x32xf32>
    %122 = vector.extract_strided_slice %117 {offsets = [0, 0], sizes = [16, 32], strides = [1, 1]} : vector<16x96xf32> to vector<16x32xf32>
    %123 = arith.mulf %122, %119 : vector<16x32xf32>
    %124 = arith.addf %121, %123 : vector<16x32xf32>
    %125 = vector.extract_strided_slice %117 {offsets = [0, 64], sizes = [16, 32], strides = [1, 1]} : vector<16x96xf32> to vector<16x32xf32>
    %126 = math.tanh %124 : vector<16x32xf32>
    %127 = arith.mulf %125, %126 : vector<16x32xf32>
    %128 = vector.shape_cast %127 : vector<16x32xf32> to vector<16x1x32xf32>
    %c0_42 = arith.constant 0 : index
    %c1 = arith.constant 1 : index
    %c0_43 = arith.constant 0 : index
    %129 = vector.load %arg16[%c0_42, %c1, %c0_43] : memref<16x8x32xf32, #tpu.memory_space<vmem>>, vector<16x1x32xf32>
    tpu.vector_store %arg16[%c0_42, %c1, %c0_43], %128 {strides = array<i32>} : memref<16x8x32xf32, #tpu.memory_space<vmem>>, vector<16x1x32xf32>,
    %130 = arith.truncf %127 : vector<16x32xf32> to vector<16x32xbf16>
    %131 = arith.truncf %111 : vector<16x32xf32> to vector<16x32xbf16>
    %132 = vector.extract_strided_slice %17 {offsets = [32, 0], sizes = [16, 128], strides = [1, 1]} : vector<112x128xf32> to vector<16x128xf32>
    %cst_44 = arith.constant dense<0.000000e+00> : vector<16x128xf32>
    %133 = tpu.matmul %131, %18, %cst_44 {dimension_numbers = #tpu.dot_dimension_numbers<[1], [0], [0], [1], [0, 0, 1, 1], [], []>} : vector<16x32xbf16>, vector<32x128xbf16>, vector<16x128xf32> -> vector<16x128xf32>
    %134 = arith.addf %132, %133 : vector<16x128xf32>
    %cst_45 = arith.constant dense<0.000000e+00> : vector<16x128xf32>
    %135 = tpu.matmul %131, %19, %cst_45 {dimension_numbers = #tpu.dot_dimension_numbers<[1], [0], [0], [1], [0, 0, 1, 1], [], []>} : vector<16x32xbf16>, vector<32x128xbf16>, vector<16x128xf32> -> vector<16x128xf32>
    %cst_46 = arith.constant dense<0.000000e+00> : vector<16x128xf32>
    %136 = tpu.matmul %130, %20, %cst_46 {dimension_numbers = #tpu.dot_dimension_numbers<[1], [0], [0], [1], [0, 0, 1, 1], [], []>} : vector<16x32xbf16>, vector<32x128xbf16>, vector<16x128xf32> -> vector<16x128xf32>
    %137 = arith.addf %135, %136 : vector<16x128xf32>
    %138 = vector.broadcast %21 : vector<1x128xf32> to vector<16x128xf32>
    %139 = arith.addf %137, %138 : vector<16x128xf32>
    %140 = vector.extract_strided_slice %134 {offsets = [0, 0], sizes = [16, 96], strides = [1, 1]} : vector<16x128xf32> to vector<16x96xf32>
    %141 = arith.negf %140 : vector<16x96xf32>
    %142 = math.exp %141 : vector<16x96xf32>
    %cst_47 = arith.constant 1.000000e+00 : f32
    %143 = vector.broadcast %cst_47 : f32 to vector<16x96xf32>
    %144 = arith.addf %143, %142 : vector<16x96xf32>
    %145 = arith.divf %143, %144 : vector<16x96xf32>
    %146 = vector.extract_strided_slice %134 {offsets = [0, 96], sizes = [16, 32], strides = [1, 1]} : vector<16x128xf32> to vector<16x32xf32>
    %147 = math.tanh %146 : vector<16x32xf32>
    %148 = vector.extract_strided_slice %145 {offsets = [0, 32], sizes = [16, 32], strides = [1, 1]} : vector<16x96xf32> to vector<16x32xf32>
    %149 = arith.mulf %148, %108 : vector<16x32xf32>
    %150 = vector.extract_strided_slice %145 {offsets = [0, 0], sizes = [16, 32], strides = [1, 1]} : vector<16x96xf32> to vector<16x32xf32>
    %151 = arith.mulf %150, %147 : vector<16x32xf32>
    %152 = arith.addf %149, %151 : vector<16x32xf32>
    %153 = vector.extract_strided_slice %145 {offsets = [0, 64], sizes = [16, 32], strides = [1, 1]} : vector<16x96xf32> to vector<16x32xf32>
    %154 = math.tanh %152 : vector<16x32xf32>
    %155 = arith.mulf %153, %154 : vector<16x32xf32>
    %156 = vector.extract_strided_slice %139 {offsets = [0, 0], sizes = [16, 96], strides = [1, 1]} : vector<16x128xf32> to vector<16x96xf32>
    %157 = arith.negf %156 : vector<16x96xf32>
    %158 = math.exp %157 : vector<16x96xf32>
    %cst_48 = arith.constant 1.000000e+00 : f32
    %159 = vector.broadcast %cst_48 : f32 to vector<16x96xf32>
    %160 = arith.addf %159, %158 : vector<16x96xf32>
    %161 = arith.divf %159, %160 : vector<16x96xf32>
    %162 = vector.extract_strided_slice %139 {offsets = [0, 96], sizes = [16, 32], strides = [1, 1]} : vector<16x128xf32> to vector<16x32xf32>
    %163 = math.tanh %162 : vector<16x32xf32>
    %164 = vector.extract_strided_slice %161 {offsets = [0, 32], sizes = [16, 32], strides = [1, 1]} : vector<16x96xf32> to vector<16x32xf32>
    %165 = arith.mulf %164, %124 : vector<16x32xf32>
    %166 = vector.extract_strided_slice %161 {offsets = [0, 0], sizes = [16, 32], strides = [1, 1]} : vector<16x96xf32> to vector<16x32xf32>
    %167 = arith.mulf %166, %163 : vector<16x32xf32>
    %168 = arith.addf %165, %167 : vector<16x32xf32>
    %169 = vector.extract_strided_slice %161 {offsets = [0, 64], sizes = [16, 32], strides = [1, 1]} : vector<16x96xf32> to vector<16x32xf32>
    %170 = math.tanh %168 : vector<16x32xf32>
    %171 = arith.mulf %169, %170 : vector<16x32xf32>
    %172 = vector.shape_cast %171 : vector<16x32xf32> to vector<16x1x32xf32>
    %c0_49 = arith.constant 0 : index
    %c2 = arith.constant 2 : index
    %c0_50 = arith.constant 0 : index
    %173 = vector.load %arg16[%c0_49, %c2, %c0_50] : memref<16x8x32xf32, #tpu.memory_space<vmem>>, vector<16x1x32xf32>
    tpu.vector_store %arg16[%c0_49, %c2, %c0_50], %172 {strides = array<i32>} : memref<16x8x32xf32, #tpu.memory_space<vmem>>, vector<16x1x32xf32>,
    %174 = arith.truncf %171 : vector<16x32xf32> to vector<16x32xbf16>
    %175 = arith.truncf %155 : vector<16x32xf32> to vector<16x32xbf16>
    %176 = vector.extract_strided_slice %17 {offsets = [48, 0], sizes = [16, 128], strides = [1, 1]} : vector<112x128xf32> to vector<16x128xf32>
    %cst_51 = arith.constant dense<0.000000e+00> : vector<16x128xf32>
    %177 = tpu.matmul %175, %18, %cst_51 {dimension_numbers = #tpu.dot_dimension_numbers<[1], [0], [0], [1], [0, 0, 1, 1], [], []>} : vector<16x32xbf16>, vector<32x128xbf16>, vector<16x128xf32> -> vector<16x128xf32>
    %178 = arith.addf %176, %177 : vector<16x128xf32>
    %cst_52 = arith.constant dense<0.000000e+00> : vector<16x128xf32>
    %179 = tpu.matmul %175, %19, %cst_52 {dimension_numbers = #tpu.dot_dimension_numbers<[1], [0], [0], [1], [0, 0, 1, 1], [], []>} : vector<16x32xbf16>, vector<32x128xbf16>, vector<16x128xf32> -> vector<16x128xf32>
    %cst_53 = arith.constant dense<0.000000e+00> : vector<16x128xf32>
    %180 = tpu.matmul %174, %20, %cst_53 {dimension_numbers = #tpu.dot_dimension_numbers<[1], [0], [0], [1], [0, 0, 1, 1], [], []>} : vector<16x32xbf16>, vector<32x128xbf16>, vector<16x128xf32> -> vector<16x128xf32>
    %181 = arith.addf %179, %180 : vector<16x128xf32>
    %182 = vector.broadcast %21 : vector<1x128xf32> to vector<16x128xf32>
    %183 = arith.addf %181, %182 : vector<16x128xf32>
    %184 = vector.extract_strided_slice %178 {offsets = [0, 0], sizes = [16, 96], strides = [1, 1]} : vector<16x128xf32> to vector<16x96xf32>
    %185 = arith.negf %184 : vector<16x96xf32>
    %186 = math.exp %185 : vector<16x96xf32>
    %cst_54 = arith.constant 1.000000e+00 : f32
    %187 = vector.broadcast %cst_54 : f32 to vector<16x96xf32>
    %188 = arith.addf %187, %186 : vector<16x96xf32>
    %189 = arith.divf %187, %188 : vector<16x96xf32>
    %190 = vector.extract_strided_slice %178 {offsets = [0, 96], sizes = [16, 32], strides = [1, 1]} : vector<16x128xf32> to vector<16x32xf32>
    %191 = math.tanh %190 : vector<16x32xf32>
    %192 = vector.extract_strided_slice %189 {offsets = [0, 32], sizes = [16, 32], strides = [1, 1]} : vector<16x96xf32> to vector<16x32xf32>
    %193 = arith.mulf %192, %152 : vector<16x32xf32>
    %194 = vector.extract_strided_slice %189 {offsets = [0, 0], sizes = [16, 32], strides = [1, 1]} : vector<16x96xf32> to vector<16x32xf32>
    %195 = arith.mulf %194, %191 : vector<16x32xf32>
    %196 = arith.addf %193, %195 : vector<16x32xf32>
    %197 = vector.extract_strided_slice %189 {offsets = [0, 64], sizes = [16, 32], strides = [1, 1]} : vector<16x96xf32> to vector<16x32xf32>
    %198 = math.tanh %196 : vector<16x32xf32>
    %199 = arith.mulf %197, %198 : vector<16x32xf32>
    %200 = vector.extract_strided_slice %183 {offsets = [0, 0], sizes = [16, 96], strides = [1, 1]} : vector<16x128xf32> to vector<16x96xf32>
    %201 = arith.negf %200 : vector<16x96xf32>
    %202 = math.exp %201 : vector<16x96xf32>
    %cst_55 = arith.constant 1.000000e+00 : f32
    %203 = vector.broadcast %cst_55 : f32 to vector<16x96xf32>
    %204 = arith.addf %203, %202 : vector<16x96xf32>
    %205 = arith.divf %203, %204 : vector<16x96xf32>
    %206 = vector.extract_strided_slice %183 {offsets = [0, 96], sizes = [16, 32], strides = [1, 1]} : vector<16x128xf32> to vector<16x32xf32>
    %207 = math.tanh %206 : vector<16x32xf32>
    %208 = vector.extract_strided_slice %205 {offsets = [0, 32], sizes = [16, 32], strides = [1, 1]} : vector<16x96xf32> to vector<16x32xf32>
    %209 = arith.mulf %208, %168 : vector<16x32xf32>
    %210 = vector.extract_strided_slice %205 {offsets = [0, 0], sizes = [16, 32], strides = [1, 1]} : vector<16x96xf32> to vector<16x32xf32>
    %211 = arith.mulf %210, %207 : vector<16x32xf32>
    %212 = arith.addf %209, %211 : vector<16x32xf32>
    %213 = vector.extract_strided_slice %205 {offsets = [0, 64], sizes = [16, 32], strides = [1, 1]} : vector<16x96xf32> to vector<16x32xf32>
    %214 = math.tanh %212 : vector<16x32xf32>
    %215 = arith.mulf %213, %214 : vector<16x32xf32>
    %216 = vector.shape_cast %215 : vector<16x32xf32> to vector<16x1x32xf32>
    %c0_56 = arith.constant 0 : index
    %c3 = arith.constant 3 : index
    %c0_57 = arith.constant 0 : index
    %217 = vector.load %arg16[%c0_56, %c3, %c0_57] : memref<16x8x32xf32, #tpu.memory_space<vmem>>, vector<16x1x32xf32>
    tpu.vector_store %arg16[%c0_56, %c3, %c0_57], %216 {strides = array<i32>} : memref<16x8x32xf32, #tpu.memory_space<vmem>>, vector<16x1x32xf32>,
    %218 = arith.truncf %215 : vector<16x32xf32> to vector<16x32xbf16>
    %219 = arith.truncf %199 : vector<16x32xf32> to vector<16x32xbf16>
    %220 = vector.extract_strided_slice %17 {offsets = [64, 0], sizes = [16, 128], strides = [1, 1]} : vector<112x128xf32> to vector<16x128xf32>
    %cst_58 = arith.constant dense<0.000000e+00> : vector<16x128xf32>
    %221 = tpu.matmul %219, %18, %cst_58 {dimension_numbers = #tpu.dot_dimension_numbers<[1], [0], [0], [1], [0, 0, 1, 1], [], []>} : vector<16x32xbf16>, vector<32x128xbf16>, vector<16x128xf32> -> vector<16x128xf32>
    %222 = arith.addf %220, %221 : vector<16x128xf32>
    %cst_59 = arith.constant dense<0.000000e+00> : vector<16x128xf32>
    %223 = tpu.matmul %219, %19, %cst_59 {dimension_numbers = #tpu.dot_dimension_numbers<[1], [0], [0], [1], [0, 0, 1, 1], [], []>} : vector<16x32xbf16>, vector<32x128xbf16>, vector<16x128xf32> -> vector<16x128xf32>
    %cst_60 = arith.constant dense<0.000000e+00> : vector<16x128xf32>
    %224 = tpu.matmul %218, %20, %cst_60 {dimension_numbers = #tpu.dot_dimension_numbers<[1], [0], [0], [1], [0, 0, 1, 1], [], []>} : vector<16x32xbf16>, vector<32x128xbf16>, vector<16x128xf32> -> vector<16x128xf32>
    %225 = arith.addf %223, %224 : vector<16x128xf32>
    %226 = vector.broadcast %21 : vector<1x128xf32> to vector<16x128xf32>
    %227 = arith.addf %225, %226 : vector<16x128xf32>
    %228 = vector.extract_strided_slice %222 {offsets = [0, 0], sizes = [16, 96], strides = [1, 1]} : vector<16x128xf32> to vector<16x96xf32>
    %229 = arith.negf %228 : vector<16x96xf32>
    %230 = math.exp %229 : vector<16x96xf32>
    %cst_61 = arith.constant 1.000000e+00 : f32
    %231 = vector.broadcast %cst_61 : f32 to vector<16x96xf32>
    %232 = arith.addf %231, %230 : vector<16x96xf32>
    %233 = arith.divf %231, %232 : vector<16x96xf32>
    %234 = vector.extract_strided_slice %222 {offsets = [0, 96], sizes = [16, 32], strides = [1, 1]} : vector<16x128xf32> to vector<16x32xf32>
    %235 = math.tanh %234 : vector<16x32xf32>
    %236 = vector.extract_strided_slice %233 {offsets = [0, 32], sizes = [16, 32], strides = [1, 1]} : vector<16x96xf32> to vector<16x32xf32>
    %237 = arith.mulf %236, %196 : vector<16x32xf32>
    %238 = vector.extract_strided_slice %233 {offsets = [0, 0], sizes = [16, 32], strides = [1, 1]} : vector<16x96xf32> to vector<16x32xf32>
    %239 = arith.mulf %238, %235 : vector<16x32xf32>
    %240 = arith.addf %237, %239 : vector<16x32xf32>
    %241 = vector.extract_strided_slice %233 {offsets = [0, 64], sizes = [16, 32], strides = [1, 1]} : vector<16x96xf32> to vector<16x32xf32>
    %242 = math.tanh %240 : vector<16x32xf32>
    %243 = arith.mulf %241, %242 : vector<16x32xf32>
    %244 = vector.extract_strided_slice %227 {offsets = [0, 0], sizes = [16, 96], strides = [1, 1]} : vector<16x128xf32> to vector<16x96xf32>
    %245 = arith.negf %244 : vector<16x96xf32>
    %246 = math.exp %245 : vector<16x96xf32>
    %cst_62 = arith.constant 1.000000e+00 : f32
    %247 = vector.broadcast %cst_62 : f32 to vector<16x96xf32>
    %248 = arith.addf %247, %246 : vector<16x96xf32>
    %249 = arith.divf %247, %248 : vector<16x96xf32>
    %250 = vector.extract_strided_slice %227 {offsets = [0, 96], sizes = [16, 32], strides = [1, 1]} : vector<16x128xf32> to vector<16x32xf32>
    %251 = math.tanh %250 : vector<16x32xf32>
    %252 = vector.extract_strided_slice %249 {offsets = [0, 32], sizes = [16, 32], strides = [1, 1]} : vector<16x96xf32> to vector<16x32xf32>
    %253 = arith.mulf %252, %212 : vector<16x32xf32>
    %254 = vector.extract_strided_slice %249 {offsets = [0, 0], sizes = [16, 32], strides = [1, 1]} : vector<16x96xf32> to vector<16x32xf32>
    %255 = arith.mulf %254, %251 : vector<16x32xf32>
    %256 = arith.addf %253, %255 : vector<16x32xf32>
    %257 = vector.extract_strided_slice %249 {offsets = [0, 64], sizes = [16, 32], strides = [1, 1]} : vector<16x96xf32> to vector<16x32xf32>
    %258 = math.tanh %256 : vector<16x32xf32>
    %259 = arith.mulf %257, %258 : vector<16x32xf32>
    %260 = vector.shape_cast %259 : vector<16x32xf32> to vector<16x1x32xf32>
    %c0_63 = arith.constant 0 : index
    %c4 = arith.constant 4 : index
    %c0_64 = arith.constant 0 : index
    %261 = vector.load %arg16[%c0_63, %c4, %c0_64] : memref<16x8x32xf32, #tpu.memory_space<vmem>>, vector<16x1x32xf32>
    tpu.vector_store %arg16[%c0_63, %c4, %c0_64], %260 {strides = array<i32>} : memref<16x8x32xf32, #tpu.memory_space<vmem>>, vector<16x1x32xf32>,
    %262 = arith.truncf %259 : vector<16x32xf32> to vector<16x32xbf16>
    %263 = arith.truncf %243 : vector<16x32xf32> to vector<16x32xbf16>
    %264 = vector.extract_strided_slice %17 {offsets = [80, 0], sizes = [16, 128], strides = [1, 1]} : vector<112x128xf32> to vector<16x128xf32>
    %cst_65 = arith.constant dense<0.000000e+00> : vector<16x128xf32>
    %265 = tpu.matmul %263, %18, %cst_65 {dimension_numbers = #tpu.dot_dimension_numbers<[1], [0], [0], [1], [0, 0, 1, 1], [], []>} : vector<16x32xbf16>, vector<32x128xbf16>, vector<16x128xf32> -> vector<16x128xf32>
    %266 = arith.addf %264, %265 : vector<16x128xf32>
    %cst_66 = arith.constant dense<0.000000e+00> : vector<16x128xf32>
    %267 = tpu.matmul %263, %19, %cst_66 {dimension_numbers = #tpu.dot_dimension_numbers<[1], [0], [0], [1], [0, 0, 1, 1], [], []>} : vector<16x32xbf16>, vector<32x128xbf16>, vector<16x128xf32> -> vector<16x128xf32>
    %cst_67 = arith.constant dense<0.000000e+00> : vector<16x128xf32>
    %268 = tpu.matmul %262, %20, %cst_67 {dimension_numbers = #tpu.dot_dimension_numbers<[1], [0], [0], [1], [0, 0, 1, 1], [], []>} : vector<16x32xbf16>, vector<32x128xbf16>, vector<16x128xf32> -> vector<16x128xf32>
    %269 = arith.addf %267, %268 : vector<16x128xf32>
    %270 = vector.broadcast %21 : vector<1x128xf32> to vector<16x128xf32>
    %271 = arith.addf %269, %270 : vector<16x128xf32>
    %272 = vector.extract_strided_slice %266 {offsets = [0, 0], sizes = [16, 96], strides = [1, 1]} : vector<16x128xf32> to vector<16x96xf32>
    %273 = arith.negf %272 : vector<16x96xf32>
    %274 = math.exp %273 : vector<16x96xf32>
    %cst_68 = arith.constant 1.000000e+00 : f32
    %275 = vector.broadcast %cst_68 : f32 to vector<16x96xf32>
    %276 = arith.addf %275, %274 : vector<16x96xf32>
    %277 = arith.divf %275, %276 : vector<16x96xf32>
    %278 = vector.extract_strided_slice %266 {offsets = [0, 96], sizes = [16, 32], strides = [1, 1]} : vector<16x128xf32> to vector<16x32xf32>
    %279 = math.tanh %278 : vector<16x32xf32>
    %280 = vector.extract_strided_slice %277 {offsets = [0, 32], sizes = [16, 32], strides = [1, 1]} : vector<16x96xf32> to vector<16x32xf32>
    %281 = arith.mulf %280, %240 : vector<16x32xf32>
    %282 = vector.extract_strided_slice %277 {offsets = [0, 0], sizes = [16, 32], strides = [1, 1]} : vector<16x96xf32> to vector<16x32xf32>
    %283 = arith.mulf %282, %279 : vector<16x32xf32>
    %284 = arith.addf %281, %283 : vector<16x32xf32>
    %285 = vector.extract_strided_slice %277 {offsets = [0, 64], sizes = [16, 32], strides = [1, 1]} : vector<16x96xf32> to vector<16x32xf32>
    %286 = math.tanh %284 : vector<16x32xf32>
    %287 = arith.mulf %285, %286 : vector<16x32xf32>
    %288 = vector.extract_strided_slice %271 {offsets = [0, 0], sizes = [16, 96], strides = [1, 1]} : vector<16x128xf32> to vector<16x96xf32>
    %289 = arith.negf %288 : vector<16x96xf32>
    %290 = math.exp %289 : vector<16x96xf32>
    %cst_69 = arith.constant 1.000000e+00 : f32
    %291 = vector.broadcast %cst_69 : f32 to vector<16x96xf32>
    %292 = arith.addf %291, %290 : vector<16x96xf32>
    %293 = arith.divf %291, %292 : vector<16x96xf32>
    %294 = vector.extract_strided_slice %271 {offsets = [0, 96], sizes = [16, 32], strides = [1, 1]} : vector<16x128xf32> to vector<16x32xf32>
    %295 = math.tanh %294 : vector<16x32xf32>
    %296 = vector.extract_strided_slice %293 {offsets = [0, 32], sizes = [16, 32], strides = [1, 1]} : vector<16x96xf32> to vector<16x32xf32>
    %297 = arith.mulf %296, %256 : vector<16x32xf32>
    %298 = vector.extract_strided_slice %293 {offsets = [0, 0], sizes = [16, 32], strides = [1, 1]} : vector<16x96xf32> to vector<16x32xf32>
    %299 = arith.mulf %298, %295 : vector<16x32xf32>
    %300 = arith.addf %297, %299 : vector<16x32xf32>
    %301 = vector.extract_strided_slice %293 {offsets = [0, 64], sizes = [16, 32], strides = [1, 1]} : vector<16x96xf32> to vector<16x32xf32>
    %302 = math.tanh %300 : vector<16x32xf32>
    %303 = arith.mulf %301, %302 : vector<16x32xf32>
    %304 = vector.shape_cast %303 : vector<16x32xf32> to vector<16x1x32xf32>
    %c0_70 = arith.constant 0 : index
    %c5 = arith.constant 5 : index
    %c0_71 = arith.constant 0 : index
    %305 = vector.load %arg16[%c0_70, %c5, %c0_71] : memref<16x8x32xf32, #tpu.memory_space<vmem>>, vector<16x1x32xf32>
    tpu.vector_store %arg16[%c0_70, %c5, %c0_71], %304 {strides = array<i32>} : memref<16x8x32xf32, #tpu.memory_space<vmem>>, vector<16x1x32xf32>,
    %306 = arith.truncf %303 : vector<16x32xf32> to vector<16x32xbf16>
    %307 = arith.truncf %287 : vector<16x32xf32> to vector<16x32xbf16>
    %308 = vector.extract_strided_slice %17 {offsets = [96, 0], sizes = [16, 128], strides = [1, 1]} : vector<112x128xf32> to vector<16x128xf32>
    %cst_72 = arith.constant dense<0.000000e+00> : vector<16x128xf32>
    %309 = tpu.matmul %307, %18, %cst_72 {dimension_numbers = #tpu.dot_dimension_numbers<[1], [0], [0], [1], [0, 0, 1, 1], [], []>} : vector<16x32xbf16>, vector<32x128xbf16>, vector<16x128xf32> -> vector<16x128xf32>
    %310 = arith.addf %308, %309 : vector<16x128xf32>
    %cst_73 = arith.constant dense<0.000000e+00> : vector<16x128xf32>
    %311 = tpu.matmul %307, %19, %cst_73 {dimension_numbers = #tpu.dot_dimension_numbers<[1], [0], [0], [1], [0, 0, 1, 1], [], []>} : vector<16x32xbf16>, vector<32x128xbf16>, vector<16x128xf32> -> vector<16x128xf32>
    %cst_74 = arith.constant dense<0.000000e+00> : vector<16x128xf32>
    %312 = tpu.matmul %306, %20, %cst_74 {dimension_numbers = #tpu.dot_dimension_numbers<[1], [0], [0], [1], [0, 0, 1, 1], [], []>} : vector<16x32xbf16>, vector<32x128xbf16>, vector<16x128xf32> -> vector<16x128xf32>
    %313 = arith.addf %311, %312 : vector<16x128xf32>
    %314 = vector.broadcast %21 : vector<1x128xf32> to vector<16x128xf32>
    %315 = arith.addf %313, %314 : vector<16x128xf32>
    %316 = vector.extract_strided_slice %310 {offsets = [0, 0], sizes = [16, 96], strides = [1, 1]} : vector<16x128xf32> to vector<16x96xf32>
    %317 = arith.negf %316 : vector<16x96xf32>
    %318 = math.exp %317 : vector<16x96xf32>
    %cst_75 = arith.constant 1.000000e+00 : f32
    %319 = vector.broadcast %cst_75 : f32 to vector<16x96xf32>
    %320 = arith.addf %319, %318 : vector<16x96xf32>
    %321 = arith.divf %319, %320 : vector<16x96xf32>
    %322 = vector.extract_strided_slice %310 {offsets = [0, 96], sizes = [16, 32], strides = [1, 1]} : vector<16x128xf32> to vector<16x32xf32>
    %323 = math.tanh %322 : vector<16x32xf32>
    %324 = vector.extract_strided_slice %321 {offsets = [0, 32], sizes = [16, 32], strides = [1, 1]} : vector<16x96xf32> to vector<16x32xf32>
    %325 = arith.mulf %324, %284 : vector<16x32xf32>
    %326 = vector.extract_strided_slice %321 {offsets = [0, 0], sizes = [16, 32], strides = [1, 1]} : vector<16x96xf32> to vector<16x32xf32>
    %327 = arith.mulf %326, %323 : vector<16x32xf32>
    %328 = arith.addf %325, %327 : vector<16x32xf32>
    %329 = vector.extract_strided_slice %321 {offsets = [0, 64], sizes = [16, 32], strides = [1, 1]} : vector<16x96xf32> to vector<16x32xf32>
    %330 = math.tanh %328 : vector<16x32xf32>
    %331 = arith.mulf %329, %330 : vector<16x32xf32>
    %332 = vector.extract_strided_slice %315 {offsets = [0, 0], sizes = [16, 96], strides = [1, 1]} : vector<16x128xf32> to vector<16x96xf32>
    %333 = arith.negf %332 : vector<16x96xf32>
    %334 = math.exp %333 : vector<16x96xf32>
    %cst_76 = arith.constant 1.000000e+00 : f32
    %335 = vector.broadcast %cst_76 : f32 to vector<16x96xf32>
    %336 = arith.addf %335, %334 : vector<16x96xf32>
    %337 = arith.divf %335, %336 : vector<16x96xf32>
    %338 = vector.extract_strided_slice %315 {offsets = [0, 96], sizes = [16, 32], strides = [1, 1]} : vector<16x128xf32> to vector<16x32xf32>
    %339 = math.tanh %338 : vector<16x32xf32>
    %340 = vector.extract_strided_slice %337 {offsets = [0, 32], sizes = [16, 32], strides = [1, 1]} : vector<16x96xf32> to vector<16x32xf32>
    %341 = arith.mulf %340, %300 : vector<16x32xf32>
    %342 = vector.extract_strided_slice %337 {offsets = [0, 0], sizes = [16, 32], strides = [1, 1]} : vector<16x96xf32> to vector<16x32xf32>
    %343 = arith.mulf %342, %339 : vector<16x32xf32>
    %344 = arith.addf %341, %343 : vector<16x32xf32>
    %345 = vector.extract_strided_slice %337 {offsets = [0, 64], sizes = [16, 32], strides = [1, 1]} : vector<16x96xf32> to vector<16x32xf32>
    %346 = math.tanh %344 : vector<16x32xf32>
    %347 = arith.mulf %345, %346 : vector<16x32xf32>
    %348 = vector.shape_cast %347 : vector<16x32xf32> to vector<16x1x32xf32>
    %c0_77 = arith.constant 0 : index
    %c6 = arith.constant 6 : index
    %c0_78 = arith.constant 0 : index
    %349 = vector.load %arg16[%c0_77, %c6, %c0_78] : memref<16x8x32xf32, #tpu.memory_space<vmem>>, vector<16x1x32xf32>
    tpu.vector_store %arg16[%c0_77, %c6, %c0_78], %348 {strides = array<i32>} : memref<16x8x32xf32, #tpu.memory_space<vmem>>, vector<16x1x32xf32>,
    %350 = arith.truncf %347 : vector<16x32xf32> to vector<16x32xbf16>
    %351 = arith.truncf %331 : vector<16x32xf32> to vector<16x32xbf16>
    %cst_79 = arith.constant dense<0.000000e+00> : vector<16x128xf32>
    %352 = tpu.matmul %351, %19, %cst_79 {dimension_numbers = #tpu.dot_dimension_numbers<[1], [0], [0], [1], [0, 0, 1, 1], [], []>} : vector<16x32xbf16>, vector<32x128xbf16>, vector<16x128xf32> -> vector<16x128xf32>
    %cst_80 = arith.constant dense<0.000000e+00> : vector<16x128xf32>
    %353 = tpu.matmul %350, %20, %cst_80 {dimension_numbers = #tpu.dot_dimension_numbers<[1], [0], [0], [1], [0, 0, 1, 1], [], []>} : vector<16x32xbf16>, vector<32x128xbf16>, vector<16x128xf32> -> vector<16x128xf32>
    %354 = arith.addf %352, %353 : vector<16x128xf32>
    %355 = vector.broadcast %21 : vector<1x128xf32> to vector<16x128xf32>
    %356 = arith.addf %354, %355 : vector<16x128xf32>
    %357 = vector.extract_strided_slice %356 {offsets = [0, 0], sizes = [16, 96], strides = [1, 1]} : vector<16x128xf32> to vector<16x96xf32>
    %358 = arith.negf %357 : vector<16x96xf32>
    %359 = math.exp %358 : vector<16x96xf32>
    %cst_81 = arith.constant 1.000000e+00 : f32
    %360 = vector.broadcast %cst_81 : f32 to vector<16x96xf32>
    %361 = arith.addf %360, %359 : vector<16x96xf32>
    %362 = arith.divf %360, %361 : vector<16x96xf32>
    %363 = vector.extract_strided_slice %356 {offsets = [0, 96], sizes = [16, 32], strides = [1, 1]} : vector<16x128xf32> to vector<16x32xf32>
    %364 = math.tanh %363 : vector<16x32xf32>
    %365 = vector.extract_strided_slice %362 {offsets = [0, 32], sizes = [16, 32], strides = [1, 1]} : vector<16x96xf32> to vector<16x32xf32>
    %366 = arith.mulf %365, %344 : vector<16x32xf32>
    %367 = vector.extract_strided_slice %362 {offsets = [0, 0], sizes = [16, 32], strides = [1, 1]} : vector<16x96xf32> to vector<16x32xf32>
    %368 = arith.mulf %367, %364 : vector<16x32xf32>
    %369 = arith.addf %366, %368 : vector<16x32xf32>
    %370 = vector.extract_strided_slice %362 {offsets = [0, 64], sizes = [16, 32], strides = [1, 1]} : vector<16x96xf32> to vector<16x32xf32>
    %371 = math.tanh %369 : vector<16x32xf32>
    %372 = arith.mulf %370, %371 : vector<16x32xf32>
    %373 = vector.shape_cast %372 : vector<16x32xf32> to vector<16x1x32xf32>
    %c0_82 = arith.constant 0 : index
    %c7 = arith.constant 7 : index
    %c0_83 = arith.constant 0 : index
    %374 = vector.load %arg16[%c0_82, %c7, %c0_83] : memref<16x8x32xf32, #tpu.memory_space<vmem>>, vector<16x1x32xf32>
    tpu.vector_store %arg16[%c0_82, %c7, %c0_83], %373 {strides = array<i32>} : memref<16x8x32xf32, #tpu.memory_space<vmem>>, vector<16x1x32xf32>,
    %c0_84 = arith.constant 0 : index
    %c0_85 = arith.constant 0 : index
    %375 = vector.load %arg1[%c0_84, %c0_85] : memref<16x1xi32, #tpu.memory_space<vmem>>, vector<16x1xi32>
    %376 = tpu.iota {dimensions = array<i32: 1>} : vector<1x8xi32>
    %377 = vector.broadcast %376 : vector<1x8xi32> to vector<16x8xi32>
    %378 = vector.broadcast %375 : vector<16x1xi32> to vector<16x8xi32>
    %379 = arith.cmpi slt, %377, %378 : vector<16x8xi32>
    %380 = arith.extui %379 : vector<16x8xi1> to vector<16x8xi32>
    %381 = arith.sitofp %380 : vector<16x8xi32> to vector<16x8xf32>
    %c0_86 = arith.constant 0 : index
    %c0_87 = arith.constant 0 : index
    %c0_88 = arith.constant 0 : index
    %382 = vector.load %arg16[%c0_86, %c0_87, %c0_88] : memref<16x8x32xf32, #tpu.memory_space<vmem>>, vector<16x8x32xf32>
    %383 = vector.shape_cast %381 : vector<16x8xf32> to vector<16x8x1xf32>
    %384 = vector.broadcast %383 : vector<16x8x1xf32> to vector<16x8x32xf32>
    %385 = arith.mulf %382, %384 : vector<16x8x32xf32>
    %386 = vector.shape_cast %385 : vector<16x8x32xf32> to vector<128x32xf32>
    %387 = arith.truncf %386 : vector<128x32xf32> to vector<128x32xbf16>
    %c0_89 = arith.constant 0 : index
    %c0_90 = arith.constant 0 : index
    %388 = vector.load %arg12[%c0_89, %c0_90] : memref<32x128xbf16, #tpu.memory_space<vmem>>, vector<32x128xbf16>
    %cst_91 = arith.constant dense<0.000000e+00> : vector<128x128xf32>
    %389 = tpu.matmul %387, %388, %cst_91 {dimension_numbers = #tpu.dot_dimension_numbers<[1], [0], [0], [1], [0, 0, 1, 1], [], []>} : vector<128x32xbf16>, vector<32x128xbf16>, vector<128x128xf32> -> vector<128x128xf32>
    %c0_92 = arith.constant 0 : index
    %c0_93 = arith.constant 0 : index
    %390 = vector.load %arg13[%c0_92, %c0_93] : memref<1x128xf32, #tpu.memory_space<vmem>>, vector<1x128xf32>
    %391 = vector.broadcast %390 : vector<1x128xf32> to vector<128x128xf32>
    %392 = arith.addf %389, %391 : vector<128x128xf32>
    %cst_94 = arith.constant dense<0xFF800000> : vector<128xf32>
    %393 = vector.multi_reduction <maximumf>, %392, %cst_94 [1] : vector<128x128xf32> to vector<128xf32>
    %394 = vector.shape_cast %393 : vector<128xf32> to vector<128x1xf32>
    %395 = vector.broadcast %394 : vector<128x1xf32> to vector<128x128xf32>
    %396 = arith.subf %392, %395 : vector<128x128xf32>
    %397 = math.exp %396 : vector<128x128xf32>
    %cst_95 = arith.constant dense<0.000000e+00> : vector<128xf32>
    %398 = vector.multi_reduction <add>, %397, %cst_95 [1] : vector<128x128xf32> to vector<128xf32>
    %399 = vector.shape_cast %398 : vector<128xf32> to vector<128x1xf32>
    %400 = math.log %399 : vector<128x1xf32>
    %401 = vector.broadcast %400 : vector<128x1xf32> to vector<128x128xf32>
    %402 = arith.subf %396, %401 : vector<128x128xf32>
    %403 = vector.shape_cast %402 : vector<128x128xf32> to vector<16x8x128xf32>
    %c0_96 = arith.constant 0 : index
    %c0_97 = arith.constant 0 : index
    %c0_98 = arith.constant 0 : index
    %404 = vector.load %arg14[%c0_96, %c0_97, %c0_98] : memref<16x8x128xf32, #tpu.memory_space<vmem>>, vector<16x8x128xf32>
    tpu.vector_store %arg14[%c0_96, %c0_97, %c0_98], %403 {strides = array<i32>} : memref<16x8x128xf32, #tpu.memory_space<vmem>>, vector<16x8x128xf32>,
    %cst_99 = arith.constant dense<0xFF800000> : vector<16x8xf32>
    %405 = vector.multi_reduction <maximumf>, %403, %cst_99 [2] : vector<16x8x128xf32> to vector<16x8xf32>
    %406 = vector.shape_cast %405 : vector<16x8xf32> to vector<16x8x1xf32>
    %407 = tpu.iota {dimensions = array<i32: 2>} : vector<16x8x128xi32>
    %408 = vector.broadcast %406 : vector<16x8x1xf32> to vector<16x8x128xf32>
    %409 = arith.cmpf oeq, %403, %408 : vector<16x8x128xf32>
    %c128_i32 = arith.constant 128 : i32
    %410 = vector.broadcast %c128_i32 : i32 to vector<16x8x128xi32>
    %411 = arith.select %409, %407, %410 : vector<16x8x128xi1>, vector<16x8x128xi32>
    %cst_100 = arith.constant dense<2147483647> : vector<16x8xi32>
    %412 = vector.multi_reduction <minsi>, %411, %cst_100 [2] : vector<16x8x128xi32> to vector<16x8xi32>
    %c0_101 = arith.constant 0 : index
    %c0_102 = arith.constant 0 : index
    %413 = vector.load %arg15[%c0_101, %c0_102] : memref<16x8xi32, #tpu.memory_space<vmem>>, vector<16x8xi32>
    tpu.vector_store %arg15[%c0_101, %c0_102], %412 {strides = array<i32>} : memref<16x8xi32, #tpu.memory_space<vmem>>, vector<16x8xi32>,
    return
  }
  func.func @transform_0(%arg0: i32) -> (i32, i32) {
    %c0_i32 = arith.constant 0 : i32
    %c0_i32_0 = arith.constant 0 : i32
    return %arg0, %c0_i32 : i32, i32
  }
  func.func @transform_1(%arg0: i32) -> (i32, i32) {
    %c0_i32 = arith.constant 0 : i32
    %c0_i32_0 = arith.constant 0 : i32
    return %arg0, %c0_i32 : i32, i32
  }
  func.func @transform_2(%arg0: i32) -> (i32, i32) {
    %c0_i32 = arith.constant 0 : i32
    %c0_i32_0 = arith.constant 0 : i32
    %c0_i32_1 = arith.constant 0 : i32
    return %c0_i32, %c0_i32_0 : i32, i32
  }
  func.func @transform_3(%arg0: i32) -> (i32, i32) {
    %c0_i32 = arith.constant 0 : i32
    %c0_i32_0 = arith.constant 0 : i32
    %c0_i32_1 = arith.constant 0 : i32
    return %c0_i32, %c0_i32_0 : i32, i32
  }
  func.func @transform_4(%arg0: i32) -> (i32, i32, i32) {
    %c0_i32 = arith.constant 0 : i32
    %c0_i32_0 = arith.constant 0 : i32
    %c0_i32_1 = arith.constant 0 : i32
    return %c0_i32, %arg0, %c0_i32_0 : i32, i32, i32
  }
  func.func @transform_5(%arg0: i32) -> (i32, i32) {
    %c0_i32 = arith.constant 0 : i32
    %c0_i32_0 = arith.constant 0 : i32
    %c0_i32_1 = arith.constant 0 : i32
    return %c0_i32, %c0_i32_0 : i32, i32
  }
  func.func @transform_6(%arg0: i32) -> (i32, i32) {
    %c0_i32 = arith.constant 0 : i32
    %c0_i32_0 = arith.constant 0 : i32
    %c0_i32_1 = arith.constant 0 : i32
    return %c0_i32, %c0_i32_0 : i32, i32
  }
  func.func @transform_7(%arg0: i32) -> (i32, i32) {
    %c0_i32 = arith.constant 0 : i32
    %c0_i32_0 = arith.constant 0 : i32
    %c0_i32_1 = arith.constant 0 : i32
    return %c0_i32, %c0_i32_0 : i32, i32
  }
  func.func @transform_8(%arg0: i32) -> (i32, i32) {
    %c0_i32 = arith.constant 0 : i32
    %c0_i32_0 = arith.constant 0 : i32
    %c0_i32_1 = arith.constant 0 : i32
    return %c0_i32, %c0_i32_0 : i32, i32
  }
  func.func @transform_9(%arg0: i32) -> (i32, i32) {
    %c0_i32 = arith.constant 0 : i32
    %c0_i32_0 = arith.constant 0 : i32
    %c0_i32_1 = arith.constant 0 : i32
    return %c0_i32, %c0_i32_0 : i32, i32
  }
  func.func @transform_10(%arg0: i32) -> (i32, i32) {
    %c0_i32 = arith.constant 0 : i32
    %c0_i32_0 = arith.constant 0 : i32
    %c0_i32_1 = arith.constant 0 : i32
    return %c0_i32, %c0_i32_0 : i32, i32
  }
  func.func @transform_11(%arg0: i32) -> (i32, i32) {
    %c0_i32 = arith.constant 0 : i32
    %c0_i32_0 = arith.constant 0 : i32
    %c0_i32_1 = arith.constant 0 : i32
    return %c0_i32, %c0_i32_0 : i32, i32
  }
  func.func @transform_12(%arg0: i32) -> (i32, i32) {
    %c0_i32 = arith.constant 0 : i32
    %c0_i32_0 = arith.constant 0 : i32
    %c0_i32_1 = arith.constant 0 : i32
    return %c0_i32, %c0_i32_0 : i32, i32
  }
  func.func @transform_13(%arg0: i32) -> (i32, i32, i32) {
    %c0_i32 = arith.constant 0 : i32
    %c0_i32_0 = arith.constant 0 : i32
    %c0_i32_1 = arith.constant 0 : i32
    return %arg0, %c0_i32, %c0_i32_0 : i32, i32, i32
  }
  func.func @transform_14(%arg0: i32) -> (i32, i32) {
    %c0_i32 = arith.constant 0 : i32
    %c0_i32_0 = arith.constant 0 : i32
    return %arg0, %c0_i32 : i32, i32
  }
}

</mosaic_0001>

<llo_original>
// kernel: tpu_custom_call.1
$region0: #{tpu_custom_call.1}
  #allocation0 [shape = 'u32[]', space=smem, size = 0x4, offset = 0x4, fixed_abs, tag = 'smem constant byte address 0x4 - core index']
  #allocation1 [shape = 'u32[144,128]{1,0:T(1,128)}', space=vmem, size = 0x12000, scoped, tag = 'internal scratch']
  #allocation2 [shape = 'f32[16,8,32]{2,1,0:T(8,128)}', space=vmem, size = 0x10000, scoped, tag = 'scratch operand']
  %s0 = inlined_call_operand.vmem [shape: s32[16,1], index: 0, kind: input, shape index: {}]
  %s1 = inlined_call_operand.hbm [shape: bf16[16,64], index: 1, kind: input, shape index: {}]
  %s2 = inlined_call_operand.vmem [shape: bf16[64,32], index: 2, kind: input, shape index: {}]
  %s3 = inlined_call_operand.vmem [shape: f32[1,32], index: 3, kind: input, shape index: {}]
  %s4 = inlined_call_operand.vmem [shape: bf16[7,16,32], index: 4, kind: input, shape index: {}]
  %s5 = inlined_call_operand.vmem [shape: bf16[32,128], index: 5, kind: input, shape index: {}]
  %s6 = inlined_call_operand.hbm [shape: bf16[32,128], index: 6, kind: input, shape index: {}]
  %s7 = inlined_call_operand.vmem [shape: f32[1,128], index: 7, kind: input, shape index: {}]
  %s8 = inlined_call_operand.vmem [shape: bf16[32,128], index: 8, kind: input, shape index: {}]
  %s9 = inlined_call_operand.hbm [shape: bf16[32,128], index: 9, kind: input, shape index: {}]
  %s10 = inlined_call_operand.hbm [shape: f32[1,128], index: 10, kind: input, shape index: {}]
  %s11 = inlined_call_operand.vmem [shape: bf16[32,128], index: 11, kind: input, shape index: {}]
  %s12 = inlined_call_operand.vmem [shape: f32[1,128], index: 12, kind: input, shape index: {}]
  %s13 = inlined_call_operand.hbm [shape: f32[16,8,128], index: 13, kind: output, shape index: {0}]
  %s14 = inlined_call_operand.vmem [shape: s32[16,8], index: 14, kind: output, shape index: {1}]
  %15 = xla_tuple %s13, %s14
  %s16 = sld [smem:[#allocation0]]
  $region86: #{tpu_custom_call.1} parent=0
    _
  %s18 = ssub.s32 1, %s16
  %s19 = scalar_select 0, %s18, %s16
  $region1: #{tpu_custom_call.1} parent=0
    #allocation3 [shape = 'u8[4096]{0}', space=vmem, size = 0x1000, scoped, tag = 'input window, operand 1, single buffered']
    #allocation4 [shape = 's32[1]{0}', space=sflag, size = 0x4, scoped, tag = 'scoped memory for tpu_custom_call.1']
    #allocation5 [shape = 's32[1]{0}', space=sflag, size = 0x4, scoped, tag = 'scoped memory for tpu_custom_call.1']
    #allocation6 [shape = 'u8[8192]{0}', space=vmem, size = 0x2000, scoped, tag = 'input window, operand 6, single buffered']
    #allocation7 [shape = 's32[1]{0}', space=sflag, size = 0x4, scoped, tag = 'scoped memory for tpu_custom_call.1']
    #allocation8 [shape = 'u8[8192]{0}', space=vmem, size = 0x2000, scoped, tag = 'input window, operand 9, single buffered']
    #allocation9 [shape = 'u8[512]{0}', space=vmem, size = 0x400, scoped, tag = 'input window, operand 10, single buffered']
    #allocation10 [shape = 's32[1]{0}', space=sflag, size = 0x4, scoped, tag = 'scoped memory for tpu_custom_call.1']
    #allocation11 [shape = 'u8[65536]{0}', space=vmem, size = 0x10000, scoped, tag = 'output window, operand 0, single buffered']
    %20 = vsyncpa [#allocation4], 0
    %21 = vsyncpa [#allocation7], 0
    %22 = vsyncpa [#allocation10], 0
    %23 = vsyncpa [#allocation5], 0
    // Predicated region
    $region2: #{tpu_custom_call.1} parent=1 // pred_check
      _
    $region3: #{tpu_custom_call.1} parent=1 // pred_check_branch
      %25 = sbr.rel (0) target = $region5
    $region4: #{tpu_custom_call.1} parent=1 // pred_region
      _
    $region5: #{tpu_custom_call.1} parent=1 // pred_fallthru
      _
    // Predicated region
    $region6: #{tpu_custom_call.1} parent=1 // pred_check
      _
    $region7: #{tpu_custom_call.1} parent=1 // pred_check_branch
      %27 = sbr.rel (0) target = $region9
    $region8: #{tpu_custom_call.1} parent=1 // pred_region
      %s29 = ssub.s32 128, 128
      %30 = vsyncadd [#allocation4], %s29
      %s31 = sshll.u32 [#allocation3], 4
      %s32 = int_to_ptr.vmem [resolvable:$true] %s31
      %37 = dma.hbm_to_vmem [thread:$0]  %s1, 128, %s32, [#allocation4], 64, 64, 4
    $region9: #{tpu_custom_call.1} parent=1 // pred_fallthru
      _
    // Predicated region
    $region10: #{tpu_custom_call.1} parent=1 // pred_check
      _
    $region11: #{tpu_custom_call.1} parent=1 // pred_check_branch
      %39 = sbr.rel (0) target = $region13
    $region12: #{tpu_custom_call.1} parent=1 // pred_region
      _
    $region13: #{tpu_custom_call.1} parent=1 // pred_fallthru
      _
    // Predicated region
    $region14: #{tpu_custom_call.1} parent=1 // pred_check
      _
    $region15: #{tpu_custom_call.1} parent=1 // pred_check_branch
      %41 = sbr.rel (0) target = $region17
    $region16: #{tpu_custom_call.1} parent=1 // pred_region
      _
    $region17: #{tpu_custom_call.1} parent=1 // pred_fallthru
      _
    // Predicated region
    $region18: #{tpu_custom_call.1} parent=1 // pred_check
      _
    $region19: #{tpu_custom_call.1} parent=1 // pred_check_branch
      %43 = sbr.rel (0) target = $region21
    $region20: #{tpu_custom_call.1} parent=1 // pred_region
      _
    $region21: #{tpu_custom_call.1} parent=1 // pred_fallthru
      _
    // Predicated region
    $region22: #{tpu_custom_call.1} parent=1 // pred_check
      _
    $region23: #{tpu_custom_call.1} parent=1 // pred_check_branch
      %45 = sbr.rel (0) target = $region25
    $region24: #{tpu_custom_call.1} parent=1 // pred_region
      _
    $region25: #{tpu_custom_call.1} parent=1 // pred_fallthru
      _
    // Predicated region
    $region26: #{tpu_custom_call.1} parent=1 // pred_check
      _
    $region27: #{tpu_custom_call.1} parent=1 // pred_check_branch
      %47 = sbr.rel (0) target = $region29
    $region28: #{tpu_custom_call.1} parent=1 // pred_region
      %s49 = ssub.s32 256, 256
      %50 = vsyncadd [#allocation7], %s49
      %s51 = sshll.u32 [#allocation6], 4
      %s52 = int_to_ptr.vmem [resolvable:$true] %s51
      %57 = dma.hbm_to_vmem [thread:$0]  %s6, 256, %s52, [#allocation7], 64, 64, 4
    $region29: #{tpu_custom_call.1} parent=1 // pred_fallthru
      _
    // Predicated region
    $region30: #{tpu_custom_call.1} parent=1 // pred_check
      _
    $region31: #{tpu_custom_call.1} parent=1 // pred_check_branch
      %59 = sbr.rel (0) target = $region33
    $region32: #{tpu_custom_call.1} parent=1 // pred_region
      _
    $region33: #{tpu_custom_call.1} parent=1 // pred_fallthru
      _
    // Predicated region
    $region34: #{tpu_custom_call.1} parent=1 // pred_check
      _
    $region35: #{tpu_custom_call.1} parent=1 // pred_check_branch
      %61 = sbr.rel (0) target = $region37
    $region36: #{tpu_custom_call.1} parent=1 // pred_region
      _
    $region37: #{tpu_custom_call.1} parent=1 // pred_fallthru
      _
    // Predicated region
    $region38: #{tpu_custom_call.1} parent=1 // pred_check
      _
    $region39: #{tpu_custom_call.1} parent=1 // pred_check_branch
      %63 = sbr.rel (0) target = $region41
    $region40: #{tpu_custom_call.1} parent=1 // pred_region
      %s65 = ssub.s32 256, 256
      %66 = vsyncadd [#allocation7], %s65
      %s67 = sshll.u32 [#allocation8], 4
      %s68 = int_to_ptr.vmem [resolvable:$true] %s67
      %73 = dma.hbm_to_vmem [thread:$0]  %s9, 256, %s68, [#allocation7], 64, 64, 4
    $region41: #{tpu_custom_call.1} parent=1 // pred_fallthru
      _
    // Predicated region
    $region42: #{tpu_custom_call.1} parent=1 // pred_check
      _
    $region43: #{tpu_custom_call.1} parent=1 // pred_check_branch
      %75 = sbr.rel (0) target = $region45
    $region44: #{tpu_custom_call.1} parent=1 // pred_region
      %s77 = ssub.s32 16, 16
      %78 = vsyncadd [#allocation10], %s77
      %s80 = sshll.u32 [#allocation9], 4
      %s81 = int_to_ptr.vmem [resolvable:$true] %s80
      %83 = dma.hbm_to_vmem [thread:$0]  %s10, 16, %s81, [#allocation10]
    $region45: #{tpu_custom_call.1} parent=1 // pred_fallthru
      _
    // Predicated region
    $region46: #{tpu_custom_call.1} parent=1 // pred_check
      _
    $region47: #{tpu_custom_call.1} parent=1 // pred_check_branch
      %85 = sbr.rel (0) target = $region49
    $region48: #{tpu_custom_call.1} parent=1 // pred_region
      _
    $region49: #{tpu_custom_call.1} parent=1 // pred_fallthru
      _
    // Predicated region
    $region50: #{tpu_custom_call.1} parent=1 // pred_check
      _
    $region51: #{tpu_custom_call.1} parent=1 // pred_check_branch
      %87 = sbr.rel (0) target = $region53
    $region52: #{tpu_custom_call.1} parent=1 // pred_region
      _
    $region53: #{tpu_custom_call.1} parent=1 // pred_fallthru
      _
    // Predicated region
    $region54: #{tpu_custom_call.1} parent=1 // pred_check
      _
    $region55: #{tpu_custom_call.1} parent=1 // pred_check_branch
      %89 = sbr.rel (0) target = $region57
    $region56: #{tpu_custom_call.1} parent=1 // pred_region
      %90 = dma.done [#allocation4], 128
    $region57: #{tpu_custom_call.1} parent=1 // pred_fallthru
      _
    // Predicated region
    $region58: #{tpu_custom_call.1} parent=1 // pred_check
      _
    $region59: #{tpu_custom_call.1} parent=1 // pred_check_branch
      %92 = sbr.rel (0) target = $region61
    $region60: #{tpu_custom_call.1} parent=1 // pred_region
      %93 = dma.done [#allocation7], 256
    $region61: #{tpu_custom_call.1} parent=1 // pred_fallthru
      _
    // Predicated region
    $region62: #{tpu_custom_call.1} parent=1 // pred_check
      _
    $region63: #{tpu_custom_call.1} parent=1 // pred_check_branch
      %95 = sbr.rel (0) target = $region65
    $region64: #{tpu_custom_call.1} parent=1 // pred_region
      %96 = dma.done [#allocation7], 256
    $region65: #{tpu_custom_call.1} parent=1 // pred_fallthru
      _
    // Predicated region
    $region66: #{tpu_custom_call.1} parent=1 // pred_check
      _
    $region67: #{tpu_custom_call.1} parent=1 // pred_check_branch
      %98 = sbr.rel (0) target = $region69
    $region68: #{tpu_custom_call.1} parent=1 // pred_region
      %99 = dma.done [#allocation10], 16
    $region69: #{tpu_custom_call.1} parent=1 // pred_fallthru
      _
    %v101 = vld [vmem:[#allocation3] sm:$0xf]
    %v102 = vld [vmem:[#allocation3 + $0x4] sm:$0xf]
    %v103 = vld [vmem:[%s2] sm:$0xf]
    %v104 = vld [vmem:[%s2 + $0x4] sm:$0xf]
    %v105 = vld [vmem:[%s2 + $0x8] sm:$0xf]
    %v106 = vld [vmem:[%s2 + $0xc] sm:$0xf]
    %v107 = vld [vmem:[%s2 + $0x10] sm:$0xf]
    %v108 = vld [vmem:[%s2 + $0x14] sm:$0xf]
    %v109 = vld [vmem:[%s2 + $0x18] sm:$0xf]
    %v110 = vld [vmem:[%s2 + $0x1c] sm:$0xf]
    %v111 = vld [vmem:[%s3] sm:$0x1]
    %v113 = vlaneseq
    %v114 = vshrl.u32 %v113, 7
    %v115 = vsub.s32 0, %v114
    %v116 = vrot.slane %v111, %v115
    %v120 = vunpack.c.l.b16 %v101
    %v121 = vunpack.c.l.b16 %v102
    %v122 = vpack.c.b16 %v121, %v120
    %v131 = vunpack.c.l.b16 %v103
    %v132 = vunpack.c.l.b16 %v104
    %v133 = vunpack.c.l.b16 %v105
    %v134 = vunpack.c.l.b16 %v106
    %v135 = vunpack.c.l.b16 %v107
    %v136 = vunpack.c.l.b16 %v108
    %v137 = vunpack.c.l.b16 %v109
    %v138 = vunpack.c.l.b16 %v110
    %v139 = vpack.c.b16 %v132, %v131
    %v140 = vpack.c.b16 %v134, %v133
    %v141 = vpack.c.b16 %v136, %v135
    %v142 = vpack.c.b16 %v138, %v137
    %vm147 = vcmask 523264
    %v149 = vsel %vm147, %v122, 0
    %151 = vmatprep.subr.bf16.mxu0 0
    %152 = vmatpush1.bf16.msra.mxu0 %v139
    %153 = vmatprep.subr.bf16.mxu0 0
    %154 = vmatpush1.bf16.msra.mxu0 %v140
    %155 = vmatprep.subr.bf16.mxu0 0
    %156 = vmatpush1.bf16.msra.mxu0 %v141
    %157 = vmatprep.subr.bf16.mxu0 0
    %158 = vmatpush1.bf16.msra.mxu0 %v142
    %159 = vmatprep.subr.bf16.mxu0 0
    %160 = vmatpush1.bf16.msra.mxu0 0
    %161 = vmatprep.subr.bf16.mxu0 0
    %162 = vmatpush1.bf16.msra.mxu0 0
    %163 = vmatprep.subr.bf16.mxu0 0
    %164 = vmatpush1.bf16.msra.mxu0 0
    %165 = vmatprep.subr.bf16.mxu0 0
    %166 = vmatpush1.bf16.msra.mxu0 0
    %167 = vmatprep.subr.bf16.mxu0 0
    %168 = vmatpush1.bf16.msra.mxu0 0
    %169 = vmatprep.subr.bf16.mxu0 0
    %170 = vmatpush1.bf16.msra.mxu0 0
    %171 = vmatprep.subr.bf16.mxu0 0
    %172 = vmatpush1.bf16.msra.mxu0 0
    %173 = vmatprep.subr.bf16.mxu0 0
    %174 = vmatpush1.bf16.msra.mxu0 0
    %175 = vmatprep.subr.bf16.mxu0 0
    %176 = vmatpush1.bf16.msra.mxu0 0
    %177 = vmatprep.subr.bf16.mxu0 0
    %178 = vmatpush1.bf16.msra.mxu0 0
    %179 = vmatprep.subr.bf16.mxu0 0
    %180 = vmatpush1.bf16.msra.mxu0 0
    %181 = vmatprep.subr.bf16.mxu0 0
    %182 = vmatpush1.bf16.msra.mxu0 0
    %183 = vmatprep.mubr.bf16.mxu0 0
    %184 = vmatmul.mubr.bf16.gmra.mrb[0].mxu0 %v149
    %v185 = vpop.f32.mrb[0].mxu0
    %v186 = vadd.f32 %v116, %v185
    %v187 = vpop.f32.mrb[0].mxu0
    %v188 = vpop.f32.mrb[0].mxu0
    %v189 = vadd.f32 %v116, %v188
    %v190 = vpop.f32.mrb[0].mxu0
    %191 = vdwg.mxu0
    %v192 = vld [vmem:[%s7] sm:$0x1]
    %v193 = vpack.c.bf16 %v189, %v186
    %v194 = vld [vmem:[%s5] sm:$0xf]
    %v195 = vld [vmem:[%s5 + $0x4] sm:$0xf]
    %v196 = vld [vmem:[%s5 + $0x8] sm:$0xf]
    %v197 = vld [vmem:[%s5 + $0xc] sm:$0xf]
    %v199 = vlaneseq
    %v200 = vshrl.u32 %v199, 7
    %v201 = vsub.s32 0, %v200
    %v202 = vrot.slane %v192, %v201
    %v208 = vunpack.c.l.b16 %v194
    %v209 = vunpack.c.l.b16 %v195
    %v210 = vunpack.c.l.b16 %v196
    %v211 = vunpack.c.l.b16 %v197
    %v212 = vpack.c.b16 %v209, %v208
    %v213 = vpack.c.b16 %v211, %v210
    %vm216 = vcmask 261120
    %v218 = vsel %vm216, %v193, 0
    %220 = vmatprep.subr.bf16.mxu0 0
    %221 = vmatpush1.bf16.msra.mxu0 %v212
    %222 = vmatprep.subr.bf16.mxu0 0
    %223 = vmatpush1.bf16.msra.mxu0 %v213
    %224 = vmatprep.subr.bf16.mxu0 0
    %225 = vmatpush1.bf16.msra.mxu0 0
    %226 = vmatprep.subr.bf16.mxu0 0
    %227 = vmatpush1.bf16.msra.mxu0 0
    %228 = vmatprep.subr.bf16.mxu0 0
    %229 = vmatpush1.bf16.msra.mxu0 0
    %230 = vmatprep.subr.bf16.mxu0 0
    %231 = vmatpush1.bf16.msra.mxu0 0
    %232 = vmatprep.subr.bf16.mxu0 0
    %233 = vmatpush1.bf16.msra.mxu0 0
    %234 = vmatprep.subr.bf16.mxu0 0
    %235 = vmatpush1.bf16.msra.mxu0 0
    %236 = vmatprep.subr.bf16.mxu0 0
    %237 = vmatpush1.bf16.msra.mxu0 0
    %238 = vmatprep.subr.bf16.mxu0 0
    %239 = vmatpush1.bf16.msra.mxu0 0
    %240 = vmatprep.subr.bf16.mxu0 0
    %241 = vmatpush1.bf16.msra.mxu0 0
    %242 = vmatprep.subr.bf16.mxu0 0
    %243 = vmatpush1.bf16.msra.mxu0 0
    %244 = vmatprep.subr.bf16.mxu0 0
    %245 = vmatpush1.bf16.msra.mxu0 0
    %246 = vmatprep.subr.bf16.mxu0 0
    %247 = vmatpush1.bf16.msra.mxu0 0
    %248 = vmatprep.subr.bf16.mxu0 0
    %249 = vmatpush1.bf16.msra.mxu0 0
    %250 = vmatprep.subr.bf16.mxu0 0
    %251 = vmatpush1.bf16.msra.mxu0 0
    %252 = vmatprep.mubr.bf16.mxu0 0
    %253 = vmatmul.mubr.bf16.gmra.mrb[0].mxu0 %v218
    %v254 = vpop.f32.mrb[0].mxu0
    %v255 = vadd.f32 %v202, %v254
    %v256 = vpop.f32.mrb[0].mxu0
    %v257 = vpop.f32.mrb[0].mxu0
    %v258 = vadd.f32 %v202, %v257
    %v259 = vpop.f32.mrb[0].mxu0
    %260 = vdwg.mxu0
    %v261 = vld [vmem:[%s4] sm:$0xf]
    %v262 = vld [vmem:[%s4 + $0x4] sm:$0xf]
    %v263 = vld [vmem:[%s4 + $0x8] sm:$0xf]
    %v264 = vld [vmem:[%s4 + $0xc] sm:$0xf]
    %v265 = vld [vmem:[%s4 + $0x10] sm:$0xf]
    %v266 = vld [vmem:[%s4 + $0x14] sm:$0xf]
    %v267 = vld [vmem:[%s4 + $0x18] sm:$0xf]
    %v268 = vld [vmem:[%s4 + $0x1c] sm:$0xf]
    %v269 = vld [vmem:[%s4 + $0x20] sm:$0xf]
    %v270 = vld [vmem:[%s4 + $0x24] sm:$0xf]
    %v271 = vld [vmem:[%s4 + $0x28] sm:$0xf]
    %v272 = vld [vmem:[%s4 + $0x2c] sm:$0xf]
    %v273 = vld [vmem:[%s4 + $0x30] sm:$0xf]
    %v274 = vld [vmem:[%s4 + $0x34] sm:$0xf]
    %v289 = vunpack.c.l.b16 %v261
    %v290 = vunpack.c.l.b16 %v262
    %v291 = vunpack.c.l.b16 %v263
    %v292 = vunpack.c.l.b16 %v264
    %v293 = vunpack.c.l.b16 %v265
    %v294 = vunpack.c.l.b16 %v266
    %v295 = vunpack.c.l.b16 %v267
    %v296 = vunpack.c.l.b16 %v268
    %v297 = vunpack.c.l.b16 %v269
    %v298 = vunpack.c.l.b16 %v270
    %v299 = vunpack.c.l.b16 %v271
    %v300 = vunpack.c.l.b16 %v272
    %v301 = vunpack.c.l.b16 %v273
    %v302 = vunpack.c.l.b16 %v274
    %v303 = vpack.c.b16 %v290, %v289
    %v304 = vpack.c.b16 %v292, %v291
    %v305 = vpack.c.b16 %v294, %v293
    %v306 = vpack.c.b16 %v296, %v295
    %v307 = vpack.c.b16 %v298, %v297
    %v308 = vpack.c.b16 %v300, %v299
    %v309 = vpack.c.b16 %v302, %v301
    %v311 = vsel %vm216, %v303, 0
    %v314 = vsel %vm216, %v304, 0
    %v317 = vsel %vm216, %v305, 0
    %v320 = vsel %vm216, %v306, 0
    %v323 = vsel %vm216, %v307, 0
    %v326 = vsel %vm216, %v308, 0
    %v329 = vsel %vm216, %v309, 0
    %331 = vmatprep.subr.bf16.mxu0 0
    %332 = vmatpush1.bf16.msra.mxu0 %v212
    %333 = vmatprep.subr.bf16.mxu0 0
    %334 = vmatpush1.bf16.msra.mxu0 %v213
    %335 = vmatprep.subr.bf16.mxu0 0
    %336 = vmatpush1.bf16.msra.mxu0 0
    %337 = vmatprep.subr.bf16.mxu0 0
    %338 = vmatpush1.bf16.msra.mxu0 0
    %339 = vmatprep.subr.bf16.mxu0 0
    %340 = vmatpush1.bf16.msra.mxu0 0
    %341 = vmatprep.subr.bf16.mxu0 0
    %342 = vmatpush1.bf16.msra.mxu0 0
    %343 = vmatprep.subr.bf16.mxu0 0
    %344 = vmatpush1.bf16.msra.mxu0 0
    %345 = vmatprep.subr.bf16.mxu0 0
    %346 = vmatpush1.bf16.msra.mxu0 0
    %347 = vmatprep.subr.bf16.mxu0 0
    %348 = vmatpush1.bf16.msra.mxu0 0
    %349 = vmatprep.subr.bf16.mxu0 0
    %350 = vmatpush1.bf16.msra.mxu0 0
    %351 = vmatprep.subr.bf16.mxu0 0
    %352 = vmatpush1.bf16.msra.mxu0 0
    %353 = vmatprep.subr.bf16.mxu0 0
    %354 = vmatpush1.bf16.msra.mxu0 0
    %355 = vmatprep.subr.bf16.mxu0 0
    %356 = vmatpush1.bf16.msra.mxu0 0
    %357 = vmatprep.subr.bf16.mxu0 0
    %358 = vmatpush1.bf16.msra.mxu0 0
    %359 = vmatprep.subr.bf16.mxu0 0
    %360 = vmatpush1.bf16.msra.mxu0 0
    %361 = vmatprep.subr.bf16.mxu0 0
    %362 = vmatpush1.bf16.msra.mxu0 0
    %363 = vmatprep.mubr.bf16.mxu0 0
    %364 = vmatmul.mubr.bf16.gmra.mrb[0].mxu0 %v311
    %v365 = vpop.f32.mrb[0].mxu0
    %v366 = vadd.f32 %v202, %v365
    %v367 = vpop.f32.mrb[0].mxu0
    %v368 = vpop.f32.mrb[0].mxu0
    %v369 = vadd.f32 %v202, %v368
    %v370 = vpop.f32.mrb[0].mxu0
    %371 = vmatprep.mubr.bf16.mxu0 0
    %372 = vmatmul.mubr.bf16.gmra.mrb[0].mxu0 %v314
    %v373 = vpop.f32.mrb[0].mxu0
    %v374 = vadd.f32 %v202, %v373
    %v375 = vpop.f32.mrb[0].mxu0
    %v376 = vpop.f32.mrb[0].mxu0
    %v377 = vadd.f32 %v202, %v376
    %v378 = vpop.f32.mrb[0].mxu0
    %379 = vmatprep.mubr.bf16.mxu0 0
    %380 = vmatmul.mubr.bf16.gmra.mrb[0].mxu0 %v317
    %v381 = vpop.f32.mrb[0].mxu0
    %v382 = vadd.f32 %v202, %v381
    %v383 = vpop.f32.mrb[0].mxu0
    %v384 = vpop.f32.mrb[0].mxu0
    %v385 = vadd.f32 %v202, %v384
    %v386 = vpop.f32.mrb[0].mxu0
    %387 = vmatprep.mubr.bf16.mxu0 0
    %388 = vmatmul.mubr.bf16.gmra.mrb[0].mxu0 %v320
    %v389 = vpop.f32.mrb[0].mxu0
    %v390 = vadd.f32 %v202, %v389
    %v391 = vpop.f32.mrb[0].mxu0
    %v392 = vpop.f32.mrb[0].mxu0
    %v393 = vadd.f32 %v202, %v392
    %v394 = vpop.f32.mrb[0].mxu0
    %395 = vmatprep.mubr.bf16.mxu0 0
    %396 = vmatmul.mubr.bf16.gmra.mrb[0].mxu0 %v323
    %v397 = vpop.f32.mrb[0].mxu0
    %v398 = vadd.f32 %v202, %v397
    %v399 = vpop.f32.mrb[0].mxu0
    %v400 = vpop.f32.mrb[0].mxu0
    %v401 = vadd.f32 %v202, %v400
    %v402 = vpop.f32.mrb[0].mxu0
    %403 = vmatprep.mubr.bf16.mxu0 0
    %404 = vmatmul.mubr.bf16.gmra.mrb[0].mxu0 %v326
    %v405 = vpop.f32.mrb[0].mxu0
    %v406 = vadd.f32 %v202, %v405
    %v407 = vpop.f32.mrb[0].mxu0
    %v408 = vpop.f32.mrb[0].mxu0
    %v409 = vadd.f32 %v202, %v408
    %v410 = vpop.f32.mrb[0].mxu0
    %411 = vmatprep.mubr.bf16.mxu0 0
    %412 = vmatmul.mubr.bf16.gmra.mrb[0].mxu0 %v329
    %v413 = vpop.f32.mrb[0].mxu0
    %v414 = vadd.f32 %v202, %v413
    %v415 = vpop.f32.mrb[0].mxu0
    %v416 = vpop.f32.mrb[0].mxu0
    %v417 = vadd.f32 %v202, %v416
    %v418 = vpop.f32.mrb[0].mxu0
    %419 = vdwg.mxu0
    %v420 = vld [vmem:[#allocation6] sm:$0xf]
    %v421 = vld [vmem:[#allocation6 + $0x4] sm:$0xf]
    %v422 = vld [vmem:[#allocation6 + $0x8] sm:$0xf]
    %v423 = vld [vmem:[#allocation6 + $0xc] sm:$0xf]
    %v424 = vld [vmem:[%s8] sm:$0xf]
    %v425 = vld [vmem:[%s8 + $0x4] sm:$0xf]
    %v426 = vld [vmem:[%s8 + $0x8] sm:$0xf]
    %v427 = vld [vmem:[%s8 + $0xc] sm:$0xf]
    %v428 = vld [vmem:[#allocation8] sm:$0xf]
    %v429 = vld [vmem:[#allocation8 + $0x4] sm:$0xf]
    %v430 = vld [vmem:[#allocation8 + $0x8] sm:$0xf]
    %v431 = vld [vmem:[#allocation8 + $0xc] sm:$0xf]
    %v432 = vld [vmem:[#allocation9] sm:$0x1]
    %v437 = vunpack.c.l.b16 %v420
    %v438 = vunpack.c.l.b16 %v421
    %v439 = vunpack.c.l.b16 %v422
    %v440 = vunpack.c.l.b16 %v423
    %v441 = vpack.c.b16 %v438, %v437
    %v442 = vpack.c.b16 %v440, %v439
    %v446 = vsel %vm216, 0, 0
    %448 = vmatprep.subr.bf16.mxu0 0
    %449 = vmatpush1.bf16.msra.mxu0 %v441
    %450 = vmatprep.subr.bf16.mxu0 0
    %451 = vmatpush1.bf16.msra.mxu0 %v442
    %452 = vmatprep.subr.bf16.mxu0 0
    %453 = vmatpush1.bf16.msra.mxu0 0
    %454 = vmatprep.subr.bf16.mxu0 0
    %455 = vmatpush1.bf16.msra.mxu0 0
    %456 = vmatprep.subr.bf16.mxu0 0
    %457 = vmatpush1.bf16.msra.mxu0 0
    %458 = vmatprep.subr.bf16.mxu0 0
    %459 = vmatpush1.bf16.msra.mxu0 0
    %460 = vmatprep.subr.bf16.mxu0 0
    %461 = vmatpush1.bf16.msra.mxu0 0
    %462 = vmatprep.subr.bf16.mxu0 0
    %463 = vmatpush1.bf16.msra.mxu0 0
    %464 = vmatprep.subr.bf16.mxu0 0
    %465 = vmatpush1.bf16.msra.mxu0 0
    %466 = vmatprep.subr.bf16.mxu0 0
    %467 = vmatpush1.bf16.msra.mxu0 0
    %468 = vmatprep.subr.bf16.mxu0 0
    %469 = vmatpush1.bf16.msra.mxu0 0
    %470 = vmatprep.subr.bf16.mxu0 0
    %471 = vmatpush1.bf16.msra.mxu0 0
    %472 = vmatprep.subr.bf16.mxu0 0
    %473 = vmatpush1.bf16.msra.mxu0 0
    %474 = vmatprep.subr.bf16.mxu0 0
    %475 = vmatpush1.bf16.msra.mxu0 0
    %476 = vmatprep.subr.bf16.mxu0 0
    %477 = vmatpush1.bf16.msra.mxu0 0
    %478 = vmatprep.subr.bf16.mxu0 0
    %479 = vmatpush1.bf16.msra.mxu0 0
    %480 = vmatprep.mubr.bf16.mxu0 0
    %481 = vmatmul.mubr.bf16.gmra.mrb[0].mxu0 %v446
    %v482 = vpop.f32.mrb[0].mxu0
    %v483 = vadd.f32 0.0, %v482
    %v484 = vpop.f32.mrb[0].mxu0
    %v485 = vpop.f32.mrb[0].mxu0
    %v486 = vadd.f32 0.0, %v485
    %v487 = vpop.f32.mrb[0].mxu0
    %488 = vdwg.mxu0
    %v489 = vadd.f32 %v255, %v483
    %v490 = vadd.f32 %v258, %v486
    %v491 = vxor.u32 %v489, 2147483648
    %v492 = vxor.u32 %v490, 2147483648
    %v493 = vmul.f32 %v491, 1.442695
    %v494 = vpow.pop %v493
    %v495 = vmul.f32 %v492, 1.442695
    %v496 = vpow.pop %v495
    %v497 = vadd.f32 %v494, 1.0
    %v498 = vadd.f32 %v496, 1.0
    %v499 = vrcp.pop %v497
    %v500 = vmul.f32 1.0, %v499
    %v501 = vrcp.pop %v498
    %v502 = vmul.f32 1.0, %v501
    %v503 = vtanh.pop %v489
    %v504 = vtanh.pop %v490
    %v505 = vmul.f32 %v500, 0.0
    %v506 = vmul.f32 %v502, 0.0
    %509 = vrot.lane.b32.xlu0 %v503, 32
    %v510 = vpop.permute.xlu0 %509
    %511 = vrot.lane.b32.xlu0 %v504, 32
    %v512 = vpop.permute.xlu0 %511
    %v515 = vmul.f32 %v500, %v510
    %v516 = vmul.f32 %v502, %v512
    %519 = vrot.lane.b32.xlu0 %v515, 32
    %v520 = vpop.permute.xlu0 %519
    %521 = vrot.lane.b32.xlu0 %v516, 32
    %v522 = vpop.permute.xlu0 %521
    %v525 = vadd.f32 %v505, %v520
    %v526 = vadd.f32 %v506, %v522
    %v527 = vtanh.pop %v525
    %v528 = vtanh.pop %v526
    %531 = vrot.lane.b32.xlu0 %v527, 32
    %v532 = vpop.permute.xlu0 %531
    %533 = vrot.lane.b32.xlu0 %v528, 32
    %v534 = vpop.permute.xlu0 %533
    %v537 = vmul.f32 %v500, %v532
    %v538 = vmul.f32 %v502, %v534
    %v539 = vpack.c.bf16 %v538, %v537
    %541 = vrot.lane.b32.xlu0 %v539, 64
    %v542 = vpop.permute.xlu0 %541
    %v544 = vsel %vm216, %v542, 0
    %546 = vmatprep.subr.bf16.mxu0 0
    %547 = vmatpush1.bf16.msra.mxu0 %v441
    %548 = vmatprep.subr.bf16.mxu0 0
    %549 = vmatpush1.bf16.msra.mxu0 %v442
    %550 = vmatprep.subr.bf16.mxu0 0
    %551 = vmatpush1.bf16.msra.mxu0 0
    %552 = vmatprep.subr.bf16.mxu0 0
    %553 = vmatpush1.bf16.msra.mxu0 0
    %554 = vmatprep.subr.bf16.mxu0 0
    %555 = vmatpush1.bf16.msra.mxu0 0
    %556 = vmatprep.subr.bf16.mxu0 0
    %557 = vmatpush1.bf16.msra.mxu0 0
    %558 = vmatprep.subr.bf16.mxu0 0
    %559 = vmatpush1.bf16.msra.mxu0 0
    %560 = vmatprep.subr.bf16.mxu0 0
    %561 = vmatpush1.bf16.msra.mxu0 0
    %562 = vmatprep.subr.bf16.mxu0 0
    %563 = vmatpush1.bf16.msra.mxu0 0
    %564 = vmatprep.subr.bf16.mxu0 0
    %565 = vmatpush1.bf16.msra.mxu0 0
    %566 = vmatprep.subr.bf16.mxu0 0
    %567 = vmatpush1.bf16.msra.mxu0 0
    %568 = vmatprep.subr.bf16.mxu0 0
    %569 = vmatpush1.bf16.msra.mxu0 0
    %570 = vmatprep.subr.bf16.mxu0 0
    %571 = vmatpush1.bf16.msra.mxu0 0
    %572 = vmatprep.subr.bf16.mxu0 0
    %573 = vmatpush1.bf16.msra.mxu0 0
    %574 = vmatprep.subr.bf16.mxu0 0
    %575 = vmatpush1.bf16.msra.mxu0 0
    %576 = vmatprep.subr.bf16.mxu0 0
    %577 = vmatpush1.bf16.msra.mxu0 0
    %578 = vmatprep.mubr.bf16.mxu0 0
    %579 = vmatmul.mubr.bf16.gmra.mrb[0].mxu0 %v544
    %v580 = vpop.f32.mrb[0].mxu0
    %v581 = vadd.f32 0.0, %v580
    %v582 = vpop.f32.mrb[0].mxu0
    %v583 = vpop.f32.mrb[0].mxu0
    %v584 = vadd.f32 0.0, %v583
    %v585 = vpop.f32.mrb[0].mxu0
    %586 = vdwg.mxu0
    %v587 = vadd.f32 %v366, %v581
    %v588 = vadd.f32 %v369, %v584
    %v593 = vunpack.c.l.b16 %v428
    %v594 = vunpack.c.l.b16 %v429
    %v595 = vunpack.c.l.b16 %v430
    %v596 = vunpack.c.l.b16 %v431
    %v597 = vpack.c.b16 %v594, %v593
    %v598 = vpack.c.b16 %v596, %v595
    %601 = vmatprep.subr.bf16.mxu0 0
    %602 = vmatpush1.bf16.msra.mxu0 %v597
    %603 = vmatprep.subr.bf16.mxu0 0
    %604 = vmatpush1.bf16.msra.mxu0 %v598
    %605 = vmatprep.subr.bf16.mxu0 0
    %606 = vmatpush1.bf16.msra.mxu0 0
    %607 = vmatprep.subr.bf16.mxu0 0
    %608 = vmatpush1.bf16.msra.mxu0 0
    %609 = vmatprep.subr.bf16.mxu0 0
    %610 = vmatpush1.bf16.msra.mxu0 0
    %611 = vmatprep.subr.bf16.mxu0 0
    %612 = vmatpush1.bf16.msra.mxu0 0
    %613 = vmatprep.subr.bf16.mxu0 0
    %614 = vmatpush1.bf16.msra.mxu0 0
    %615 = vmatprep.subr.bf16.mxu0 0
    %616 = vmatpush1.bf16.msra.mxu0 0
    %617 = vmatprep.subr.bf16.mxu0 0
    %618 = vmatpush1.bf16.msra.mxu0 0
    %619 = vmatprep.subr.bf16.mxu0 0
    %620 = vmatpush1.bf16.msra.mxu0 0
    %621 = vmatprep.subr.bf16.mxu0 0
    %622 = vmatpush1.bf16.msra.mxu0 0
    %623 = vmatprep.subr.bf16.mxu0 0
    %624 = vmatpush1.bf16.msra.mxu0 0
    %625 = vmatprep.subr.bf16.mxu0 0
    %626 = vmatpush1.bf16.msra.mxu0 0
    %627 = vmatprep.subr.bf16.mxu0 0
    %628 = vmatpush1.bf16.msra.mxu0 0
    %629 = vmatprep.subr.bf16.mxu0 0
    %630 = vmatpush1.bf16.msra.mxu0 0
    %631 = vmatprep.subr.bf16.mxu0 0
    %632 = vmatpush1.bf16.msra.mxu0 0
    %633 = vmatprep.mubr.bf16.mxu0 0
    %634 = vmatmul.mubr.bf16.gmra.mrb[0].mxu0 %v446
    %v635 = vpop.f32.mrb[0].mxu0
    %v636 = vadd.f32 0.0, %v635
    %v637 = vpop.f32.mrb[0].mxu0
    %v638 = vpop.f32.mrb[0].mxu0
    %v639 = vadd.f32 0.0, %v638
    %v640 = vpop.f32.mrb[0].mxu0
    %641 = vdwg.mxu0
    %v646 = vunpack.c.l.b16 %v424
    %v647 = vunpack.c.l.b16 %v425
    %v648 = vunpack.c.l.b16 %v426
    %v649 = vunpack.c.l.b16 %v427
    %v650 = vpack.c.b16 %v647, %v646
    %v651 = vpack.c.b16 %v649, %v648
    %654 = vmatprep.subr.bf16.mxu0 0
    %655 = vmatpush1.bf16.msra.mxu0 %v650
    %656 = vmatprep.subr.bf16.mxu0 0
    %657 = vmatpush1.bf16.msra.mxu0 %v651
    %658 = vmatprep.subr.bf16.mxu0 0
    %659 = vmatpush1.bf16.msra.mxu0 0
    %660 = vmatprep.subr.bf16.mxu0 0
    %661 = vmatpush1.bf16.msra.mxu0 0
    %662 = vmatprep.subr.bf16.mxu0 0
    %663 = vmatpush1.bf16.msra.mxu0 0
    %664 = vmatprep.subr.bf16.mxu0 0
    %665 = vmatpush1.bf16.msra.mxu0 0
    %666 = vmatprep.subr.bf16.mxu0 0
    %667 = vmatpush1.bf16.msra.mxu0 0
    %668 = vmatprep.subr.bf16.mxu0 0
    %669 = vmatpush1.bf16.msra.mxu0 0
    %670 = vmatprep.subr.bf16.mxu0 0
    %671 = vmatpush1.bf16.msra.mxu0 0
    %672 = vmatprep.subr.bf16.mxu0 0
    %673 = vmatpush1.bf16.msra.mxu0 0
    %674 = vmatprep.subr.bf16.mxu0 0
    %675 = vmatpush1.bf16.msra.mxu0 0
    %676 = vmatprep.subr.bf16.mxu0 0
    %677 = vmatpush1.bf16.msra.mxu0 0
    %678 = vmatprep.subr.bf16.mxu0 0
    %679 = vmatpush1.bf16.msra.mxu0 0
    %680 = vmatprep.subr.bf16.mxu0 0
    %681 = vmatpush1.bf16.msra.mxu0 0
    %682 = vmatprep.subr.bf16.mxu0 0
    %683 = vmatpush1.bf16.msra.mxu0 0
    %684 = vmatprep.subr.bf16.mxu0 0
    %685 = vmatpush1.bf16.msra.mxu0 0
    %686 = vmatprep.mubr.bf16.mxu0 0
    %687 = vmatmul.mubr.bf16.gmra.mrb[0].mxu0 %v544
    %v688 = vpop.f32.mrb[0].mxu0
    %v689 = vadd.f32 %v636, %v688
    %v690 = vpop.f32.mrb[0].mxu0
    %v691 = vpop.f32.mrb[0].mxu0
    %v692 = vadd.f32 %v639, %v691
    %v693 = vpop.f32.mrb[0].mxu0
    %694 = vdwg.mxu0
    %v696 = vlaneseq
    %v697 = vshrl.u32 %v696, 7
    %v698 = vsub.s32 0, %v697
    %v699 = vrot.slane %v432, %v698
    %v701 = vadd.f32 %v689, %v699
    %v702 = vadd.f32 %v692, %v699
    %v703 = vxor.u32 %v587, 2147483648
    %v704 = vxor.u32 %v588, 2147483648
    %v705 = vmul.f32 %v703, 1.442695
    %v706 = vpow.pop %v705
    %v707 = vmul.f32 %v704, 1.442695
    %v708 = vpow.pop %v707
    %v709 = vadd.f32 %v706, 1.0
    %v710 = vadd.f32 %v708, 1.0
    %v711 = vrcp.pop %v709
    %v712 = vmul.f32 1.0, %v711
    %v713 = vrcp.pop %v710
    %v714 = vmul.f32 1.0, %v713
    %v715 = vtanh.pop %v587
    %v716 = vtanh.pop %v588
    %v717 = vmul.f32 %v712, %v525
    %v718 = vmul.f32 %v714, %v526
    %721 = vrot.lane.b32.xlu0 %v715, 32
    %v722 = vpop.permute.xlu0 %721
    %723 = vrot.lane.b32.xlu0 %v716, 32
    %v724 = vpop.permute.xlu0 %723
    %v727 = vmul.f32 %v712, %v722
    %v728 = vmul.f32 %v714, %v724
    %731 = vrot.lane.b32.xlu0 %v727, 32
    %v732 = vpop.permute.xlu0 %731
    %733 = vrot.lane.b32.xlu0 %v728, 32
    %v734 = vpop.permute.xlu0 %733
    %v737 = vadd.f32 %v717, %v732
    %v738 = vadd.f32 %v718, %v734
    %v739 = vtanh.pop %v737
    %v740 = vtanh.pop %v738
    %743 = vrot.lane.b32.xlu0 %v739, 32
    %v744 = vpop.permute.xlu0 %743
    %745 = vrot.lane.b32.xlu0 %v740, 32
    %v746 = vpop.permute.xlu0 %745
    %v749 = vmul.f32 %v712, %v744
    %v750 = vmul.f32 %v714, %v746
    %v751 = vxor.u32 %v701, 2147483648
    %v752 = vxor.u32 %v702, 2147483648
    %v753 = vmul.f32 %v751, 1.442695
    %v754 = vpow.pop %v753
    %v755 = vmul.f32 %v752, 1.442695
    %v756 = vpow.pop %v755
    %v757 = vadd.f32 %v754, 1.0
    %v758 = vadd.f32 %v756, 1.0
    %v759 = vrcp.pop %v757
    %v760 = vmul.f32 1.0, %v759
    %v761 = vrcp.pop %v758
    %v762 = vmul.f32 1.0, %v761
    %v763 = vtanh.pop %v701
    %v764 = vtanh.pop %v702
    %v765 = vmul.f32 %v760, 0.0
    %v766 = vmul.f32 %v762, 0.0
    %769 = vrot.lane.b32.xlu0 %v763, 32
    %v770 = vpop.permute.xlu0 %769
    %771 = vrot.lane.b32.xlu0 %v764, 32
    %v772 = vpop.permute.xlu0 %771
    %v775 = vmul.f32 %v760, %v770
    %v776 = vmul.f32 %v762, %v772
    %779 = vrot.lane.b32.xlu0 %v775, 32
    %v780 = vpop.permute.xlu0 %779
    %781 = vrot.lane.b32.xlu0 %v776, 32
    %v782 = vpop.permute.xlu0 %781
    %v785 = vadd.f32 %v765, %v780
    %v786 = vadd.f32 %v766, %v782
    %v787 = vtanh.pop %v785
    %v788 = vtanh.pop %v786
    %791 = vrot.lane.b32.xlu0 %v787, 32
    %v792 = vpop.permute.xlu0 %791
    %793 = vrot.lane.b32.xlu0 %v788, 32
    %v794 = vpop.permute.xlu0 %793
    %v797 = vmul.f32 %v760, %v792
    %v798 = vmul.f32 %v762, %v794
    %v801 = vcombine.high %v797, %v797
    %v803 = vunpack.c.l.s4 1966171168
    %v804 = vunpack.c.0.s8 %v803
    %v805 = vlaneseq
    %v806 = vshrl.u32 %v805, 7
    %v807 = vsub.s32 %v804, %v806
    %v808 = vrot.slane %v797, %v807
    %v810 = vunpack.c.l.s4 1966171168
    %v811 = vunpack.c.0.s8 %v810
    %v812 = vlaneseq
    %v813 = vshrl.u32 %v812, 7
    %v814 = vsub.s32 %v811, %v813
    %v815 = vrot.slane %v801, %v814
    %v816 = vcombine.high %v808, %v808
    %v817 = vcombine.high %v815, %v815
    %v819 = vunpack.c.l.s4 1966171168
    %v820 = vunpack.c.0.s8 %v819
    %v821 = vlaneseq
    %v822 = vshrl.u32 %v821, 7
    %v823 = vsub.s32 %v820, %v822
    %v824 = vrot.slane %v808, %v823
    %v826 = vunpack.c.l.s4 1966171168
    %v827 = vunpack.c.0.s8 %v826
    %v828 = vlaneseq
    %v829 = vshrl.u32 %v828, 7
    %v830 = vsub.s32 %v827, %v829
    %v831 = vrot.slane %v815, %v830
    %v833 = vunpack.c.l.s4 1966171168
    %v834 = vunpack.c.0.s8 %v833
    %v835 = vlaneseq
    %v836 = vshrl.u32 %v835, 7
    %v837 = vsub.s32 %v834, %v836
    %v838 = vrot.slane %v816, %v837
    %v840 = vunpack.c.l.s4 1966171168
    %v841 = vunpack.c.0.s8 %v840
    %v842 = vlaneseq
    %v843 = vshrl.u32 %v842, 7
    %v844 = vsub.s32 %v841, %v843
    %v845 = vrot.slane %v817, %v844
    %v846 = vcombine.high %v824, %v824
    %v847 = vcombine.high %v831, %v831
    %v848 = vcombine.high %v838, %v838
    %v849 = vcombine.high %v845, %v845
    %v850 = vcombine.high %v798, %v798
    %v852 = vunpack.c.l.s4 1966171168
    %v853 = vunpack.c.0.s8 %v852
    %v854 = vlaneseq
    %v855 = vshrl.u32 %v854, 7
    %v856 = vsub.s32 %v853, %v855
    %v857 = vrot.slane %v798, %v856
    %v859 = vunpack.c.l.s4 1966171168
    %v860 = vunpack.c.0.s8 %v859
    %v861 = vlaneseq
    %v862 = vshrl.u32 %v861, 7
    %v863 = vsub.s32 %v860, %v862
    %v864 = vrot.slane %v850, %v863
    %v865 = vcombine.high %v857, %v857
    %v866 = vcombine.high %v864, %v864
    %v868 = vunpack.c.l.s4 1966171168
    %v869 = vunpack.c.0.s8 %v868
    %v870 = vlaneseq
    %v871 = vshrl.u32 %v870, 7
    %v872 = vsub.s32 %v869, %v871
    %v873 = vrot.slane %v857, %v872
    %v875 = vunpack.c.l.s4 1966171168
    %v876 = vunpack.c.0.s8 %v875
    %v877 = vlaneseq
    %v878 = vshrl.u32 %v877, 7
    %v879 = vsub.s32 %v876, %v878
    %v880 = vrot.slane %v864, %v879
    %v882 = vunpack.c.l.s4 1966171168
    %v883 = vunpack.c.0.s8 %v882
    %v884 = vlaneseq
    %v885 = vshrl.u32 %v884, 7
    %v886 = vsub.s32 %v883, %v885
    %v887 = vrot.slane %v865, %v886
    %v889 = vunpack.c.l.s4 1966171168
    %v890 = vunpack.c.0.s8 %v889
    %v891 = vlaneseq
    %v892 = vshrl.u32 %v891, 7
    %v893 = vsub.s32 %v890, %v892
    %v894 = vrot.slane %v866, %v893
    %v895 = vcombine.high %v873, %v873
    %v896 = vcombine.high %v880, %v880
    %v897 = vcombine.high %v887, %v887
    %v898 = vcombine.high %v894, %v894
    %v899 = vlaneseq
    %v900 = vshrl.u32 %v899, 7
    %v901 = vsub.s32 0, %v900
    %v902 = vrot.slane %v824, %v901
    %v903 = vlaneseq
    %v904 = vshrl.u32 %v903, 7
    %v905 = vsub.s32 0, %v904
    %v906 = vrot.slane %v838, %v905
    %v907 = vlaneseq
    %v908 = vshrl.u32 %v907, 7
    %v909 = vsub.s32 0, %v908
    %v910 = vrot.slane %v846, %v909
    %v911 = vlaneseq
    %v912 = vshrl.u32 %v911, 7
    %v913 = vsub.s32 0, %v912
    %v914 = vrot.slane %v848, %v913
    %v915 = vlaneseq
    %v916 = vshrl.u32 %v915, 7
    %v917 = vsub.s32 0, %v916
    %v918 = vrot.slane %v831, %v917
    %v919 = vlaneseq
    %v920 = vshrl.u32 %v919, 7
    %v921 = vsub.s32 0, %v920
    %v922 = vrot.slane %v845, %v921
    %v923 = vlaneseq
    %v924 = vshrl.u32 %v923, 7
    %v925 = vsub.s32 0, %v924
    %v926 = vrot.slane %v847, %v925
    %v927 = vlaneseq
    %v928 = vshrl.u32 %v927, 7
    %v929 = vsub.s32 0, %v928
    %v930 = vrot.slane %v849, %v929
    %v931 = vlaneseq
    %v932 = vshrl.u32 %v931, 7
    %v933 = vsub.s32 0, %v932
    %v934 = vrot.slane %v873, %v933
    %v935 = vlaneseq
    %v936 = vshrl.u32 %v935, 7
    %v937 = vsub.s32 0, %v936
    %v938 = vrot.slane %v887, %v937
    %v939 = vlaneseq
    %v940 = vshrl.u32 %v939, 7
    %v941 = vsub.s32 0, %v940
    %v942 = vrot.slane %v895, %v941
    %v943 = vlaneseq
    %v944 = vshrl.u32 %v943, 7
    %v945 = vsub.s32 0, %v944
    %v946 = vrot.slane %v897, %v945
    %v947 = vlaneseq
    %v948 = vshrl.u32 %v947, 7
    %v949 = vsub.s32 0, %v948
    %v950 = vrot.slane %v880, %v949
    %v951 = vlaneseq
    %v952 = vshrl.u32 %v951, 7
    %v953 = vsub.s32 0, %v952
    %v954 = vrot.slane %v894, %v953
    %v955 = vlaneseq
    %v956 = vshrl.u32 %v955, 7
    %v957 = vsub.s32 0, %v956
    %v958 = vrot.slane %v896, %v957
    %v959 = vlaneseq
    %v960 = vshrl.u32 %v959, 7
    %v961 = vsub.s32 0, %v960
    %v962 = vrot.slane %v898, %v961
    %963 = vrot.lane.b32.xlu0 %v902, 64
    %v964 = vpop.permute.xlu0 %963
    %965 = vrot.lane.b32.xlu0 %v906, 64
    %v966 = vpop.permute.xlu0 %965
    %967 = vrot.lane.b32.xlu0 %v910, 64
    %v968 = vpop.permute.xlu0 %967
    %969 = vrot.lane.b32.xlu0 %v914, 64
    %v970 = vpop.permute.xlu0 %969
    %971 = vrot.lane.b32.xlu0 %v918, 64
    %v972 = vpop.permute.xlu0 %971
    %973 = vrot.lane.b32.xlu0 %v922, 64
    %v974 = vpop.permute.xlu0 %973
    %975 = vrot.lane.b32.xlu0 %v926, 64
    %v976 = vpop.permute.xlu0 %975
    %977 = vrot.lane.b32.xlu0 %v930, 64
    %v978 = vpop.permute.xlu0 %977
    %979 = vrot.lane.b32.xlu0 %v934, 64
    %v980 = vpop.permute.xlu0 %979
    %981 = vrot.lane.b32.xlu0 %v938, 64
    %v982 = vpop.permute.xlu0 %981
    %983 = vrot.lane.b32.xlu0 %v942, 64
    %v984 = vpop.permute.xlu0 %983
    %985 = vrot.lane.b32.xlu0 %v946, 64
    %v986 = vpop.permute.xlu0 %985
    %987 = vrot.lane.b32.xlu0 %v950, 64
    %v988 = vpop.permute.xlu0 %987
    %989 = vrot.lane.b32.xlu0 %v954, 64
    %v990 = vpop.permute.xlu0 %989
    %991 = vrot.lane.b32.xlu0 %v958, 64
    %v992 = vpop.permute.xlu0 %991
    %993 = vrot.lane.b32.xlu0 %v962, 64
    %v994 = vpop.permute.xlu0 %993
    %vm1011 = vcmask 253952
    %1012 = vst.msk [vmem:[#allocation2] sm:$0x1] %vm1011, %v964
    %1013 = vst.msk [vmem:[#allocation2 + $0x8] sm:$0x1] %vm1011, %v966
    %1014 = vst.msk [vmem:[#allocation2 + $0x10] sm:$0x1] %vm1011, %v968
    %1015 = vst.msk [vmem:[#allocation2 + $0x18] sm:$0x1] %vm1011, %v970
    %1016 = vst.msk [vmem:[#allocation2 + $0x20] sm:$0x1] %vm1011, %v972
    %1017 = vst.msk [vmem:[#allocation2 + $0x28] sm:$0x1] %vm1011, %v974
    %1018 = vst.msk [vmem:[#allocation2 + $0x30] sm:$0x1] %vm1011, %v976
    %1019 = vst.msk [vmem:[#allocation2 + $0x38] sm:$0x1] %vm1011, %v978
    %1020 = vst.msk [vmem:[#allocation2 + $0x40] sm:$0x1] %vm1011, %v980
    %1021 = vst.msk [vmem:[#allocation2 + $0x48] sm:$0x1] %vm1011, %v982
    %1022 = vst.msk [vmem:[#allocation2 + $0x50] sm:$0x1] %vm1011, %v984
    %1023 = vst.msk [vmem:[#allocation2 + $0x58] sm:$0x1] %vm1011, %v986
    %1024 = vst.msk [vmem:[#allocation2 + $0x60] sm:$0x1] %vm1011, %v988
    %1025 = vst.msk [vmem:[#allocation2 + $0x68] sm:$0x1] %vm1011, %v990
    %1026 = vst.msk [vmem:[#allocation2 + $0x70] sm:$0x1] %vm1011, %v992
    %1027 = vst.msk [vmem:[#allocation2 + $0x78] sm:$0x1] %vm1011, %v994
    %v1028 = vpack.c.bf16 %v798, %v797
    %v1029 = vpack.c.bf16 %v750, %v749
    %1031 = vrot.lane.b32.xlu0 %v1029, 64
    %v1032 = vpop.permute.xlu0 %1031
    %v1034 = vsel %vm216, %v1032, 0
    %1036 = vmatprep.subr.bf16.mxu0 0
    %1037 = vmatpush1.bf16.msra.mxu0 %v441
    %1038 = vmatprep.subr.bf16.mxu0 0
    %1039 = vmatpush1.bf16.msra.mxu0 %v442
    %1040 = vmatprep.subr.bf16.mxu0 0
    %1041 = vmatpush1.bf16.msra.mxu0 0
    %1042 = vmatprep.subr.bf16.mxu0 0
    %1043 = vmatpush1.bf16.msra.mxu0 0
    %1044 = vmatprep.subr.bf16.mxu0 0
    %1045 = vmatpush1.bf16.msra.mxu0 0
    %1046 = vmatprep.subr.bf16.mxu0 0
    %1047 = vmatpush1.bf16.msra.mxu0 0
    %1048 = vmatprep.subr.bf16.mxu0 0
    %1049 = vmatpush1.bf16.msra.mxu0 0
    %1050 = vmatprep.subr.bf16.mxu0 0
    %1051 = vmatpush1.bf16.msra.mxu0 0
    %1052 = vmatprep.subr.bf16.mxu0 0
    %1053 = vmatpush1.bf16.msra.mxu0 0
    %1054 = vmatprep.subr.bf16.mxu0 0
    %1055 = vmatpush1.bf16.msra.mxu0 0
    %1056 = vmatprep.subr.bf16.mxu0 0
    %1057 = vmatpush1.bf16.msra.mxu0 0
    %1058 = vmatprep.subr.bf16.mxu0 0
    %1059 = vmatpush1.bf16.msra.mxu0 0
    %1060 = vmatprep.subr.bf16.mxu0 0
    %1061 = vmatpush1.bf16.msra.mxu0 0
    %1062 = vmatprep.subr.bf16.mxu0 0
    %1063 = vmatpush1.bf16.msra.mxu0 0
    %1064 = vmatprep.subr.bf16.mxu0 0
    %1065 = vmatpush1.bf16.msra.mxu0 0
    %1066 = vmatprep.subr.bf16.mxu0 0
    %1067 = vmatpush1.bf16.msra.mxu0 0
    %1068 = vmatprep.mubr.bf16.mxu0 0
    %1069 = vmatmul.mubr.bf16.gmra.mrb[0].mxu0 %v1034
    %v1070 = vpop.f32.mrb[0].mxu0
    %v1071 = vadd.f32 0.0, %v1070
    %v1072 = vpop.f32.mrb[0].mxu0
    %v1073 = vpop.f32.mrb[0].mxu0
    %v1074 = vadd.f32 0.0, %v1073
    %v1075 = vpop.f32.mrb[0].mxu0
    %1076 = vdwg.mxu0
    %v1077 = vadd.f32 %v374, %v1071
    %v1078 = vadd.f32 %v377, %v1074
    %1080 = vrot.lane.b32.xlu0 %v1028, 64
    %v1081 = vpop.permute.xlu0 %1080
    %v1083 = vsel %vm216, %v1081, 0
    %1085 = vmatprep.subr.bf16.mxu0 0
    %1086 = vmatpush1.bf16.msra.mxu0 %v597
    %1087 = vmatprep.subr.bf16.mxu0 0
    %1088 = vmatpush1.bf16.msra.mxu0 %v598
    %1089 = vmatprep.subr.bf16.mxu0 0
    %1090 = vmatpush1.bf16.msra.mxu0 0
    %1091 = vmatprep.subr.bf16.mxu0 0
    %1092 = vmatpush1.bf16.msra.mxu0 0
    %1093 = vmatprep.subr.bf16.mxu0 0
    %1094 = vmatpush1.bf16.msra.mxu0 0
    %1095 = vmatprep.subr.bf16.mxu0 0
    %1096 = vmatpush1.bf16.msra.mxu0 0
    %1097 = vmatprep.subr.bf16.mxu0 0
    %1098 = vmatpush1.bf16.msra.mxu0 0
    %1099 = vmatprep.subr.bf16.mxu0 0
    %1100 = vmatpush1.bf16.msra.mxu0 0
    %1101 = vmatprep.subr.bf16.mxu0 0
    %1102 = vmatpush1.bf16.msra.mxu0 0
    %1103 = vmatprep.subr.bf16.mxu0 0
    %1104 = vmatpush1.bf16.msra.mxu0 0
    %1105 = vmatprep.subr.bf16.mxu0 0
    %1106 = vmatpush1.bf16.msra.mxu0 0
    %1107 = vmatprep.subr.bf16.mxu0 0
    %1108 = vmatpush1.bf16.msra.mxu0 0
    %1109 = vmatprep.subr.bf16.mxu0 0
    %1110 = vmatpush1.bf16.msra.mxu0 0
    %1111 = vmatprep.subr.bf16.mxu0 0
    %1112 = vmatpush1.bf16.msra.mxu0 0
    %1113 = vmatprep.subr.bf16.mxu0 0
    %1114 = vmatpush1.bf16.msra.mxu0 0
    %1115 = vmatprep.subr.bf16.mxu0 0
    %1116 = vmatpush1.bf16.msra.mxu0 0
    %1117 = vmatprep.mubr.bf16.mxu0 0
    %1118 = vmatmul.mubr.bf16.gmra.mrb[0].mxu0 %v1083
    %v1119 = vpop.f32.mrb[0].mxu0
    %v1120 = vadd.f32 0.0, %v1119
    %v1121 = vpop.f32.mrb[0].mxu0
    %v1122 = vpop.f32.mrb[0].mxu0
    %v1123 = vadd.f32 0.0, %v1122
    %v1124 = vpop.f32.mrb[0].mxu0
    %1125 = vdwg.mxu0
    %1126 = vmatprep.subr.bf16.mxu0 0
    %1127 = vmatpush1.bf16.msra.mxu0 %v650
    %1128 = vmatprep.subr.bf16.mxu0 0
    %1129 = vmatpush1.bf16.msra.mxu0 %v651
    %1130 = vmatprep.subr.bf16.mxu0 0
    %1131 = vmatpush1.bf16.msra.mxu0 0
    %1132 = vmatprep.subr.bf16.mxu0 0
    %1133 = vmatpush1.bf16.msra.mxu0 0
    %1134 = vmatprep.subr.bf16.mxu0 0
    %1135 = vmatpush1.bf16.msra.mxu0 0
    %1136 = vmatprep.subr.bf16.mxu0 0
    %1137 = vmatpush1.bf16.msra.mxu0 0
    %1138 = vmatprep.subr.bf16.mxu0 0
    %1139 = vmatpush1.bf16.msra.mxu0 0
    %1140 = vmatprep.subr.bf16.mxu0 0
    %1141 = vmatpush1.bf16.msra.mxu0 0
    %1142 = vmatprep.subr.bf16.mxu0 0
    %1143 = vmatpush1.bf16.msra.mxu0 0
    %1144 = vmatprep.subr.bf16.mxu0 0
    %1145 = vmatpush1.bf16.msra.mxu0 0
    %1146 = vmatprep.subr.bf16.mxu0 0
    %1147 = vmatpush1.bf16.msra.mxu0 0
    %1148 = vmatprep.subr.bf16.mxu0 0
    %1149 = vmatpush1.bf16.msra.mxu0 0
    %1150 = vmatprep.subr.bf16.mxu0 0
    %1151 = vmatpush1.bf16.msra.mxu0 0
    %1152 = vmatprep.subr.bf16.mxu0 0
    %1153 = vmatpush1.bf16.msra.mxu0 0
    %1154 = vmatprep.subr.bf16.mxu0 0
    %1155 = vmatpush1.bf16.msra.mxu0 0
    %1156 = vmatprep.subr.bf16.mxu0 0
    %1157 = vmatpush1.bf16.msra.mxu0 0
    %1158 = vmatprep.mubr.bf16.mxu0 0
    %1159 = vmatmul.mubr.bf16.gmra.mrb[0].mxu0 %v1034
    %v1160 = vpop.f32.mrb[0].mxu0
    %v1161 = vadd.f32 %v1120, %v1160
    %v1162 = vpop.f32.mrb[0].mxu0
    %v1163 = vpop.f32.mrb[0].mxu0
    %v1164 = vadd.f32 %v1123, %v1163
    %v1165 = vpop.f32.mrb[0].mxu0
    %1166 = vdwg.mxu0
    %v1167 = vadd.f32 %v1161, %v699
    %v1168 = vadd.f32 %v1164, %v699
    %v1169 = vxor.u32 %v1077, 2147483648
    %v1170 = vxor.u32 %v1078, 2147483648
    %v1171 = vmul.f32 %v1169, 1.442695
    %v1172 = vpow.pop %v1171
    %v1173 = vmul.f32 %v1170, 1.442695
    %v1174 = vpow.pop %v1173
    %v1175 = vadd.f32 %v1172, 1.0
    %v1176 = vadd.f32 %v1174, 1.0
    %v1177 = vrcp.pop %v1175
    %v1178 = vmul.f32 1.0, %v1177
    %v1179 = vrcp.pop %v1176
    %v1180 = vmul.f32 1.0, %v1179
    %v1181 = vtanh.pop %v1077
    %v1182 = vtanh.pop %v1078
    %v1183 = vmul.f32 %v1178, %v737
    %v1184 = vmul.f32 %v1180, %v738
    %1187 = vrot.lane.b32.xlu0 %v1181, 32
    %v1188 = vpop.permute.xlu0 %1187
    %1189 = vrot.lane.b32.xlu0 %v1182, 32
    %v1190 = vpop.permute.xlu0 %1189
    %v1193 = vmul.f32 %v1178, %v1188
    %v1194 = vmul.f32 %v1180, %v1190
    %1197 = vrot.lane.b32.xlu0 %v1193, 32
    %v1198 = vpop.permute.xlu0 %1197
    %1199 = vrot.lane.b32.xlu0 %v1194, 32
    %v1200 = vpop.permute.xlu0 %1199
    %v1203 = vadd.f32 %v1183, %v1198
    %v1204 = vadd.f32 %v1184, %v1200
    %v1205 = vtanh.pop %v1203
    %v1206 = vtanh.pop %v1204
    %1209 = vrot.lane.b32.xlu0 %v1205, 32
    %v1210 = vpop.permute.xlu0 %1209
    %1211 = vrot.lane.b32.xlu0 %v1206, 32
    %v1212 = vpop.permute.xlu0 %1211
    %v1215 = vmul.f32 %v1178, %v1210
    %v1216 = vmul.f32 %v1180, %v1212
    %v1217 = vxor.u32 %v1167, 2147483648
    %v1218 = vxor.u32 %v1168, 2147483648
    %v1219 = vmul.f32 %v1217, 1.442695
    %v1220 = vpow.pop %v1219
    %v1221 = vmul.f32 %v1218, 1.442695
    %v1222 = vpow.pop %v1221
    %v1223 = vadd.f32 %v1220, 1.0
    %v1224 = vadd.f32 %v1222, 1.0
    %v1225 = vrcp.pop %v1223
    %v1226 = vmul.f32 1.0, %v1225
    %v1227 = vrcp.pop %v1224
    %v1228 = vmul.f32 1.0, %v1227
    %v1229 = vtanh.pop %v1167
    %v1230 = vtanh.pop %v1168
    %v1231 = vmul.f32 %v1226, %v785
    %v1232 = vmul.f32 %v1228, %v786
    %1235 = vrot.lane.b32.xlu0 %v1229, 32
    %v1236 = vpop.permute.xlu0 %1235
    %1237 = vrot.lane.b32.xlu0 %v1230, 32
    %v1238 = vpop.permute.xlu0 %1237
    %v1241 = vmul.f32 %v1226, %v1236
    %v1242 = vmul.f32 %v1228, %v1238
    %1245 = vrot.lane.b32.xlu0 %v1241, 32
    %v1246 = vpop.permute.xlu0 %1245
    %1247 = vrot.lane.b32.xlu0 %v1242, 32
    %v1248 = vpop.permute.xlu0 %1247
    %v1251 = vadd.f32 %v1231, %v1246
    %v1252 = vadd.f32 %v1232, %v1248
    %v1253 = vtanh.pop %v1251
    %v1254 = vtanh.pop %v1252
    %1257 = vrot.lane.b32.xlu0 %v1253, 32
    %v1258 = vpop.permute.xlu0 %1257
    %1259 = vrot.lane.b32.xlu0 %v1254, 32
    %v1260 = vpop.permute.xlu0 %1259
    %v1263 = vmul.f32 %v1226, %v1258
    %v1264 = vmul.f32 %v1228, %v1260
    %v1267 = vcombine.high %v1263, %v1263
    %v1269 = vunpack.c.l.s4 1966171168
    %v1270 = vunpack.c.0.s8 %v1269
    %v1271 = vlaneseq
    %v1272 = vshrl.u32 %v1271, 7
    %v1273 = vsub.s32 %v1270, %v1272
    %v1274 = vrot.slane %v1263, %v1273
    %v1276 = vunpack.c.l.s4 1966171168
    %v1277 = vunpack.c.0.s8 %v1276
    %v1278 = vlaneseq
    %v1279 = vshrl.u32 %v1278, 7
    %v1280 = vsub.s32 %v1277, %v1279
    %v1281 = vrot.slane %v1267, %v1280
    %v1282 = vcombine.high %v1274, %v1274
    %v1283 = vcombine.high %v1281, %v1281
    %v1285 = vunpack.c.l.s4 1966171168
    %v1286 = vunpack.c.0.s8 %v1285
    %v1287 = vlaneseq
    %v1288 = vshrl.u32 %v1287, 7
    %v1289 = vsub.s32 %v1286, %v1288
    %v1290 = vrot.slane %v1274, %v1289
    %v1292 = vunpack.c.l.s4 1966171168
    %v1293 = vunpack.c.0.s8 %v1292
    %v1294 = vlaneseq
    %v1295 = vshrl.u32 %v1294, 7
    %v1296 = vsub.s32 %v1293, %v1295
    %v1297 = vrot.slane %v1281, %v1296
    %v1299 = vunpack.c.l.s4 1966171168
    %v1300 = vunpack.c.0.s8 %v1299
    %v1301 = vlaneseq
    %v1302 = vshrl.u32 %v1301, 7
    %v1303 = vsub.s32 %v1300, %v1302
    %v1304 = vrot.slane %v1282, %v1303
    %v1306 = vunpack.c.l.s4 1966171168
    %v1307 = vunpack.c.0.s8 %v1306
    %v1308 = vlaneseq
    %v1309 = vshrl.u32 %v1308, 7
    %v1310 = vsub.s32 %v1307, %v1309
    %v1311 = vrot.slane %v1283, %v1310
    %v1312 = vcombine.high %v1290, %v1290
    %v1313 = vcombine.high %v1297, %v1297
    %v1314 = vcombine.high %v1304, %v1304
    %v1315 = vcombine.high %v1311, %v1311
    %v1316 = vcombine.high %v1264, %v1264
    %v1318 = vunpack.c.l.s4 1966171168
    %v1319 = vunpack.c.0.s8 %v1318
    %v1320 = vlaneseq
    %v1321 = vshrl.u32 %v1320, 7
    %v1322 = vsub.s32 %v1319, %v1321
    %v1323 = vrot.slane %v1264, %v1322
    %v1325 = vunpack.c.l.s4 1966171168
    %v1326 = vunpack.c.0.s8 %v1325
    %v1327 = vlaneseq
    %v1328 = vshrl.u32 %v1327, 7
    %v1329 = vsub.s32 %v1326, %v1328
    %v1330 = vrot.slane %v1316, %v1329
    %v1331 = vcombine.high %v1323, %v1323
    %v1332 = vcombine.high %v1330, %v1330
    %v1334 = vunpack.c.l.s4 1966171168
    %v1335 = vunpack.c.0.s8 %v1334
    %v1336 = vlaneseq
    %v1337 = vshrl.u32 %v1336, 7
    %v1338 = vsub.s32 %v1335, %v1337
    %v1339 = vrot.slane %v1323, %v1338
    %v1341 = vunpack.c.l.s4 1966171168
    %v1342 = vunpack.c.0.s8 %v1341
    %v1343 = vlaneseq
    %v1344 = vshrl.u32 %v1343, 7
    %v1345 = vsub.s32 %v1342, %v1344
    %v1346 = vrot.slane %v1330, %v1345
    %v1348 = vunpack.c.l.s4 1966171168
    %v1349 = vunpack.c.0.s8 %v1348
    %v1350 = vlaneseq
    %v1351 = vshrl.u32 %v1350, 7
    %v1352 = vsub.s32 %v1349, %v1351
    %v1353 = vrot.slane %v1331, %v1352
    %v1355 = vunpack.c.l.s4 1966171168
    %v1356 = vunpack.c.0.s8 %v1355
    %v1357 = vlaneseq
    %v1358 = vshrl.u32 %v1357, 7
    %v1359 = vsub.s32 %v1356, %v1358
    %v1360 = vrot.slane %v1332, %v1359
    %v1361 = vcombine.high %v1339, %v1339
    %v1362 = vcombine.high %v1346, %v1346
    %v1363 = vcombine.high %v1353, %v1353
    %v1364 = vcombine.high %v1360, %v1360
    %v1365 = vlaneseq
    %v1366 = vshrl.u32 %v1365, 7
    %v1367 = vsub.s32 0, %v1366
    %v1368 = vrot.slane %v1290, %v1367
    %v1369 = vlaneseq
    %v1370 = vshrl.u32 %v1369, 7
    %v1371 = vsub.s32 0, %v1370
    %v1372 = vrot.slane %v1304, %v1371
    %v1373 = vlaneseq
    %v1374 = vshrl.u32 %v1373, 7
    %v1375 = vsub.s32 0, %v1374
    %v1376 = vrot.slane %v1312, %v1375
    %v1377 = vlaneseq
    %v1378 = vshrl.u32 %v1377, 7
    %v1379 = vsub.s32 0, %v1378
    %v1380 = vrot.slane %v1314, %v1379
    %v1381 = vlaneseq
    %v1382 = vshrl.u32 %v1381, 7
    %v1383 = vsub.s32 0, %v1382
    %v1384 = vrot.slane %v1297, %v1383
    %v1385 = vlaneseq
    %v1386 = vshrl.u32 %v1385, 7
    %v1387 = vsub.s32 0, %v1386
    %v1388 = vrot.slane %v1311, %v1387
    %v1389 = vlaneseq
    %v1390 = vshrl.u32 %v1389, 7
    %v1391 = vsub.s32 0, %v1390
    %v1392 = vrot.slane %v1313, %v1391
    %v1393 = vlaneseq
    %v1394 = vshrl.u32 %v1393, 7
    %v1395 = vsub.s32 0, %v1394
    %v1396 = vrot.slane %v1315, %v1395
    %v1397 = vlaneseq
    %v1398 = vshrl.u32 %v1397, 7
    %v1399 = vsub.s32 0, %v1398
    %v1400 = vrot.slane %v1339, %v1399
    %v1401 = vlaneseq
    %v1402 = vshrl.u32 %v1401, 7
    %v1403 = vsub.s32 0, %v1402
    %v1404 = vrot.slane %v1353, %v1403
    %v1405 = vlaneseq
    %v1406 = vshrl.u32 %v1405, 7
    %v1407 = vsub.s32 0, %v1406
    %v1408 = vrot.slane %v1361, %v1407
    %v1409 = vlaneseq
    %v1410 = vshrl.u32 %v1409, 7
    %v1411 = vsub.s32 0, %v1410
    %v1412 = vrot.slane %v1363, %v1411
    %v1413 = vlaneseq
    %v1414 = vshrl.u32 %v1413, 7
    %v1415 = vsub.s32 0, %v1414
    %v1416 = vrot.slane %v1346, %v1415
    %v1417 = vlaneseq
    %v1418 = vshrl.u32 %v1417, 7
    %v1419 = vsub.s32 0, %v1418
    %v1420 = vrot.slane %v1360, %v1419
    %v1421 = vlaneseq
    %v1422 = vshrl.u32 %v1421, 7
    %v1423 = vsub.s32 0, %v1422
    %v1424 = vrot.slane %v1362, %v1423
    %v1425 = vlaneseq
    %v1426 = vshrl.u32 %v1425, 7
    %v1427 = vsub.s32 0, %v1426
    %v1428 = vrot.slane %v1364, %v1427
    %1429 = vrot.lane.b32.xlu0 %v1368, 64
    %v1430 = vpop.permute.xlu0 %1429
    %1431 = vrot.lane.b32.xlu0 %v1372, 64
    %v1432 = vpop.permute.xlu0 %1431
    %1433 = vrot.lane.b32.xlu0 %v1376, 64
    %v1434 = vpop.permute.xlu0 %1433
    %1435 = vrot.lane.b32.xlu0 %v1380, 64
    %v1436 = vpop.permute.xlu0 %1435
    %1437 = vrot.lane.b32.xlu0 %v1384, 64
    %v1438 = vpop.permute.xlu0 %1437
    %1439 = vrot.lane.b32.xlu0 %v1388, 64
    %v1440 = vpop.permute.xlu0 %1439
    %1441 = vrot.lane.b32.xlu0 %v1392, 64
    %v1442 = vpop.permute.xlu0 %1441
    %1443 = vrot.lane.b32.xlu0 %v1396, 64
    %v1444 = vpop.permute.xlu0 %1443
    %1445 = vrot.lane.b32.xlu0 %v1400, 64
    %v1446 = vpop.permute.xlu0 %1445
    %1447 = vrot.lane.b32.xlu0 %v1404, 64
    %v1448 = vpop.permute.xlu0 %1447
    %1449 = vrot.lane.b32.xlu0 %v1408, 64
    %v1450 = vpop.permute.xlu0 %1449
    %1451 = vrot.lane.b32.xlu0 %v1412, 64
    %v1452 = vpop.permute.xlu0 %1451
    %1453 = vrot.lane.b32.xlu0 %v1416, 64
    %v1454 = vpop.permute.xlu0 %1453
    %1455 = vrot.lane.b32.xlu0 %v1420, 64
    %v1456 = vpop.permute.xlu0 %1455
    %1457 = vrot.lane.b32.xlu0 %v1424, 64
    %v1458 = vpop.permute.xlu0 %1457
    %1459 = vrot.lane.b32.xlu0 %v1428, 64
    %v1460 = vpop.permute.xlu0 %1459
    %1477 = vst.msk [vmem:[#allocation2 + $0x1] sm:$0x1] %vm1011, %v1430
    %1478 = vst.msk [vmem:[#allocation2 + $0x9] sm:$0x1] %vm1011, %v1432
    %1479 = vst.msk [vmem:[#allocation2 + $0x11] sm:$0x1] %vm1011, %v1434
    %1480 = vst.msk [vmem:[#allocation2 + $0x19] sm:$0x1] %vm1011, %v1436
    %1481 = vst.msk [vmem:[#allocation2 + $0x21] sm:$0x1] %vm1011, %v1438
    %1482 = vst.msk [vmem:[#allocation2 + $0x29] sm:$0x1] %vm1011, %v1440
    %1483 = vst.msk [vmem:[#allocation2 + $0x31] sm:$0x1] %vm1011, %v1442
    %1484 = vst.msk [vmem:[#allocation2 + $0x39] sm:$0x1] %vm1011, %v1444
    %1485 = vst.msk [vmem:[#allocation2 + $0x41] sm:$0x1] %vm1011, %v1446
    %1486 = vst.msk [vmem:[#allocation2 + $0x49] sm:$0x1] %vm1011, %v1448
    %1487 = vst.msk [vmem:[#allocation2 + $0x51] sm:$0x1] %vm1011, %v1450
    %1488 = vst.msk [vmem:[#allocation2 + $0x59] sm:$0x1] %vm1011, %v1452
    %1489 = vst.msk [vmem:[#allocation2 + $0x61] sm:$0x1] %vm1011, %v1454
    %1490 = vst.msk [vmem:[#allocation2 + $0x69] sm:$0x1] %vm1011, %v1456
    %1491 = vst.msk [vmem:[#allocation2 + $0x71] sm:$0x1] %vm1011, %v1458
    %1492 = vst.msk [vmem:[#allocation2 + $0x79] sm:$0x1] %vm1011, %v1460
    %v1493 = vpack.c.bf16 %v1264, %v1263
    %v1494 = vpack.c.bf16 %v1216, %v1215
    %1496 = vrot.lane.b32.xlu0 %v1494, 64
    %v1497 = vpop.permute.xlu0 %1496
    %v1499 = vsel %vm216, %v1497, 0
    %1501 = vmatprep.subr.bf16.mxu0 0
    %1502 = vmatpush1.bf16.msra.mxu0 %v441
    %1503 = vmatprep.subr.bf16.mxu0 0
    %1504 = vmatpush1.bf16.msra.mxu0 %v442
    %1505 = vmatprep.subr.bf16.mxu0 0
    %1506 = vmatpush1.bf16.msra.mxu0 0
    %1507 = vmatprep.subr.bf16.mxu0 0
    %1508 = vmatpush1.bf16.msra.mxu0 0
    %1509 = vmatprep.subr.bf16.mxu0 0
    %1510 = vmatpush1.bf16.msra.mxu0 0
    %1511 = vmatprep.subr.bf16.mxu0 0
    %1512 = vmatpush1.bf16.msra.mxu0 0
    %1513 = vmatprep.subr.bf16.mxu0 0
    %1514 = vmatpush1.bf16.msra.mxu0 0
    %1515 = vmatprep.subr.bf16.mxu0 0
    %1516 = vmatpush1.bf16.msra.mxu0 0
    %1517 = vmatprep.subr.bf16.mxu0 0
    %1518 = vmatpush1.bf16.msra.mxu0 0
    %1519 = vmatprep.subr.bf16.mxu0 0
    %1520 = vmatpush1.bf16.msra.mxu0 0
    %1521 = vmatprep.subr.bf16.mxu0 0
    %1522 = vmatpush1.bf16.msra.mxu0 0
    %1523 = vmatprep.subr.bf16.mxu0 0
    %1524 = vmatpush1.bf16.msra.mxu0 0
    %1525 = vmatprep.subr.bf16.mxu0 0
    %1526 = vmatpush1.bf16.msra.mxu0 0
    %1527 = vmatprep.subr.bf16.mxu0 0
    %1528 = vmatpush1.bf16.msra.mxu0 0
    %1529 = vmatprep.subr.bf16.mxu0 0
    %1530 = vmatpush1.bf16.msra.mxu0 0
    %1531 = vmatprep.subr.bf16.mxu0 0
    %1532 = vmatpush1.bf16.msra.mxu0 0
    %1533 = vmatprep.mubr.bf16.mxu0 0
    %1534 = vmatmul.mubr.bf16.gmra.mrb[0].mxu0 %v1499
    %v1535 = vpop.f32.mrb[0].mxu0
    %v1536 = vadd.f32 0.0, %v1535
    %v1537 = vpop.f32.mrb[0].mxu0
    %v1538 = vpop.f32.mrb[0].mxu0
    %v1539 = vadd.f32 0.0, %v1538
    %v1540 = vpop.f32.mrb[0].mxu0
    %1541 = vdwg.mxu0
    %v1542 = vadd.f32 %v382, %v1536
    %v1543 = vadd.f32 %v385, %v1539
    %1545 = vrot.lane.b32.xlu0 %v1493, 64
    %v1546 = vpop.permute.xlu0 %1545
    %v1548 = vsel %vm216, %v1546, 0
    %1550 = vmatprep.subr.bf16.mxu0 0
    %1551 = vmatpush1.bf16.msra.mxu0 %v597
    %1552 = vmatprep.subr.bf16.mxu0 0
    %1553 = vmatpush1.bf16.msra.mxu0 %v598
    %1554 = vmatprep.subr.bf16.mxu0 0
    %1555 = vmatpush1.bf16.msra.mxu0 0
    %1556 = vmatprep.subr.bf16.mxu0 0
    %1557 = vmatpush1.bf16.msra.mxu0 0
    %1558 = vmatprep.subr.bf16.mxu0 0
    %1559 = vmatpush1.bf16.msra.mxu0 0
    %1560 = vmatprep.subr.bf16.mxu0 0
    %1561 = vmatpush1.bf16.msra.mxu0 0
    %1562 = vmatprep.subr.bf16.mxu0 0
    %1563 = vmatpush1.bf16.msra.mxu0 0
    %1564 = vmatprep.subr.bf16.mxu0 0
    %1565 = vmatpush1.bf16.msra.mxu0 0
    %1566 = vmatprep.subr.bf16.mxu0 0
    %1567 = vmatpush1.bf16.msra.mxu0 0
    %1568 = vmatprep.subr.bf16.mxu0 0
    %1569 = vmatpush1.bf16.msra.mxu0 0
    %1570 = vmatprep.subr.bf16.mxu0 0
    %1571 = vmatpush1.bf16.msra.mxu0 0
    %1572 = vmatprep.subr.bf16.mxu0 0
    %1573 = vmatpush1.bf16.msra.mxu0 0
    %1574 = vmatprep.subr.bf16.mxu0 0
    %1575 = vmatpush1.bf16.msra.mxu0 0
    %1576 = vmatprep.subr.bf16.mxu0 0
    %1577 = vmatpush1.bf16.msra.mxu0 0
    %1578 = vmatprep.subr.bf16.mxu0 0
    %1579 = vmatpush1.bf16.msra.mxu0 0
    %1580 = vmatprep.subr.bf16.mxu0 0
    %1581 = vmatpush1.bf16.msra.mxu0 0
    %1582 = vmatprep.mubr.bf16.mxu0 0
    %1583 = vmatmul.mubr.bf16.gmra.mrb[0].mxu0 %v1548
    %v1584 = vpop.f32.mrb[0].mxu0
    %v1585 = vadd.f32 0.0, %v1584
    %v1586 = vpop.f32.mrb[0].mxu0
    %v1587 = vpop.f32.mrb[0].mxu0
    %v1588 = vadd.f32 0.0, %v1587
    %v1589 = vpop.f32.mrb[0].mxu0
    %1590 = vdwg.mxu0
    %1591 = vmatprep.subr.bf16.mxu0 0
    %1592 = vmatpush1.bf16.msra.mxu0 %v650
    %1593 = vmatprep.subr.bf16.mxu0 0
    %1594 = vmatpush1.bf16.msra.mxu0 %v651
    %1595 = vmatprep.subr.bf16.mxu0 0
    %1596 = vmatpush1.bf16.msra.mxu0 0
    %1597 = vmatprep.subr.bf16.mxu0 0
    %1598 = vmatpush1.bf16.msra.mxu0 0
    %1599 = vmatprep.subr.bf16.mxu0 0
    %1600 = vmatpush1.bf16.msra.mxu0 0
    %1601 = vmatprep.subr.bf16.mxu0 0
    %1602 = vmatpush1.bf16.msra.mxu0 0
    %1603 = vmatprep.subr.bf16.mxu0 0
    %1604 = vmatpush1.bf16.msra.mxu0 0
    %1605 = vmatprep.subr.bf16.mxu0 0
    %1606 = vmatpush1.bf16.msra.mxu0 0
    %1607 = vmatprep.subr.bf16.mxu0 0
    %1608 = vmatpush1.bf16.msra.mxu0 0
    %1609 = vmatprep.subr.bf16.mxu0 0
    %1610 = vmatpush1.bf16.msra.mxu0 0
    %1611 = vmatprep.subr.bf16.mxu0 0
    %1612 = vmatpush1.bf16.msra.mxu0 0
    %1613 = vmatprep.subr.bf16.mxu0 0
    %1614 = vmatpush1.bf16.msra.mxu0 0
    %1615 = vmatprep.subr.bf16.mxu0 0
    %1616 = vmatpush1.bf16.msra.mxu0 0
    %1617 = vmatprep.subr.bf16.mxu0 0
    %1618 = vmatpush1.bf16.msra.mxu0 0
    %1619 = vmatprep.subr.bf16.mxu0 0
    %1620 = vmatpush1.bf16.msra.mxu0 0
    %1621 = vmatprep.subr.bf16.mxu0 0
    %1622 = vmatpush1.bf16.msra.mxu0 0
    %1623 = vmatprep.mubr.bf16.mxu0 0
    %1624 = vmatmul.mubr.bf16.gmra.mrb[0].mxu0 %v1499
    %v1625 = vpop.f32.mrb[0].mxu0
    %v1626 = vadd.f32 %v1585, %v1625
    %v1627 = vpop.f32.mrb[0].mxu0
    %v1628 = vpop.f32.mrb[0].mxu0
    %v1629 = vadd.f32 %v1588, %v1628
    %v1630 = vpop.f32.mrb[0].mxu0
    %1631 = vdwg.mxu0
    %v1632 = vadd.f32 %v1626, %v699
    %v1633 = vadd.f32 %v1629, %v699
    %v1634 = vxor.u32 %v1542, 2147483648
    %v1635 = vxor.u32 %v1543, 2147483648
    %v1636 = vmul.f32 %v1634, 1.442695
    %v1637 = vpow.pop %v1636
    %v1638 = vmul.f32 %v1635, 1.442695
    %v1639 = vpow.pop %v1638
    %v1640 = vadd.f32 %v1637, 1.0
    %v1641 = vadd.f32 %v1639, 1.0
    %v1642 = vrcp.pop %v1640
    %v1643 = vmul.f32 1.0, %v1642
    %v1644 = vrcp.pop %v1641
    %v1645 = vmul.f32 1.0, %v1644
    %v1646 = vtanh.pop %v1542
    %v1647 = vtanh.pop %v1543
    %v1648 = vmul.f32 %v1643, %v1203
    %v1649 = vmul.f32 %v1645, %v1204
    %1652 = vrot.lane.b32.xlu0 %v1646, 32
    %v1653 = vpop.permute.xlu0 %1652
    %1654 = vrot.lane.b32.xlu0 %v1647, 32
    %v1655 = vpop.permute.xlu0 %1654
    %v1658 = vmul.f32 %v1643, %v1653
    %v1659 = vmul.f32 %v1645, %v1655
    %1662 = vrot.lane.b32.xlu0 %v1658, 32
    %v1663 = vpop.permute.xlu0 %1662
    %1664 = vrot.lane.b32.xlu0 %v1659, 32
    %v1665 = vpop.permute.xlu0 %1664
    %v1668 = vadd.f32 %v1648, %v1663
    %v1669 = vadd.f32 %v1649, %v1665
    %v1670 = vtanh.pop %v1668
    %v1671 = vtanh.pop %v1669
    %1674 = vrot.lane.b32.xlu0 %v1670, 32
    %v1675 = vpop.permute.xlu0 %1674
    %1676 = vrot.lane.b32.xlu0 %v1671, 32
    %v1677 = vpop.permute.xlu0 %1676
    %v1680 = vmul.f32 %v1643, %v1675
    %v1681 = vmul.f32 %v1645, %v1677
    %v1682 = vxor.u32 %v1632, 2147483648
    %v1683 = vxor.u32 %v1633, 2147483648
    %v1684 = vmul.f32 %v1682, 1.442695
    %v1685 = vpow.pop %v1684
    %v1686 = vmul.f32 %v1683, 1.442695
    %v1687 = vpow.pop %v1686
    %v1688 = vadd.f32 %v1685, 1.0
    %v1689 = vadd.f32 %v1687, 1.0
    %v1690 = vrcp.pop %v1688
    %v1691 = vmul.f32 1.0, %v1690
    %v1692 = vrcp.pop %v1689
    %v1693 = vmul.f32 1.0, %v1692
    %v1694 = vtanh.pop %v1632
    %v1695 = vtanh.pop %v1633
    %v1696 = vmul.f32 %v1691, %v1251
    %v1697 = vmul.f32 %v1693, %v1252
    %1700 = vrot.lane.b32.xlu0 %v1694, 32
    %v1701 = vpop.permute.xlu0 %1700
    %1702 = vrot.lane.b32.xlu0 %v1695, 32
    %v1703 = vpop.permute.xlu0 %1702
    %v1706 = vmul.f32 %v1691, %v1701
    %v1707 = vmul.f32 %v1693, %v1703
    %1710 = vrot.lane.b32.xlu0 %v1706, 32
    %v1711 = vpop.permute.xlu0 %1710
    %1712 = vrot.lane.b32.xlu0 %v1707, 32
    %v1713 = vpop.permute.xlu0 %1712
    %v1716 = vadd.f32 %v1696, %v1711
    %v1717 = vadd.f32 %v1697, %v1713
    %v1718 = vtanh.pop %v1716
    %v1719 = vtanh.pop %v1717
    %1722 = vrot.lane.b32.xlu0 %v1718, 32
    %v1723 = vpop.permute.xlu0 %1722
    %1724 = vrot.lane.b32.xlu0 %v1719, 32
    %v1725 = vpop.permute.xlu0 %1724
    %v1728 = vmul.f32 %v1691, %v1723
    %v1729 = vmul.f32 %v1693, %v1725
    %v1732 = vcombine.high %v1728, %v1728
    %v1734 = vunpack.c.l.s4 1966171168
    %v1735 = vunpack.c.0.s8 %v1734
    %v1736 = vlaneseq
    %v1737 = vshrl.u32 %v1736, 7
    %v1738 = vsub.s32 %v1735, %v1737
    %v1739 = vrot.slane %v1728, %v1738
    %v1741 = vunpack.c.l.s4 1966171168
    %v1742 = vunpack.c.0.s8 %v1741
    %v1743 = vlaneseq
    %v1744 = vshrl.u32 %v1743, 7
    %v1745 = vsub.s32 %v1742, %v1744
    %v1746 = vrot.slane %v1732, %v1745
    %v1747 = vcombine.high %v1739, %v1739
    %v1748 = vcombine.high %v1746, %v1746
    %v1750 = vunpack.c.l.s4 1966171168
    %v1751 = vunpack.c.0.s8 %v1750
    %v1752 = vlaneseq
    %v1753 = vshrl.u32 %v1752, 7
    %v1754 = vsub.s32 %v1751, %v1753
    %v1755 = vrot.slane %v1739, %v1754
    %v1757 = vunpack.c.l.s4 1966171168
    %v1758 = vunpack.c.0.s8 %v1757
    %v1759 = vlaneseq
    %v1760 = vshrl.u32 %v1759, 7
    %v1761 = vsub.s32 %v1758, %v1760
    %v1762 = vrot.slane %v1746, %v1761
    %v1764 = vunpack.c.l.s4 1966171168
    %v1765 = vunpack.c.0.s8 %v1764
    %v1766 = vlaneseq
    %v1767 = vshrl.u32 %v1766, 7
    %v1768 = vsub.s32 %v1765, %v1767
    %v1769 = vrot.slane %v1747, %v1768
    %v1771 = vunpack.c.l.s4 1966171168
    %v1772 = vunpack.c.0.s8 %v1771
    %v1773 = vlaneseq
    %v1774 = vshrl.u32 %v1773, 7
    %v1775 = vsub.s32 %v1772, %v1774
    %v1776 = vrot.slane %v1748, %v1775
    %v1777 = vcombine.high %v1755, %v1755
    %v1778 = vcombine.high %v1762, %v1762
    %v1779 = vcombine.high %v1769, %v1769
    %v1780 = vcombine.high %v1776, %v1776
    %v1781 = vcombine.high %v1729, %v1729
    %v1783 = vunpack.c.l.s4 1966171168
    %v1784 = vunpack.c.0.s8 %v1783
    %v1785 = vlaneseq
    %v1786 = vshrl.u32 %v1785, 7
    %v1787 = vsub.s32 %v1784, %v1786
    %v1788 = vrot.slane %v1729, %v1787
    %v1790 = vunpack.c.l.s4 1966171168
    %v1791 = vunpack.c.0.s8 %v1790
    %v1792 = vlaneseq
    %v1793 = vshrl.u32 %v1792, 7
    %v1794 = vsub.s32 %v1791, %v1793
    %v1795 = vrot.slane %v1781, %v1794
    %v1796 = vcombine.high %v1788, %v1788
    %v1797 = vcombine.high %v1795, %v1795
    %v1799 = vunpack.c.l.s4 1966171168
    %v1800 = vunpack.c.0.s8 %v1799
    %v1801 = vlaneseq
    %v1802 = vshrl.u32 %v1801, 7
    %v1803 = vsub.s32 %v1800, %v1802
    %v1804 = vrot.slane %v1788, %v1803
    %v1806 = vunpack.c.l.s4 1966171168
    %v1807 = vunpack.c.0.s8 %v1806
    %v1808 = vlaneseq
    %v1809 = vshrl.u32 %v1808, 7
    %v1810 = vsub.s32 %v1807, %v1809
    %v1811 = vrot.slane %v1795, %v1810
    %v1813 = vunpack.c.l.s4 1966171168
    %v1814 = vunpack.c.0.s8 %v1813
    %v1815 = vlaneseq
    %v1816 = vshrl.u32 %v1815, 7
    %v1817 = vsub.s32 %v1814, %v1816
    %v1818 = vrot.slane %v1796, %v1817
    %v1820 = vunpack.c.l.s4 1966171168
    %v1821 = vunpack.c.0.s8 %v1820
    %v1822 = vlaneseq
    %v1823 = vshrl.u32 %v1822, 7
    %v1824 = vsub.s32 %v1821, %v1823
    %v1825 = vrot.slane %v1797, %v1824
    %v1826 = vcombine.high %v1804, %v1804
    %v1827 = vcombine.high %v1811, %v1811
    %v1828 = vcombine.high %v1818, %v1818
    %v1829 = vcombine.high %v1825, %v1825
    %v1830 = vlaneseq
    %v1831 = vshrl.u32 %v1830, 7
    %v1832 = vsub.s32 0, %v1831
    %v1833 = vrot.slane %v1755, %v1832
    %v1834 = vlaneseq
    %v1835 = vshrl.u32 %v1834, 7
    %v1836 = vsub.s32 0, %v1835
    %v1837 = vrot.slane %v1769, %v1836
    %v1838 = vlaneseq
    %v1839 = vshrl.u32 %v1838, 7
    %v1840 = vsub.s32 0, %v1839
    %v1841 = vrot.slane %v1777, %v1840
    %v1842 = vlaneseq
    %v1843 = vshrl.u32 %v1842, 7
    %v1844 = vsub.s32 0, %v1843
    %v1845 = vrot.slane %v1779, %v1844
    %v1846 = vlaneseq
    %v1847 = vshrl.u32 %v1846, 7
    %v1848 = vsub.s32 0, %v1847
    %v1849 = vrot.slane %v1762, %v1848
    %v1850 = vlaneseq
    %v1851 = vshrl.u32 %v1850, 7
    %v1852 = vsub.s32 0, %v1851
    %v1853 = vrot.slane %v1776, %v1852
    %v1854 = vlaneseq
    %v1855 = vshrl.u32 %v1854, 7
    %v1856 = vsub.s32 0, %v1855
    %v1857 = vrot.slane %v1778, %v1856
    %v1858 = vlaneseq
    %v1859 = vshrl.u32 %v1858, 7
    %v1860 = vsub.s32 0, %v1859
    %v1861 = vrot.slane %v1780, %v1860
    %v1862 = vlaneseq
    %v1863 = vshrl.u32 %v1862, 7
    %v1864 = vsub.s32 0, %v1863
    %v1865 = vrot.slane %v1804, %v1864
    %v1866 = vlaneseq
    %v1867 = vshrl.u32 %v1866, 7
    %v1868 = vsub.s32 0, %v1867
    %v1869 = vrot.slane %v1818, %v1868
    %v1870 = vlaneseq
    %v1871 = vshrl.u32 %v1870, 7
    %v1872 = vsub.s32 0, %v1871
    %v1873 = vrot.slane %v1826, %v1872
    %v1874 = vlaneseq
    %v1875 = vshrl.u32 %v1874, 7
    %v1876 = vsub.s32 0, %v1875
    %v1877 = vrot.slane %v1828, %v1876
    %v1878 = vlaneseq
    %v1879 = vshrl.u32 %v1878, 7
    %v1880 = vsub.s32 0, %v1879
    %v1881 = vrot.slane %v1811, %v1880
    %v1882 = vlaneseq
    %v1883 = vshrl.u32 %v1882, 7
    %v1884 = vsub.s32 0, %v1883
    %v1885 = vrot.slane %v1825, %v1884
    %v1886 = vlaneseq
    %v1887 = vshrl.u32 %v1886, 7
    %v1888 = vsub.s32 0, %v1887
    %v1889 = vrot.slane %v1827, %v1888
    %v1890 = vlaneseq
    %v1891 = vshrl.u32 %v1890, 7
    %v1892 = vsub.s32 0, %v1891
    %v1893 = vrot.slane %v1829, %v1892
    %1894 = vrot.lane.b32.xlu0 %v1833, 64
    %v1895 = vpop.permute.xlu0 %1894
    %1896 = vrot.lane.b32.xlu0 %v1837, 64
    %v1897 = vpop.permute.xlu0 %1896
    %1898 = vrot.lane.b32.xlu0 %v1841, 64
    %v1899 = vpop.permute.xlu0 %1898
    %1900 = vrot.lane.b32.xlu0 %v1845, 64
    %v1901 = vpop.permute.xlu0 %1900
    %1902 = vrot.lane.b32.xlu0 %v1849, 64
    %v1903 = vpop.permute.xlu0 %1902
    %1904 = vrot.lane.b32.xlu0 %v1853, 64
    %v1905 = vpop.permute.xlu0 %1904
    %1906 = vrot.lane.b32.xlu0 %v1857, 64
    %v1907 = vpop.permute.xlu0 %1906
    %1908 = vrot.lane.b32.xlu0 %v1861, 64
    %v1909 = vpop.permute.xlu0 %1908
    %1910 = vrot.lane.b32.xlu0 %v1865, 64
    %v1911 = vpop.permute.xlu0 %1910
    %1912 = vrot.lane.b32.xlu0 %v1869, 64
    %v1913 = vpop.permute.xlu0 %1912
    %1914 = vrot.lane.b32.xlu0 %v1873, 64
    %v1915 = vpop.permute.xlu0 %1914
    %1916 = vrot.lane.b32.xlu0 %v1877, 64
    %v1917 = vpop.permute.xlu0 %1916
    %1918 = vrot.lane.b32.xlu0 %v1881, 64
    %v1919 = vpop.permute.xlu0 %1918
    %1920 = vrot.lane.b32.xlu0 %v1885, 64
    %v1921 = vpop.permute.xlu0 %1920
    %1922 = vrot.lane.b32.xlu0 %v1889, 64
    %v1923 = vpop.permute.xlu0 %1922
    %1924 = vrot.lane.b32.xlu0 %v1893, 64
    %v1925 = vpop.permute.xlu0 %1924
    %1942 = vst.msk [vmem:[#allocation2 + $0x2] sm:$0x1] %vm1011, %v1895
    %1943 = vst.msk [vmem:[#allocation2 + $0xa] sm:$0x1] %vm1011, %v1897
    %1944 = vst.msk [vmem:[#allocation2 + $0x12] sm:$0x1] %vm1011, %v1899
    %1945 = vst.msk [vmem:[#allocation2 + $0x1a] sm:$0x1] %vm1011, %v1901
    %1946 = vst.msk [vmem:[#allocation2 + $0x22] sm:$0x1] %vm1011, %v1903
    %1947 = vst.msk [vmem:[#allocation2 + $0x2a] sm:$0x1] %vm1011, %v1905
    %1948 = vst.msk [vmem:[#allocation2 + $0x32] sm:$0x1] %vm1011, %v1907
    %1949 = vst.msk [vmem:[#allocation2 + $0x3a] sm:$0x1] %vm1011, %v1909
    %1950 = vst.msk [vmem:[#allocation2 + $0x42] sm:$0x1] %vm1011, %v1911
    %1951 = vst.msk [vmem:[#allocation2 + $0x4a] sm:$0x1] %vm1011, %v1913
    %1952 = vst.msk [vmem:[#allocation2 + $0x52] sm:$0x1] %vm1011, %v1915
    %1953 = vst.msk [vmem:[#allocation2 + $0x5a] sm:$0x1] %vm1011, %v1917
    %1954 = vst.msk [vmem:[#allocation2 + $0x62] sm:$0x1] %vm1011, %v1919
    %1955 = vst.msk [vmem:[#allocation2 + $0x6a] sm:$0x1] %vm1011, %v1921
    %1956 = vst.msk [vmem:[#allocation2 + $0x72] sm:$0x1] %vm1011, %v1923
    %1957 = vst.msk [vmem:[#allocation2 + $0x7a] sm:$0x1] %vm1011, %v1925
    %v1958 = vpack.c.bf16 %v1729, %v1728
    %v1959 = vpack.c.bf16 %v1681, %v1680
    %1961 = vrot.lane.b32.xlu0 %v1959, 64
    %v1962 = vpop.permute.xlu0 %1961
    %v1964 = vsel %vm216, %v1962, 0
    %1966 = vmatprep.subr.bf16.mxu0 0
    %1967 = vmatpush1.bf16.msra.mxu0 %v441
    %1968 = vmatprep.subr.bf16.mxu0 0
    %1969 = vmatpush1.bf16.msra.mxu0 %v442
    %1970 = vmatprep.subr.bf16.mxu0 0
    %1971 = vmatpush1.bf16.msra.mxu0 0
    %1972 = vmatprep.subr.bf16.mxu0 0
    %1973 = vmatpush1.bf16.msra.mxu0 0
    %1974 = vmatprep.subr.bf16.mxu0 0
    %1975 = vmatpush1.bf16.msra.mxu0 0
    %1976 = vmatprep.subr.bf16.mxu0 0
    %1977 = vmatpush1.bf16.msra.mxu0 0
    %1978 = vmatprep.subr.bf16.mxu0 0
    %1979 = vmatpush1.bf16.msra.mxu0 0
    %1980 = vmatprep.subr.bf16.mxu0 0
    %1981 = vmatpush1.bf16.msra.mxu0 0
    %1982 = vmatprep.subr.bf16.mxu0 0
    %1983 = vmatpush1.bf16.msra.mxu0 0
    %1984 = vmatprep.subr.bf16.mxu0 0
    %1985 = vmatpush1.bf16.msra.mxu0 0
    %1986 = vmatprep.subr.bf16.mxu0 0
    %1987 = vmatpush1.bf16.msra.mxu0 0
    %1988 = vmatprep.subr.bf16.mxu0 0
    %1989 = vmatpush1.bf16.msra.mxu0 0
    %1990 = vmatprep.subr.bf16.mxu0 0
    %1991 = vmatpush1.bf16.msra.mxu0 0
    %1992 = vmatprep.subr.bf16.mxu0 0
    %1993 = vmatpush1.bf16.msra.mxu0 0
    %1994 = vmatprep.subr.bf16.mxu0 0
    %1995 = vmatpush1.bf16.msra.mxu0 0
    %1996 = vmatprep.subr.bf16.mxu0 0
    %1997 = vmatpush1.bf16.msra.mxu0 0
    %1998 = vmatprep.mubr.bf16.mxu0 0
    %1999 = vmatmul.mubr.bf16.gmra.mrb[0].mxu0 %v1964
    %v2000 = vpop.f32.mrb[0].mxu0
    %v2001 = vadd.f32 0.0, %v2000
    %v2002 = vpop.f32.mrb[0].mxu0
    %v2003 = vpop.f32.mrb[0].mxu0
    %v2004 = vadd.f32 0.0, %v2003
    %v2005 = vpop.f32.mrb[0].mxu0
    %2006 = vdwg.mxu0
    %v2007 = vadd.f32 %v390, %v2001
    %v2008 = vadd.f32 %v393, %v2004
    %2010 = vrot.lane.b32.xlu0 %v1958, 64
    %v2011 = vpop.permute.xlu0 %2010
    %v2013 = vsel %vm216, %v2011, 0
    %2015 = vmatprep.subr.bf16.mxu0 0
    %2016 = vmatpush1.bf16.msra.mxu0 %v597
    %2017 = vmatprep.subr.bf16.mxu0 0
    %2018 = vmatpush1.bf16.msra.mxu0 %v598
    %2019 = vmatprep.subr.bf16.mxu0 0
    %2020 = vmatpush1.bf16.msra.mxu0 0
    %2021 = vmatprep.subr.bf16.mxu0 0
    %2022 = vmatpush1.bf16.msra.mxu0 0
    %2023 = vmatprep.subr.bf16.mxu0 0
    %2024 = vmatpush1.bf16.msra.mxu0 0
    %2025 = vmatprep.subr.bf16.mxu0 0
    %2026 = vmatpush1.bf16.msra.mxu0 0
    %2027 = vmatprep.subr.bf16.mxu0 0
    %2028 = vmatpush1.bf16.msra.mxu0 0
    %2029 = vmatprep.subr.bf16.mxu0 0
    %2030 = vmatpush1.bf16.msra.mxu0 0
    %2031 = vmatprep.subr.bf16.mxu0 0
    %2032 = vmatpush1.bf16.msra.mxu0 0
    %2033 = vmatprep.subr.bf16.mxu0 0
    %2034 = vmatpush1.bf16.msra.mxu0 0
    %2035 = vmatprep.subr.bf16.mxu0 0
    %2036 = vmatpush1.bf16.msra.mxu0 0
    %2037 = vmatprep.subr.bf16.mxu0 0
    %2038 = vmatpush1.bf16.msra.mxu0 0
    %2039 = vmatprep.subr.bf16.mxu0 0
    %2040 = vmatpush1.bf16.msra.mxu0 0
    %2041 = vmatprep.subr.bf16.mxu0 0
    %2042 = vmatpush1.bf16.msra.mxu0 0
    %2043 = vmatprep.subr.bf16.mxu0 0
    %2044 = vmatpush1.bf16.msra.mxu0 0
    %2045 = vmatprep.subr.bf16.mxu0 0
    %2046 = vmatpush1.bf16.msra.mxu0 0
    %2047 = vmatprep.mubr.bf16.mxu0 0
    %2048 = vmatmul.mubr.bf16.gmra.mrb[0].mxu0 %v2013
    %v2049 = vpop.f32.mrb[0].mxu0
    %v2050 = vadd.f32 0.0, %v2049
    %v2051 = vpop.f32.mrb[0].mxu0
    %v2052 = vpop.f32.mrb[0].mxu0
    %v2053 = vadd.f32 0.0, %v2052
    %v2054 = vpop.f32.mrb[0].mxu0
    %2055 = vdwg.mxu0
    %2056 = vmatprep.subr.bf16.mxu0 0
    %2057 = vmatpush1.bf16.msra.mxu0 %v650
    %2058 = vmatprep.subr.bf16.mxu0 0
    %2059 = vmatpush1.bf16.msra.mxu0 %v651
    %2060 = vmatprep.subr.bf16.mxu0 0
    %2061 = vmatpush1.bf16.msra.mxu0 0
    %2062 = vmatprep.subr.bf16.mxu0 0
    %2063 = vmatpush1.bf16.msra.mxu0 0
    %2064 = vmatprep.subr.bf16.mxu0 0
    %2065 = vmatpush1.bf16.msra.mxu0 0
    %2066 = vmatprep.subr.bf16.mxu0 0
    %2067 = vmatpush1.bf16.msra.mxu0 0
    %2068 = vmatprep.subr.bf16.mxu0 0
    %2069 = vmatpush1.bf16.msra.mxu0 0
    %2070 = vmatprep.subr.bf16.mxu0 0
    %2071 = vmatpush1.bf16.msra.mxu0 0
    %2072 = vmatprep.subr.bf16.mxu0 0
    %2073 = vmatpush1.bf16.msra.mxu0 0
    %2074 = vmatprep.subr.bf16.mxu0 0
    %2075 = vmatpush1.bf16.msra.mxu0 0
    %2076 = vmatprep.subr.bf16.mxu0 0
    %2077 = vmatpush1.bf16.msra.mxu0 0
    %2078 = vmatprep.subr.bf16.mxu0 0
    %2079 = vmatpush1.bf16.msra.mxu0 0
    %2080 = vmatprep.subr.bf16.mxu0 0
    %2081 = vmatpush1.bf16.msra.mxu0 0
    %2082 = vmatprep.subr.bf16.mxu0 0
    %2083 = vmatpush1.bf16.msra.mxu0 0
    %2084 = vmatprep.subr.bf16.mxu0 0
    %2085 = vmatpush1.bf16.msra.mxu0 0
    %2086 = vmatprep.subr.bf16.mxu0 0
    %2087 = vmatpush1.bf16.msra.mxu0 0
    %2088 = vmatprep.mubr.bf16.mxu0 0
    %2089 = vmatmul.mubr.bf16.gmra.mrb[0].mxu0 %v1964
    %v2090 = vpop.f32.mrb[0].mxu0
    %v2091 = vadd.f32 %v2050, %v2090
    %v2092 = vpop.f32.mrb[0].mxu0
    %v2093 = vpop.f32.mrb[0].mxu0
    %v2094 = vadd.f32 %v2053, %v2093
    %v2095 = vpop.f32.mrb[0].mxu0
    %2096 = vdwg.mxu0
    %v2097 = vadd.f32 %v2091, %v699
    %v2098 = vadd.f32 %v2094, %v699
    %v2099 = vxor.u32 %v2007, 2147483648
    %v2100 = vxor.u32 %v2008, 2147483648
    %v2101 = vmul.f32 %v2099, 1.442695
    %v2102 = vpow.pop %v2101
    %v2103 = vmul.f32 %v2100, 1.442695
    %v2104 = vpow.pop %v2103
    %v2105 = vadd.f32 %v2102, 1.0
    %v2106 = vadd.f32 %v2104, 1.0
    %v2107 = vrcp.pop %v2105
    %v2108 = vmul.f32 1.0, %v2107
    %v2109 = vrcp.pop %v2106
    %v2110 = vmul.f32 1.0, %v2109
    %v2111 = vtanh.pop %v2007
    %v2112 = vtanh.pop %v2008
    %v2113 = vmul.f32 %v2108, %v1668
    %v2114 = vmul.f32 %v2110, %v1669
    %2117 = vrot.lane.b32.xlu0 %v2111, 32
    %v2118 = vpop.permute.xlu0 %2117
    %2119 = vrot.lane.b32.xlu0 %v2112, 32
    %v2120 = vpop.permute.xlu0 %2119
    %v2123 = vmul.f32 %v2108, %v2118
    %v2124 = vmul.f32 %v2110, %v2120
    %2127 = vrot.lane.b32.xlu0 %v2123, 32
    %v2128 = vpop.permute.xlu0 %2127
    %2129 = vrot.lane.b32.xlu0 %v2124, 32
    %v2130 = vpop.permute.xlu0 %2129
    %v2133 = vadd.f32 %v2113, %v2128
    %v2134 = vadd.f32 %v2114, %v2130
    %v2135 = vtanh.pop %v2133
    %v2136 = vtanh.pop %v2134
    %2139 = vrot.lane.b32.xlu0 %v2135, 32
    %v2140 = vpop.permute.xlu0 %2139
    %2141 = vrot.lane.b32.xlu0 %v2136, 32
    %v2142 = vpop.permute.xlu0 %2141
    %v2145 = vmul.f32 %v2108, %v2140
    %v2146 = vmul.f32 %v2110, %v2142
    %v2147 = vxor.u32 %v2097, 2147483648
    %v2148 = vxor.u32 %v2098, 2147483648
    %v2149 = vmul.f32 %v2147, 1.442695
    %v2150 = vpow.pop %v2149
    %v2151 = vmul.f32 %v2148, 1.442695
    %v2152 = vpow.pop %v2151
    %v2153 = vadd.f32 %v2150, 1.0
    %v2154 = vadd.f32 %v2152, 1.0
    %v2155 = vrcp.pop %v2153
    %v2156 = vmul.f32 1.0, %v2155
    %v2157 = vrcp.pop %v2154
    %v2158 = vmul.f32 1.0, %v2157
    %v2159 = vtanh.pop %v2097
    %v2160 = vtanh.pop %v2098
    %v2161 = vmul.f32 %v2156, %v1716
    %v2162 = vmul.f32 %v2158, %v1717
    %2165 = vrot.lane.b32.xlu0 %v2159, 32
    %v2166 = vpop.permute.xlu0 %2165
    %2167 = vrot.lane.b32.xlu0 %v2160, 32
    %v2168 = vpop.permute.xlu0 %2167
    %v2171 = vmul.f32 %v2156, %v2166
    %v2172 = vmul.f32 %v2158, %v2168
    %2175 = vrot.lane.b32.xlu0 %v2171, 32
    %v2176 = vpop.permute.xlu0 %2175
    %2177 = vrot.lane.b32.xlu0 %v2172, 32
    %v2178 = vpop.permute.xlu0 %2177
    %v2181 = vadd.f32 %v2161, %v2176
    %v2182 = vadd.f32 %v2162, %v2178
    %v2183 = vtanh.pop %v2181
    %v2184 = vtanh.pop %v2182
    %2187 = vrot.lane.b32.xlu0 %v2183, 32
    %v2188 = vpop.permute.xlu0 %2187
    %2189 = vrot.lane.b32.xlu0 %v2184, 32
    %v2190 = vpop.permute.xlu0 %2189
    %v2193 = vmul.f32 %v2156, %v2188
    %v2194 = vmul.f32 %v2158, %v2190
    %v2197 = vcombine.high %v2193, %v2193
    %v2199 = vunpack.c.l.s4 1966171168
    %v2200 = vunpack.c.0.s8 %v2199
    %v2201 = vlaneseq
    %v2202 = vshrl.u32 %v2201, 7
    %v2203 = vsub.s32 %v2200, %v2202
    %v2204 = vrot.slane %v2193, %v2203
    %v2206 = vunpack.c.l.s4 1966171168
    %v2207 = vunpack.c.0.s8 %v2206
    %v2208 = vlaneseq
    %v2209 = vshrl.u32 %v2208, 7
    %v2210 = vsub.s32 %v2207, %v2209
    %v2211 = vrot.slane %v2197, %v2210
    %v2212 = vcombine.high %v2204, %v2204
    %v2213 = vcombine.high %v2211, %v2211
    %v2215 = vunpack.c.l.s4 1966171168
    %v2216 = vunpack.c.0.s8 %v2215
    %v2217 = vlaneseq
    %v2218 = vshrl.u32 %v2217, 7
    %v2219 = vsub.s32 %v2216, %v2218
    %v2220 = vrot.slane %v2204, %v2219
    %v2222 = vunpack.c.l.s4 1966171168
    %v2223 = vunpack.c.0.s8 %v2222
    %v2224 = vlaneseq
    %v2225 = vshrl.u32 %v2224, 7
    %v2226 = vsub.s32 %v2223, %v2225
    %v2227 = vrot.slane %v2211, %v2226
    %v2229 = vunpack.c.l.s4 1966171168
    %v2230 = vunpack.c.0.s8 %v2229
    %v2231 = vlaneseq
    %v2232 = vshrl.u32 %v2231, 7
    %v2233 = vsub.s32 %v2230, %v2232
    %v2234 = vrot.slane %v2212, %v2233
    %v2236 = vunpack.c.l.s4 1966171168
    %v2237 = vunpack.c.0.s8 %v2236
    %v2238 = vlaneseq
    %v2239 = vshrl.u32 %v2238, 7
    %v2240 = vsub.s32 %v2237, %v2239
    %v2241 = vrot.slane %v2213, %v2240
    %v2242 = vcombine.high %v2220, %v2220
    %v2243 = vcombine.high %v2227, %v2227
    %v2244 = vcombine.high %v2234, %v2234
    %v2245 = vcombine.high %v2241, %v2241
    %v2246 = vcombine.high %v2194, %v2194
    %v2248 = vunpack.c.l.s4 1966171168
    %v2249 = vunpack.c.0.s8 %v2248
    %v2250 = vlaneseq
    %v2251 = vshrl.u32 %v2250, 7
    %v2252 = vsub.s32 %v2249, %v2251
    %v2253 = vrot.slane %v2194, %v2252
    %v2255 = vunpack.c.l.s4 1966171168
    %v2256 = vunpack.c.0.s8 %v2255
    %v2257 = vlaneseq
    %v2258 = vshrl.u32 %v2257, 7
    %v2259 = vsub.s32 %v2256, %v2258
    %v2260 = vrot.slane %v2246, %v2259
    %v2261 = vcombine.high %v2253, %v2253
    %v2262 = vcombine.high %v2260, %v2260
    %v2264 = vunpack.c.l.s4 1966171168
    %v2265 = vunpack.c.0.s8 %v2264
    %v2266 = vlaneseq
    %v2267 = vshrl.u32 %v2266, 7
    %v2268 = vsub.s32 %v2265, %v2267
    %v2269 = vrot.slane %v2253, %v2268
    %v2271 = vunpack.c.l.s4 1966171168
    %v2272 = vunpack.c.0.s8 %v2271
    %v2273 = vlaneseq
    %v2274 = vshrl.u32 %v2273, 7
    %v2275 = vsub.s32 %v2272, %v2274
    %v2276 = vrot.slane %v2260, %v2275
    %v2278 = vunpack.c.l.s4 1966171168
    %v2279 = vunpack.c.0.s8 %v2278
    %v2280 = vlaneseq
    %v2281 = vshrl.u32 %v2280, 7
    %v2282 = vsub.s32 %v2279, %v2281
    %v2283 = vrot.slane %v2261, %v2282
    %v2285 = vunpack.c.l.s4 1966171168
    %v2286 = vunpack.c.0.s8 %v2285
    %v2287 = vlaneseq
    %v2288 = vshrl.u32 %v2287, 7
    %v2289 = vsub.s32 %v2286, %v2288
    %v2290 = vrot.slane %v2262, %v2289
    %v2291 = vcombine.high %v2269, %v2269
    %v2292 = vcombine.high %v2276, %v2276
    %v2293 = vcombine.high %v2283, %v2283
    %v2294 = vcombine.high %v2290, %v2290
    %v2295 = vlaneseq
    %v2296 = vshrl.u32 %v2295, 7
    %v2297 = vsub.s32 0, %v2296
    %v2298 = vrot.slane %v2220, %v2297
    %v2299 = vlaneseq
    %v2300 = vshrl.u32 %v2299, 7
    %v2301 = vsub.s32 0, %v2300
    %v2302 = vrot.slane %v2234, %v2301
    %v2303 = vlaneseq
    %v2304 = vshrl.u32 %v2303, 7
    %v2305 = vsub.s32 0, %v2304
    %v2306 = vrot.slane %v2242, %v2305
    %v2307 = vlaneseq
    %v2308 = vshrl.u32 %v2307, 7
    %v2309 = vsub.s32 0, %v2308
    %v2310 = vrot.slane %v2244, %v2309
    %v2311 = vlaneseq
    %v2312 = vshrl.u32 %v2311, 7
    %v2313 = vsub.s32 0, %v2312
    %v2314 = vrot.slane %v2227, %v2313
    %v2315 = vlaneseq
    %v2316 = vshrl.u32 %v2315, 7
    %v2317 = vsub.s32 0, %v2316
    %v2318 = vrot.slane %v2241, %v2317
    %v2319 = vlaneseq
    %v2320 = vshrl.u32 %v2319, 7
    %v2321 = vsub.s32 0, %v2320
    %v2322 = vrot.slane %v2243, %v2321
    %v2323 = vlaneseq
    %v2324 = vshrl.u32 %v2323, 7
    %v2325 = vsub.s32 0, %v2324
    %v2326 = vrot.slane %v2245, %v2325
    %v2327 = vlaneseq
    %v2328 = vshrl.u32 %v2327, 7
    %v2329 = vsub.s32 0, %v2328
    %v2330 = vrot.slane %v2269, %v2329
    %v2331 = vlaneseq
    %v2332 = vshrl.u32 %v2331, 7
    %v2333 = vsub.s32 0, %v2332
    %v2334 = vrot.slane %v2283, %v2333
    %v2335 = vlaneseq
    %v2336 = vshrl.u32 %v2335, 7
    %v2337 = vsub.s32 0, %v2336
    %v2338 = vrot.slane %v2291, %v2337
    %v2339 = vlaneseq
    %v2340 = vshrl.u32 %v2339, 7
    %v2341 = vsub.s32 0, %v2340
    %v2342 = vrot.slane %v2293, %v2341
    %v2343 = vlaneseq
    %v2344 = vshrl.u32 %v2343, 7
    %v2345 = vsub.s32 0, %v2344
    %v2346 = vrot.slane %v2276, %v2345
    %v2347 = vlaneseq
    %v2348 = vshrl.u32 %v2347, 7
    %v2349 = vsub.s32 0, %v2348
    %v2350 = vrot.slane %v2290, %v2349
    %v2351 = vlaneseq
    %v2352 = vshrl.u32 %v2351, 7
    %v2353 = vsub.s32 0, %v2352
    %v2354 = vrot.slane %v2292, %v2353
    %v2355 = vlaneseq
    %v2356 = vshrl.u32 %v2355, 7
    %v2357 = vsub.s32 0, %v2356
    %v2358 = vrot.slane %v2294, %v2357
    %2359 = vrot.lane.b32.xlu0 %v2298, 64
    %v2360 = vpop.permute.xlu0 %2359
    %2361 = vrot.lane.b32.xlu0 %v2302, 64
    %v2362 = vpop.permute.xlu0 %2361
    %2363 = vrot.lane.b32.xlu0 %v2306, 64
    %v2364 = vpop.permute.xlu0 %2363
    %2365 = vrot.lane.b32.xlu0 %v2310, 64
    %v2366 = vpop.permute.xlu0 %2365
    %2367 = vrot.lane.b32.xlu0 %v2314, 64
    %v2368 = vpop.permute.xlu0 %2367
    %2369 = vrot.lane.b32.xlu0 %v2318, 64
    %v2370 = vpop.permute.xlu0 %2369
    %2371 = vrot.lane.b32.xlu0 %v2322, 64
    %v2372 = vpop.permute.xlu0 %2371
    %2373 = vrot.lane.b32.xlu0 %v2326, 64
    %v2374 = vpop.permute.xlu0 %2373
    %2375 = vrot.lane.b32.xlu0 %v2330, 64
    %v2376 = vpop.permute.xlu0 %2375
    %2377 = vrot.lane.b32.xlu0 %v2334, 64
    %v2378 = vpop.permute.xlu0 %2377
    %2379 = vrot.lane.b32.xlu0 %v2338, 64
    %v2380 = vpop.permute.xlu0 %2379
    %2381 = vrot.lane.b32.xlu0 %v2342, 64
    %v2382 = vpop.permute.xlu0 %2381
    %2383 = vrot.lane.b32.xlu0 %v2346, 64
    %v2384 = vpop.permute.xlu0 %2383
    %2385 = vrot.lane.b32.xlu0 %v2350, 64
    %v2386 = vpop.permute.xlu0 %2385
    %2387 = vrot.lane.b32.xlu0 %v2354, 64
    %v2388 = vpop.permute.xlu0 %2387
    %2389 = vrot.lane.b32.xlu0 %v2358, 64
    %v2390 = vpop.permute.xlu0 %2389
    %2407 = vst.msk [vmem:[#allocation2 + $0x3] sm:$0x1] %vm1011, %v2360
    %2408 = vst.msk [vmem:[#allocation2 + $0xb] sm:$0x1] %vm1011, %v2362
    %2409 = vst.msk [vmem:[#allocation2 + $0x13] sm:$0x1] %vm1011, %v2364
    %2410 = vst.msk [vmem:[#allocation2 + $0x1b] sm:$0x1] %vm1011, %v2366
    %2411 = vst.msk [vmem:[#allocation2 + $0x23] sm:$0x1] %vm1011, %v2368
    %2412 = vst.msk [vmem:[#allocation2 + $0x2b] sm:$0x1] %vm1011, %v2370
    %2413 = vst.msk [vmem:[#allocation2 + $0x33] sm:$0x1] %vm1011, %v2372
    %2414 = vst.msk [vmem:[#allocation2 + $0x3b] sm:$0x1] %vm1011, %v2374
    %2415 = vst.msk [vmem:[#allocation2 + $0x43] sm:$0x1] %vm1011, %v2376
    %2416 = vst.msk [vmem:[#allocation2 + $0x4b] sm:$0x1] %vm1011, %v2378
    %2417 = vst.msk [vmem:[#allocation2 + $0x53] sm:$0x1] %vm1011, %v2380
    %2418 = vst.msk [vmem:[#allocation2 + $0x5b] sm:$0x1] %vm1011, %v2382
    %2419 = vst.msk [vmem:[#allocation2 + $0x63] sm:$0x1] %vm1011, %v2384
    %2420 = vst.msk [vmem:[#allocation2 + $0x6b] sm:$0x1] %vm1011, %v2386
    %2421 = vst.msk [vmem:[#allocation2 + $0x73] sm:$0x1] %vm1011, %v2388
    %2422 = vst.msk [vmem:[#allocation2 + $0x7b] sm:$0x1] %vm1011, %v2390
    %v2423 = vpack.c.bf16 %v2194, %v2193
    %v2424 = vpack.c.bf16 %v2146, %v2145
    %2426 = vrot.lane.b32.xlu0 %v2424, 64
    %v2427 = vpop.permute.xlu0 %2426
    %v2429 = vsel %vm216, %v2427, 0
    %2431 = vmatprep.subr.bf16.mxu0 0
    %2432 = vmatpush1.bf16.msra.mxu0 %v441
    %2433 = vmatprep.subr.bf16.mxu0 0
    %2434 = vmatpush1.bf16.msra.mxu0 %v442
    %2435 = vmatprep.subr.bf16.mxu0 0
    %2436 = vmatpush1.bf16.msra.mxu0 0
    %2437 = vmatprep.subr.bf16.mxu0 0
    %2438 = vmatpush1.bf16.msra.mxu0 0
    %2439 = vmatprep.subr.bf16.mxu0 0
    %2440 = vmatpush1.bf16.msra.mxu0 0
    %2441 = vmatprep.subr.bf16.mxu0 0
    %2442 = vmatpush1.bf16.msra.mxu0 0
    %2443 = vmatprep.subr.bf16.mxu0 0
    %2444 = vmatpush1.bf16.msra.mxu0 0
    %2445 = vmatprep.subr.bf16.mxu0 0
    %2446 = vmatpush1.bf16.msra.mxu0 0
    %2447 = vmatprep.subr.bf16.mxu0 0
    %2448 = vmatpush1.bf16.msra.mxu0 0
    %2449 = vmatprep.subr.bf16.mxu0 0
    %2450 = vmatpush1.bf16.msra.mxu0 0
    %2451 = vmatprep.subr.bf16.mxu0 0
    %2452 = vmatpush1.bf16.msra.mxu0 0
    %2453 = vmatprep.subr.bf16.mxu0 0
    %2454 = vmatpush1.bf16.msra.mxu0 0
    %2455 = vmatprep.subr.bf16.mxu0 0
    %2456 = vmatpush1.bf16.msra.mxu0 0
    %2457 = vmatprep.subr.bf16.mxu0 0
    %2458 = vmatpush1.bf16.msra.mxu0 0
    %2459 = vmatprep.subr.bf16.mxu0 0
    %2460 = vmatpush1.bf16.msra.mxu0 0
    %2461 = vmatprep.subr.bf16.mxu0 0
    %2462 = vmatpush1.bf16.msra.mxu0 0
    %2463 = vmatprep.mubr.bf16.mxu0 0
    %2464 = vmatmul.mubr.bf16.gmra.mrb[0].mxu0 %v2429
    %v2465 = vpop.f32.mrb[0].mxu0
    %v2466 = vadd.f32 0.0, %v2465
    %v2467 = vpop.f32.mrb[0].mxu0
    %v2468 = vpop.f32.mrb[0].mxu0
    %v2469 = vadd.f32 0.0, %v2468
    %v2470 = vpop.f32.mrb[0].mxu0
    %2471 = vdwg.mxu0
    %v2472 = vadd.f32 %v398, %v2466
    %v2473 = vadd.f32 %v401, %v2469
    %2475 = vrot.lane.b32.xlu0 %v2423, 64
    %v2476 = vpop.permute.xlu0 %2475
    %v2478 = vsel %vm216, %v2476, 0
    %2480 = vmatprep.subr.bf16.mxu0 0
    %2481 = vmatpush1.bf16.msra.mxu0 %v597
    %2482 = vmatprep.subr.bf16.mxu0 0
    %2483 = vmatpush1.bf16.msra.mxu0 %v598
    %2484 = vmatprep.subr.bf16.mxu0 0
    %2485 = vmatpush1.bf16.msra.mxu0 0
    %2486 = vmatprep.subr.bf16.mxu0 0
    %2487 = vmatpush1.bf16.msra.mxu0 0
    %2488 = vmatprep.subr.bf16.mxu0 0
    %2489 = vmatpush1.bf16.msra.mxu0 0
    %2490 = vmatprep.subr.bf16.mxu0 0
    %2491 = vmatpush1.bf16.msra.mxu0 0
    %2492 = vmatprep.subr.bf16.mxu0 0
    %2493 = vmatpush1.bf16.msra.mxu0 0
    %2494 = vmatprep.subr.bf16.mxu0 0
    %2495 = vmatpush1.bf16.msra.mxu0 0
    %2496 = vmatprep.subr.bf16.mxu0 0
    %2497 = vmatpush1.bf16.msra.mxu0 0
    %2498 = vmatprep.subr.bf16.mxu0 0
    %2499 = vmatpush1.bf16.msra.mxu0 0
    %2500 = vmatprep.subr.bf16.mxu0 0
    %2501 = vmatpush1.bf16.msra.mxu0 0
    %2502 = vmatprep.subr.bf16.mxu0 0
    %2503 = vmatpush1.bf16.msra.mxu0 0
    %2504 = vmatprep.subr.bf16.mxu0 0
    %2505 = vmatpush1.bf16.msra.mxu0 0
    %2506 = vmatprep.subr.bf16.mxu0 0
    %2507 = vmatpush1.bf16.msra.mxu0 0
    %2508 = vmatprep.subr.bf16.mxu0 0
    %2509 = vmatpush1.bf16.msra.mxu0 0
    %2510 = vmatprep.subr.bf16.mxu0 0
    %2511 = vmatpush1.bf16.msra.mxu0 0
    %2512 = vmatprep.mubr.bf16.mxu0 0
    %2513 = vmatmul.mubr.bf16.gmra.mrb[0].mxu0 %v2478
    %v2514 = vpop.f32.mrb[0].mxu0
    %v2515 = vadd.f32 0.0, %v2514
    %v2516 = vpop.f32.mrb[0].mxu0
    %v2517 = vpop.f32.mrb[0].mxu0
    %v2518 = vadd.f32 0.0, %v2517
    %v2519 = vpop.f32.mrb[0].mxu0
    %2520 = vdwg.mxu0
    %2521 = vmatprep.subr.bf16.mxu0 0
    %2522 = vmatpush1.bf16.msra.mxu0 %v650
    %2523 = vmatprep.subr.bf16.mxu0 0
    %2524 = vmatpush1.bf16.msra.mxu0 %v651
    %2525 = vmatprep.subr.bf16.mxu0 0
    %2526 = vmatpush1.bf16.msra.mxu0 0
    %2527 = vmatprep.subr.bf16.mxu0 0
    %2528 = vmatpush1.bf16.msra.mxu0 0
    %2529 = vmatprep.subr.bf16.mxu0 0
    %2530 = vmatpush1.bf16.msra.mxu0 0
    %2531 = vmatprep.subr.bf16.mxu0 0
    %2532 = vmatpush1.bf16.msra.mxu0 0
    %2533 = vmatprep.subr.bf16.mxu0 0
    %2534 = vmatpush1.bf16.msra.mxu0 0
    %2535 = vmatprep.subr.bf16.mxu0 0
    %2536 = vmatpush1.bf16.msra.mxu0 0
    %2537 = vmatprep.subr.bf16.mxu0 0
    %2538 = vmatpush1.bf16.msra.mxu0 0
    %2539 = vmatprep.subr.bf16.mxu0 0
    %2540 = vmatpush1.bf16.msra.mxu0 0
    %2541 = vmatprep.subr.bf16.mxu0 0
    %2542 = vmatpush1.bf16.msra.mxu0 0
    %2543 = vmatprep.subr.bf16.mxu0 0
    %2544 = vmatpush1.bf16.msra.mxu0 0
    %2545 = vmatprep.subr.bf16.mxu0 0
    %2546 = vmatpush1.bf16.msra.mxu0 0
    %2547 = vmatprep.subr.bf16.mxu0 0
    %2548 = vmatpush1.bf16.msra.mxu0 0
    %2549 = vmatprep.subr.bf16.mxu0 0
    %2550 = vmatpush1.bf16.msra.mxu0 0
    %2551 = vmatprep.subr.bf16.mxu0 0
    %2552 = vmatpush1.bf16.msra.mxu0 0
    %2553 = vmatprep.mubr.bf16.mxu0 0
    %2554 = vmatmul.mubr.bf16.gmra.mrb[0].mxu0 %v2429
    %v2555 = vpop.f32.mrb[0].mxu0
    %v2556 = vadd.f32 %v2515, %v2555
    %v2557 = vpop.f32.mrb[0].mxu0
    %v2558 = vpop.f32.mrb[0].mxu0
    %v2559 = vadd.f32 %v2518, %v2558
    %v2560 = vpop.f32.mrb[0].mxu0
    %2561 = vdwg.mxu0
    %v2562 = vadd.f32 %v2556, %v699
    %v2563 = vadd.f32 %v2559, %v699
    %v2564 = vxor.u32 %v2472, 2147483648
    %v2565 = vxor.u32 %v2473, 2147483648
    %v2566 = vmul.f32 %v2564, 1.442695
    %v2567 = vpow.pop %v2566
    %v2568 = vmul.f32 %v2565, 1.442695
    %v2569 = vpow.pop %v2568
    %v2570 = vadd.f32 %v2567, 1.0
    %v2571 = vadd.f32 %v2569, 1.0
    %v2572 = vrcp.pop %v2570
    %v2573 = vmul.f32 1.0, %v2572
    %v2574 = vrcp.pop %v2571
    %v2575 = vmul.f32 1.0, %v2574
    %v2576 = vtanh.pop %v2472
    %v2577 = vtanh.pop %v2473
    %v2578 = vmul.f32 %v2573, %v2133
    %v2579 = vmul.f32 %v2575, %v2134
    %2582 = vrot.lane.b32.xlu0 %v2576, 32
    %v2583 = vpop.permute.xlu0 %2582
    %2584 = vrot.lane.b32.xlu0 %v2577, 32
    %v2585 = vpop.permute.xlu0 %2584
    %v2588 = vmul.f32 %v2573, %v2583
    %v2589 = vmul.f32 %v2575, %v2585
    %2592 = vrot.lane.b32.xlu0 %v2588, 32
    %v2593 = vpop.permute.xlu0 %2592
    %2594 = vrot.lane.b32.xlu0 %v2589, 32
    %v2595 = vpop.permute.xlu0 %2594
    %v2598 = vadd.f32 %v2578, %v2593
    %v2599 = vadd.f32 %v2579, %v2595
    %v2600 = vtanh.pop %v2598
    %v2601 = vtanh.pop %v2599
    %2604 = vrot.lane.b32.xlu0 %v2600, 32
    %v2605 = vpop.permute.xlu0 %2604
    %2606 = vrot.lane.b32.xlu0 %v2601, 32
    %v2607 = vpop.permute.xlu0 %2606
    %v2610 = vmul.f32 %v2573, %v2605
    %v2611 = vmul.f32 %v2575, %v2607
    %v2612 = vxor.u32 %v2562, 2147483648
    %v2613 = vxor.u32 %v2563, 2147483648
    %v2614 = vmul.f32 %v2612, 1.442695
    %v2615 = vpow.pop %v2614
    %v2616 = vmul.f32 %v2613, 1.442695
    %v2617 = vpow.pop %v2616
    %v2618 = vadd.f32 %v2615, 1.0
    %v2619 = vadd.f32 %v2617, 1.0
    %v2620 = vrcp.pop %v2618
    %v2621 = vmul.f32 1.0, %v2620
    %v2622 = vrcp.pop %v2619
    %v2623 = vmul.f32 1.0, %v2622
    %v2624 = vtanh.pop %v2562
    %v2625 = vtanh.pop %v2563
    %v2626 = vmul.f32 %v2621, %v2181
    %v2627 = vmul.f32 %v2623, %v2182
    %2630 = vrot.lane.b32.xlu0 %v2624, 32
    %v2631 = vpop.permute.xlu0 %2630
    %2632 = vrot.lane.b32.xlu0 %v2625, 32
    %v2633 = vpop.permute.xlu0 %2632
    %v2636 = vmul.f32 %v2621, %v2631
    %v2637 = vmul.f32 %v2623, %v2633
    %2640 = vrot.lane.b32.xlu0 %v2636, 32
    %v2641 = vpop.permute.xlu0 %2640
    %2642 = vrot.lane.b32.xlu0 %v2637, 32
    %v2643 = vpop.permute.xlu0 %2642
    %v2646 = vadd.f32 %v2626, %v2641
    %v2647 = vadd.f32 %v2627, %v2643
    %v2648 = vtanh.pop %v2646
    %v2649 = vtanh.pop %v2647
    %2652 = vrot.lane.b32.xlu0 %v2648, 32
    %v2653 = vpop.permute.xlu0 %2652
    %2654 = vrot.lane.b32.xlu0 %v2649, 32
    %v2655 = vpop.permute.xlu0 %2654
    %v2658 = vmul.f32 %v2621, %v2653
    %v2659 = vmul.f32 %v2623, %v2655
    %v2662 = vcombine.high %v2658, %v2658
    %v2664 = vunpack.c.l.s4 1966171168
    %v2665 = vunpack.c.0.s8 %v2664
    %v2666 = vlaneseq
    %v2667 = vshrl.u32 %v2666, 7
    %v2668 = vsub.s32 %v2665, %v2667
    %v2669 = vrot.slane %v2658, %v2668
    %v2671 = vunpack.c.l.s4 1966171168
    %v2672 = vunpack.c.0.s8 %v2671
    %v2673 = vlaneseq
    %v2674 = vshrl.u32 %v2673, 7
    %v2675 = vsub.s32 %v2672, %v2674
    %v2676 = vrot.slane %v2662, %v2675
    %v2677 = vcombine.high %v2669, %v2669
    %v2678 = vcombine.high %v2676, %v2676
    %v2680 = vunpack.c.l.s4 1966171168
    %v2681 = vunpack.c.0.s8 %v2680
    %v2682 = vlaneseq
    %v2683 = vshrl.u32 %v2682, 7
    %v2684 = vsub.s32 %v2681, %v2683
    %v2685 = vrot.slane %v2669, %v2684
    %v2687 = vunpack.c.l.s4 1966171168
    %v2688 = vunpack.c.0.s8 %v2687
    %v2689 = vlaneseq
    %v2690 = vshrl.u32 %v2689, 7
    %v2691 = vsub.s32 %v2688, %v2690
    %v2692 = vrot.slane %v2676, %v2691
    %v2694 = vunpack.c.l.s4 1966171168
    %v2695 = vunpack.c.0.s8 %v2694
    %v2696 = vlaneseq
    %v2697 = vshrl.u32 %v2696, 7
    %v2698 = vsub.s32 %v2695, %v2697
    %v2699 = vrot.slane %v2677, %v2698
    %v2701 = vunpack.c.l.s4 1966171168
    %v2702 = vunpack.c.0.s8 %v2701
    %v2703 = vlaneseq
    %v2704 = vshrl.u32 %v2703, 7
    %v2705 = vsub.s32 %v2702, %v2704
    %v2706 = vrot.slane %v2678, %v2705
    %v2707 = vcombine.high %v2685, %v2685
    %v2708 = vcombine.high %v2692, %v2692
    %v2709 = vcombine.high %v2699, %v2699
    %v2710 = vcombine.high %v2706, %v2706
    %v2711 = vcombine.high %v2659, %v2659
    %v2713 = vunpack.c.l.s4 1966171168
    %v2714 = vunpack.c.0.s8 %v2713
    %v2715 = vlaneseq
    %v2716 = vshrl.u32 %v2715, 7
    %v2717 = vsub.s32 %v2714, %v2716
    %v2718 = vrot.slane %v2659, %v2717
    %v2720 = vunpack.c.l.s4 1966171168
    %v2721 = vunpack.c.0.s8 %v2720
    %v2722 = vlaneseq
    %v2723 = vshrl.u32 %v2722, 7
    %v2724 = vsub.s32 %v2721, %v2723
    %v2725 = vrot.slane %v2711, %v2724
    %v2726 = vcombine.high %v2718, %v2718
    %v2727 = vcombine.high %v2725, %v2725
    %v2729 = vunpack.c.l.s4 1966171168
    %v2730 = vunpack.c.0.s8 %v2729
    %v2731 = vlaneseq
    %v2732 = vshrl.u32 %v2731, 7
    %v2733 = vsub.s32 %v2730, %v2732
    %v2734 = vrot.slane %v2718, %v2733
    %v2736 = vunpack.c.l.s4 1966171168
    %v2737 = vunpack.c.0.s8 %v2736
    %v2738 = vlaneseq
    %v2739 = vshrl.u32 %v2738, 7
    %v2740 = vsub.s32 %v2737, %v2739
    %v2741 = vrot.slane %v2725, %v2740
    %v2743 = vunpack.c.l.s4 1966171168
    %v2744 = vunpack.c.0.s8 %v2743
    %v2745 = vlaneseq
    %v2746 = vshrl.u32 %v2745, 7
    %v2747 = vsub.s32 %v2744, %v2746
    %v2748 = vrot.slane %v2726, %v2747
    %v2750 = vunpack.c.l.s4 1966171168
    %v2751 = vunpack.c.0.s8 %v2750
    %v2752 = vlaneseq
    %v2753 = vshrl.u32 %v2752, 7
    %v2754 = vsub.s32 %v2751, %v2753
    %v2755 = vrot.slane %v2727, %v2754
    %v2756 = vcombine.high %v2734, %v2734
    %v2757 = vcombine.high %v2741, %v2741
    %v2758 = vcombine.high %v2748, %v2748
    %v2759 = vcombine.high %v2755, %v2755
    %v2760 = vlaneseq
    %v2761 = vshrl.u32 %v2760, 7
    %v2762 = vsub.s32 0, %v2761
    %v2763 = vrot.slane %v2685, %v2762
    %v2764 = vlaneseq
    %v2765 = vshrl.u32 %v2764, 7
    %v2766 = vsub.s32 0, %v2765
    %v2767 = vrot.slane %v2699, %v2766
    %v2768 = vlaneseq
    %v2769 = vshrl.u32 %v2768, 7
    %v2770 = vsub.s32 0, %v2769
    %v2771 = vrot.slane %v2707, %v2770
    %v2772 = vlaneseq
    %v2773 = vshrl.u32 %v2772, 7
    %v2774 = vsub.s32 0, %v2773
    %v2775 = vrot.slane %v2709, %v2774
    %v2776 = vlaneseq
    %v2777 = vshrl.u32 %v2776, 7
    %v2778 = vsub.s32 0, %v2777
    %v2779 = vrot.slane %v2692, %v2778
    %v2780 = vlaneseq
    %v2781 = vshrl.u32 %v2780, 7
    %v2782 = vsub.s32 0, %v2781
    %v2783 = vrot.slane %v2706, %v2782
    %v2784 = vlaneseq
    %v2785 = vshrl.u32 %v2784, 7
    %v2786 = vsub.s32 0, %v2785
    %v2787 = vrot.slane %v2708, %v2786
    %v2788 = vlaneseq
    %v2789 = vshrl.u32 %v2788, 7
    %v2790 = vsub.s32 0, %v2789
    %v2791 = vrot.slane %v2710, %v2790
    %v2792 = vlaneseq
    %v2793 = vshrl.u32 %v2792, 7
    %v2794 = vsub.s32 0, %v2793
    %v2795 = vrot.slane %v2734, %v2794
    %v2796 = vlaneseq
    %v2797 = vshrl.u32 %v2796, 7
    %v2798 = vsub.s32 0, %v2797
    %v2799 = vrot.slane %v2748, %v2798
    %v2800 = vlaneseq
    %v2801 = vshrl.u32 %v2800, 7
    %v2802 = vsub.s32 0, %v2801
    %v2803 = vrot.slane %v2756, %v2802
    %v2804 = vlaneseq
    %v2805 = vshrl.u32 %v2804, 7
    %v2806 = vsub.s32 0, %v2805
    %v2807 = vrot.slane %v2758, %v2806
    %v2808 = vlaneseq
    %v2809 = vshrl.u32 %v2808, 7
    %v2810 = vsub.s32 0, %v2809
    %v2811 = vrot.slane %v2741, %v2810
    %v2812 = vlaneseq
    %v2813 = vshrl.u32 %v2812, 7
    %v2814 = vsub.s32 0, %v2813
    %v2815 = vrot.slane %v2755, %v2814
    %v2816 = vlaneseq
    %v2817 = vshrl.u32 %v2816, 7
    %v2818 = vsub.s32 0, %v2817
    %v2819 = vrot.slane %v2757, %v2818
    %v2820 = vlaneseq
    %v2821 = vshrl.u32 %v2820, 7
    %v2822 = vsub.s32 0, %v2821
    %v2823 = vrot.slane %v2759, %v2822
    %2824 = vrot.lane.b32.xlu0 %v2763, 64
    %v2825 = vpop.permute.xlu0 %2824
    %2826 = vrot.lane.b32.xlu0 %v2767, 64
    %v2827 = vpop.permute.xlu0 %2826
    %2828 = vrot.lane.b32.xlu0 %v2771, 64
    %v2829 = vpop.permute.xlu0 %2828
    %2830 = vrot.lane.b32.xlu0 %v2775, 64
    %v2831 = vpop.permute.xlu0 %2830
    %2832 = vrot.lane.b32.xlu0 %v2779, 64
    %v2833 = vpop.permute.xlu0 %2832
    %2834 = vrot.lane.b32.xlu0 %v2783, 64
    %v2835 = vpop.permute.xlu0 %2834
    %2836 = vrot.lane.b32.xlu0 %v2787, 64
    %v2837 = vpop.permute.xlu0 %2836
    %2838 = vrot.lane.b32.xlu0 %v2791, 64
    %v2839 = vpop.permute.xlu0 %2838
    %2840 = vrot.lane.b32.xlu0 %v2795, 64
    %v2841 = vpop.permute.xlu0 %2840
    %2842 = vrot.lane.b32.xlu0 %v2799, 64
    %v2843 = vpop.permute.xlu0 %2842
    %2844 = vrot.lane.b32.xlu0 %v2803, 64
    %v2845 = vpop.permute.xlu0 %2844
    %2846 = vrot.lane.b32.xlu0 %v2807, 64
    %v2847 = vpop.permute.xlu0 %2846
    %2848 = vrot.lane.b32.xlu0 %v2811, 64
    %v2849 = vpop.permute.xlu0 %2848
    %2850 = vrot.lane.b32.xlu0 %v2815, 64
    %v2851 = vpop.permute.xlu0 %2850
    %2852 = vrot.lane.b32.xlu0 %v2819, 64
    %v2853 = vpop.permute.xlu0 %2852
    %2854 = vrot.lane.b32.xlu0 %v2823, 64
    %v2855 = vpop.permute.xlu0 %2854
    %2872 = vst.msk [vmem:[#allocation2 + $0x4] sm:$0x1] %vm1011, %v2825
    %2873 = vst.msk [vmem:[#allocation2 + $0xc] sm:$0x1] %vm1011, %v2827
    %2874 = vst.msk [vmem:[#allocation2 + $0x14] sm:$0x1] %vm1011, %v2829
    %2875 = vst.msk [vmem:[#allocation2 + $0x1c] sm:$0x1] %vm1011, %v2831
    %2876 = vst.msk [vmem:[#allocation2 + $0x24] sm:$0x1] %vm1011, %v2833
    %2877 = vst.msk [vmem:[#allocation2 + $0x2c] sm:$0x1] %vm1011, %v2835
    %2878 = vst.msk [vmem:[#allocation2 + $0x34] sm:$0x1] %vm1011, %v2837
    %2879 = vst.msk [vmem:[#allocation2 + $0x3c] sm:$0x1] %vm1011, %v2839
    %2880 = vst.msk [vmem:[#allocation2 + $0x44] sm:$0x1] %vm1011, %v2841
    %2881 = vst.msk [vmem:[#allocation2 + $0x4c] sm:$0x1] %vm1011, %v2843
    %2882 = vst.msk [vmem:[#allocation2 + $0x54] sm:$0x1] %vm1011, %v2845
    %2883 = vst.msk [vmem:[#allocation2 + $0x5c] sm:$0x1] %vm1011, %v2847
    %2884 = vst.msk [vmem:[#allocation2 + $0x64] sm:$0x1] %vm1011, %v2849
    %2885 = vst.msk [vmem:[#allocation2 + $0x6c] sm:$0x1] %vm1011, %v2851
    %2886 = vst.msk [vmem:[#allocation2 + $0x74] sm:$0x1] %vm1011, %v2853
    %2887 = vst.msk [vmem:[#allocation2 + $0x7c] sm:$0x1] %vm1011, %v2855
    %v2888 = vpack.c.bf16 %v2659, %v2658
    %v2889 = vpack.c.bf16 %v2611, %v2610
    %2891 = vrot.lane.b32.xlu0 %v2889, 64
    %v2892 = vpop.permute.xlu0 %2891
    %v2894 = vsel %vm216, %v2892, 0
    %2896 = vmatprep.subr.bf16.mxu0 0
    %2897 = vmatpush1.bf16.msra.mxu0 %v441
    %2898 = vmatprep.subr.bf16.mxu0 0
    %2899 = vmatpush1.bf16.msra.mxu0 %v442
    %2900 = vmatprep.subr.bf16.mxu0 0
    %2901 = vmatpush1.bf16.msra.mxu0 0
    %2902 = vmatprep.subr.bf16.mxu0 0
    %2903 = vmatpush1.bf16.msra.mxu0 0
    %2904 = vmatprep.subr.bf16.mxu0 0
    %2905 = vmatpush1.bf16.msra.mxu0 0
    %2906 = vmatprep.subr.bf16.mxu0 0
    %2907 = vmatpush1.bf16.msra.mxu0 0
    %2908 = vmatprep.subr.bf16.mxu0 0
    %2909 = vmatpush1.bf16.msra.mxu0 0
    %2910 = vmatprep.subr.bf16.mxu0 0
    %2911 = vmatpush1.bf16.msra.mxu0 0
    %2912 = vmatprep.subr.bf16.mxu0 0
    %2913 = vmatpush1.bf16.msra.mxu0 0
    %2914 = vmatprep.subr.bf16.mxu0 0
    %2915 = vmatpush1.bf16.msra.mxu0 0
    %2916 = vmatprep.subr.bf16.mxu0 0
    %2917 = vmatpush1.bf16.msra.mxu0 0
    %2918 = vmatprep.subr.bf16.mxu0 0
    %2919 = vmatpush1.bf16.msra.mxu0 0
    %2920 = vmatprep.subr.bf16.mxu0 0
    %2921 = vmatpush1.bf16.msra.mxu0 0
    %2922 = vmatprep.subr.bf16.mxu0 0
    %2923 = vmatpush1.bf16.msra.mxu0 0
    %2924 = vmatprep.subr.bf16.mxu0 0
    %2925 = vmatpush1.bf16.msra.mxu0 0
    %2926 = vmatprep.subr.bf16.mxu0 0
    %2927 = vmatpush1.bf16.msra.mxu0 0
    %2928 = vmatprep.mubr.bf16.mxu0 0
    %2929 = vmatmul.mubr.bf16.gmra.mrb[0].mxu0 %v2894
    %v2930 = vpop.f32.mrb[0].mxu0
    %v2931 = vadd.f32 0.0, %v2930
    %v2932 = vpop.f32.mrb[0].mxu0
    %v2933 = vpop.f32.mrb[0].mxu0
    %v2934 = vadd.f32 0.0, %v2933
    %v2935 = vpop.f32.mrb[0].mxu0
    %2936 = vdwg.mxu0
    %v2937 = vadd.f32 %v406, %v2931
    %v2938 = vadd.f32 %v409, %v2934
    %2940 = vrot.lane.b32.xlu0 %v2888, 64
    %v2941 = vpop.permute.xlu0 %2940
    %v2943 = vsel %vm216, %v2941, 0
    %2945 = vmatprep.subr.bf16.mxu0 0
    %2946 = vmatpush1.bf16.msra.mxu0 %v597
    %2947 = vmatprep.subr.bf16.mxu0 0
    %2948 = vmatpush1.bf16.msra.mxu0 %v598
    %2949 = vmatprep.subr.bf16.mxu0 0
    %2950 = vmatpush1.bf16.msra.mxu0 0
    %2951 = vmatprep.subr.bf16.mxu0 0
    %2952 = vmatpush1.bf16.msra.mxu0 0
    %2953 = vmatprep.subr.bf16.mxu0 0
    %2954 = vmatpush1.bf16.msra.mxu0 0
    %2955 = vmatprep.subr.bf16.mxu0 0
    %2956 = vmatpush1.bf16.msra.mxu0 0
    %2957 = vmatprep.subr.bf16.mxu0 0
    %2958 = vmatpush1.bf16.msra.mxu0 0
    %2959 = vmatprep.subr.bf16.mxu0 0
    %2960 = vmatpush1.bf16.msra.mxu0 0
    %2961 = vmatprep.subr.bf16.mxu0 0
    %2962 = vmatpush1.bf16.msra.mxu0 0
    %2963 = vmatprep.subr.bf16.mxu0 0
    %2964 = vmatpush1.bf16.msra.mxu0 0
    %2965 = vmatprep.subr.bf16.mxu0 0
    %2966 = vmatpush1.bf16.msra.mxu0 0
    %2967 = vmatprep.subr.bf16.mxu0 0
    %2968 = vmatpush1.bf16.msra.mxu0 0
    %2969 = vmatprep.subr.bf16.mxu0 0
    %2970 = vmatpush1.bf16.msra.mxu0 0
    %2971 = vmatprep.subr.bf16.mxu0 0
    %2972 = vmatpush1.bf16.msra.mxu0 0
    %2973 = vmatprep.subr.bf16.mxu0 0
    %2974 = vmatpush1.bf16.msra.mxu0 0
    %2975 = vmatprep.subr.bf16.mxu0 0
    %2976 = vmatpush1.bf16.msra.mxu0 0
    %2977 = vmatprep.mubr.bf16.mxu0 0
    %2978 = vmatmul.mubr.bf16.gmra.mrb[0].mxu0 %v2943
    %v2979 = vpop.f32.mrb[0].mxu0
    %v2980 = vadd.f32 0.0, %v2979
    %v2981 = vpop.f32.mrb[0].mxu0
    %v2982 = vpop.f32.mrb[0].mxu0
    %v2983 = vadd.f32 0.0, %v2982
    %v2984 = vpop.f32.mrb[0].mxu0
    %2985 = vdwg.mxu0
    %2986 = vmatprep.subr.bf16.mxu0 0
    %2987 = vmatpush1.bf16.msra.mxu0 %v650
    %2988 = vmatprep.subr.bf16.mxu0 0
    %2989 = vmatpush1.bf16.msra.mxu0 %v651
    %2990 = vmatprep.subr.bf16.mxu0 0
    %2991 = vmatpush1.bf16.msra.mxu0 0
    %2992 = vmatprep.subr.bf16.mxu0 0
    %2993 = vmatpush1.bf16.msra.mxu0 0
    %2994 = vmatprep.subr.bf16.mxu0 0
    %2995 = vmatpush1.bf16.msra.mxu0 0
    %2996 = vmatprep.subr.bf16.mxu0 0
    %2997 = vmatpush1.bf16.msra.mxu0 0
    %2998 = vmatprep.subr.bf16.mxu0 0
    %2999 = vmatpush1.bf16.msra.mxu0 0
    %3000 = vmatprep.subr.bf16.mxu0 0
    %3001 = vmatpush1.bf16.msra.mxu0 0
    %3002 = vmatprep.subr.bf16.mxu0 0
    %3003 = vmatpush1.bf16.msra.mxu0 0
    %3004 = vmatprep.subr.bf16.mxu0 0
    %3005 = vmatpush1.bf16.msra.mxu0 0
    %3006 = vmatprep.subr.bf16.mxu0 0
    %3007 = vmatpush1.bf16.msra.mxu0 0
    %3008 = vmatprep.subr.bf16.mxu0 0
    %3009 = vmatpush1.bf16.msra.mxu0 0
    %3010 = vmatprep.subr.bf16.mxu0 0
    %3011 = vmatpush1.bf16.msra.mxu0 0
    %3012 = vmatprep.subr.bf16.mxu0 0
    %3013 = vmatpush1.bf16.msra.mxu0 0
    %3014 = vmatprep.subr.bf16.mxu0 0
    %3015 = vmatpush1.bf16.msra.mxu0 0
    %3016 = vmatprep.subr.bf16.mxu0 0
    %3017 = vmatpush1.bf16.msra.mxu0 0
    %3018 = vmatprep.mubr.bf16.mxu0 0
    %3019 = vmatmul.mubr.bf16.gmra.mrb[0].mxu0 %v2894
    %v3020 = vpop.f32.mrb[0].mxu0
    %v3021 = vadd.f32 %v2980, %v3020
    %v3022 = vpop.f32.mrb[0].mxu0
    %v3023 = vpop.f32.mrb[0].mxu0
    %v3024 = vadd.f32 %v2983, %v3023
    %v3025 = vpop.f32.mrb[0].mxu0
    %3026 = vdwg.mxu0
    %v3027 = vadd.f32 %v3021, %v699
    %v3028 = vadd.f32 %v3024, %v699
    %v3029 = vxor.u32 %v2937, 2147483648
    %v3030 = vxor.u32 %v2938, 2147483648
    %v3031 = vmul.f32 %v3029, 1.442695
    %v3032 = vpow.pop %v3031
    %v3033 = vmul.f32 %v3030, 1.442695
    %v3034 = vpow.pop %v3033
    %v3035 = vadd.f32 %v3032, 1.0
    %v3036 = vadd.f32 %v3034, 1.0
    %v3037 = vrcp.pop %v3035
    %v3038 = vmul.f32 1.0, %v3037
    %v3039 = vrcp.pop %v3036
    %v3040 = vmul.f32 1.0, %v3039
    %v3041 = vtanh.pop %v2937
    %v3042 = vtanh.pop %v2938
    %v3043 = vmul.f32 %v3038, %v2598
    %v3044 = vmul.f32 %v3040, %v2599
    %3047 = vrot.lane.b32.xlu0 %v3041, 32
    %v3048 = vpop.permute.xlu0 %3047
    %3049 = vrot.lane.b32.xlu0 %v3042, 32
    %v3050 = vpop.permute.xlu0 %3049
    %v3053 = vmul.f32 %v3038, %v3048
    %v3054 = vmul.f32 %v3040, %v3050
    %3057 = vrot.lane.b32.xlu0 %v3053, 32
    %v3058 = vpop.permute.xlu0 %3057
    %3059 = vrot.lane.b32.xlu0 %v3054, 32
    %v3060 = vpop.permute.xlu0 %3059
    %v3063 = vadd.f32 %v3043, %v3058
    %v3064 = vadd.f32 %v3044, %v3060
    %v3065 = vtanh.pop %v3063
    %v3066 = vtanh.pop %v3064
    %3069 = vrot.lane.b32.xlu0 %v3065, 32
    %v3070 = vpop.permute.xlu0 %3069
    %3071 = vrot.lane.b32.xlu0 %v3066, 32
    %v3072 = vpop.permute.xlu0 %3071
    %v3075 = vmul.f32 %v3038, %v3070
    %v3076 = vmul.f32 %v3040, %v3072
    %v3077 = vxor.u32 %v3027, 2147483648
    %v3078 = vxor.u32 %v3028, 2147483648
    %v3079 = vmul.f32 %v3077, 1.442695
    %v3080 = vpow.pop %v3079
    %v3081 = vmul.f32 %v3078, 1.442695
    %v3082 = vpow.pop %v3081
    %v3083 = vadd.f32 %v3080, 1.0
    %v3084 = vadd.f32 %v3082, 1.0
    %v3085 = vrcp.pop %v3083
    %v3086 = vmul.f32 1.0, %v3085
    %v3087 = vrcp.pop %v3084
    %v3088 = vmul.f32 1.0, %v3087
    %v3089 = vtanh.pop %v3027
    %v3090 = vtanh.pop %v3028
    %v3091 = vmul.f32 %v3086, %v2646
    %v3092 = vmul.f32 %v3088, %v2647
    %3095 = vrot.lane.b32.xlu0 %v3089, 32
    %v3096 = vpop.permute.xlu0 %3095
    %3097 = vrot.lane.b32.xlu0 %v3090, 32
    %v3098 = vpop.permute.xlu0 %3097
    %v3101 = vmul.f32 %v3086, %v3096
    %v3102 = vmul.f32 %v3088, %v3098
    %3105 = vrot.lane.b32.xlu0 %v3101, 32
    %v3106 = vpop.permute.xlu0 %3105
    %3107 = vrot.lane.b32.xlu0 %v3102, 32
    %v3108 = vpop.permute.xlu0 %3107
    %v3111 = vadd.f32 %v3091, %v3106
    %v3112 = vadd.f32 %v3092, %v3108
    %v3113 = vtanh.pop %v3111
    %v3114 = vtanh.pop %v3112
    %3117 = vrot.lane.b32.xlu0 %v3113, 32
    %v3118 = vpop.permute.xlu0 %3117
    %3119 = vrot.lane.b32.xlu0 %v3114, 32
    %v3120 = vpop.permute.xlu0 %3119
    %v3123 = vmul.f32 %v3086, %v3118
    %v3124 = vmul.f32 %v3088, %v3120
    %v3127 = vcombine.high %v3123, %v3123
    %v3129 = vunpack.c.l.s4 1966171168
    %v3130 = vunpack.c.0.s8 %v3129
    %v3131 = vlaneseq
    %v3132 = vshrl.u32 %v3131, 7
    %v3133 = vsub.s32 %v3130, %v3132
    %v3134 = vrot.slane %v3123, %v3133
    %v3136 = vunpack.c.l.s4 1966171168
    %v3137 = vunpack.c.0.s8 %v3136
    %v3138 = vlaneseq
    %v3139 = vshrl.u32 %v3138, 7
    %v3140 = vsub.s32 %v3137, %v3139
    %v3141 = vrot.slane %v3127, %v3140
    %v3142 = vcombine.high %v3134, %v3134
    %v3143 = vcombine.high %v3141, %v3141
    %v3145 = vunpack.c.l.s4 1966171168
    %v3146 = vunpack.c.0.s8 %v3145
    %v3147 = vlaneseq
    %v3148 = vshrl.u32 %v3147, 7
    %v3149 = vsub.s32 %v3146, %v3148
    %v3150 = vrot.slane %v3134, %v3149
    %v3152 = vunpack.c.l.s4 1966171168
    %v3153 = vunpack.c.0.s8 %v3152
    %v3154 = vlaneseq
    %v3155 = vshrl.u32 %v3154, 7
    %v3156 = vsub.s32 %v3153, %v3155
    %v3157 = vrot.slane %v3141, %v3156
    %v3159 = vunpack.c.l.s4 1966171168
    %v3160 = vunpack.c.0.s8 %v3159
    %v3161 = vlaneseq
    %v3162 = vshrl.u32 %v3161, 7
    %v3163 = vsub.s32 %v3160, %v3162
    %v3164 = vrot.slane %v3142, %v3163
    %v3166 = vunpack.c.l.s4 1966171168
    %v3167 = vunpack.c.0.s8 %v3166
    %v3168 = vlaneseq
    %v3169 = vshrl.u32 %v3168, 7
    %v3170 = vsub.s32 %v3167, %v3169
    %v3171 = vrot.slane %v3143, %v3170
    %v3172 = vcombine.high %v3150, %v3150
    %v3173 = vcombine.high %v3157, %v3157
    %v3174 = vcombine.high %v3164, %v3164
    %v3175 = vcombine.high %v3171, %v3171
    %v3176 = vcombine.high %v3124, %v3124
    %v3178 = vunpack.c.l.s4 1966171168
    %v3179 = vunpack.c.0.s8 %v3178
    %v3180 = vlaneseq
    %v3181 = vshrl.u32 %v3180, 7
    %v3182 = vsub.s32 %v3179, %v3181
    %v3183 = vrot.slane %v3124, %v3182
    %v3185 = vunpack.c.l.s4 1966171168
    %v3186 = vunpack.c.0.s8 %v3185
    %v3187 = vlaneseq
    %v3188 = vshrl.u32 %v3187, 7
    %v3189 = vsub.s32 %v3186, %v3188
    %v3190 = vrot.slane %v3176, %v3189
    %v3191 = vcombine.high %v3183, %v3183
    %v3192 = vcombine.high %v3190, %v3190
    %v3194 = vunpack.c.l.s4 1966171168
    %v3195 = vunpack.c.0.s8 %v3194
    %v3196 = vlaneseq
    %v3197 = vshrl.u32 %v3196, 7
    %v3198 = vsub.s32 %v3195, %v3197
    %v3199 = vrot.slane %v3183, %v3198
    %v3201 = vunpack.c.l.s4 1966171168
    %v3202 = vunpack.c.0.s8 %v3201
    %v3203 = vlaneseq
    %v3204 = vshrl.u32 %v3203, 7
    %v3205 = vsub.s32 %v3202, %v3204
    %v3206 = vrot.slane %v3190, %v3205
    %v3208 = vunpack.c.l.s4 1966171168
    %v3209 = vunpack.c.0.s8 %v3208
    %v3210 = vlaneseq
    %v3211 = vshrl.u32 %v3210, 7
    %v3212 = vsub.s32 %v3209, %v3211
    %v3213 = vrot.slane %v3191, %v3212
    %v3215 = vunpack.c.l.s4 1966171168
    %v3216 = vunpack.c.0.s8 %v3215
    %v3217 = vlaneseq
    %v3218 = vshrl.u32 %v3217, 7
    %v3219 = vsub.s32 %v3216, %v3218
    %v3220 = vrot.slane %v3192, %v3219
    %v3221 = vcombine.high %v3199, %v3199
    %v3222 = vcombine.high %v3206, %v3206
    %v3223 = vcombine.high %v3213, %v3213
    %v3224 = vcombine.high %v3220, %v3220
    %v3225 = vlaneseq
    %v3226 = vshrl.u32 %v3225, 7
    %v3227 = vsub.s32 0, %v3226
    %v3228 = vrot.slane %v3150, %v3227
    %v3229 = vlaneseq
    %v3230 = vshrl.u32 %v3229, 7
    %v3231 = vsub.s32 0, %v3230
    %v3232 = vrot.slane %v3164, %v3231
    %v3233 = vlaneseq
    %v3234 = vshrl.u32 %v3233, 7
    %v3235 = vsub.s32 0, %v3234
    %v3236 = vrot.slane %v3172, %v3235
    %v3237 = vlaneseq
    %v3238 = vshrl.u32 %v3237, 7
    %v3239 = vsub.s32 0, %v3238
    %v3240 = vrot.slane %v3174, %v3239
    %v3241 = vlaneseq
    %v3242 = vshrl.u32 %v3241, 7
    %v3243 = vsub.s32 0, %v3242
    %v3244 = vrot.slane %v3157, %v3243
    %v3245 = vlaneseq
    %v3246 = vshrl.u32 %v3245, 7
    %v3247 = vsub.s32 0, %v3246
    %v3248 = vrot.slane %v3171, %v3247
    %v3249 = vlaneseq
    %v3250 = vshrl.u32 %v3249, 7
    %v3251 = vsub.s32 0, %v3250
    %v3252 = vrot.slane %v3173, %v3251
    %v3253 = vlaneseq
    %v3254 = vshrl.u32 %v3253, 7
    %v3255 = vsub.s32 0, %v3254
    %v3256 = vrot.slane %v3175, %v3255
    %v3257 = vlaneseq
    %v3258 = vshrl.u32 %v3257, 7
    %v3259 = vsub.s32 0, %v3258
    %v3260 = vrot.slane %v3199, %v3259
    %v3261 = vlaneseq
    %v3262 = vshrl.u32 %v3261, 7
    %v3263 = vsub.s32 0, %v3262
    %v3264 = vrot.slane %v3213, %v3263
    %v3265 = vlaneseq
    %v3266 = vshrl.u32 %v3265, 7
    %v3267 = vsub.s32 0, %v3266
    %v3268 = vrot.slane %v3221, %v3267
    %v3269 = vlaneseq
    %v3270 = vshrl.u32 %v3269, 7
    %v3271 = vsub.s32 0, %v3270
    %v3272 = vrot.slane %v3223, %v3271
    %v3273 = vlaneseq
    %v3274 = vshrl.u32 %v3273, 7
    %v3275 = vsub.s32 0, %v3274
    %v3276 = vrot.slane %v3206, %v3275
    %v3277 = vlaneseq
    %v3278 = vshrl.u32 %v3277, 7
    %v3279 = vsub.s32 0, %v3278
    %v3280 = vrot.slane %v3220, %v3279
    %v3281 = vlaneseq
    %v3282 = vshrl.u32 %v3281, 7
    %v3283 = vsub.s32 0, %v3282
    %v3284 = vrot.slane %v3222, %v3283
    %v3285 = vlaneseq
    %v3286 = vshrl.u32 %v3285, 7
    %v3287 = vsub.s32 0, %v3286
    %v3288 = vrot.slane %v3224, %v3287
    %3289 = vrot.lane.b32.xlu0 %v3228, 64
    %v3290 = vpop.permute.xlu0 %3289
    %3291 = vrot.lane.b32.xlu0 %v3232, 64
    %v3292 = vpop.permute.xlu0 %3291
    %3293 = vrot.lane.b32.xlu0 %v3236, 64
    %v3294 = vpop.permute.xlu0 %3293
    %3295 = vrot.lane.b32.xlu0 %v3240, 64
    %v3296 = vpop.permute.xlu0 %3295
    %3297 = vrot.lane.b32.xlu0 %v3244, 64
    %v3298 = vpop.permute.xlu0 %3297
    %3299 = vrot.lane.b32.xlu0 %v3248, 64
    %v3300 = vpop.permute.xlu0 %3299
    %3301 = vrot.lane.b32.xlu0 %v3252, 64
    %v3302 = vpop.permute.xlu0 %3301
    %3303 = vrot.lane.b32.xlu0 %v3256, 64
    %v3304 = vpop.permute.xlu0 %3303
    %3305 = vrot.lane.b32.xlu0 %v3260, 64
    %v3306 = vpop.permute.xlu0 %3305
    %3307 = vrot.lane.b32.xlu0 %v3264, 64
    %v3308 = vpop.permute.xlu0 %3307
    %3309 = vrot.lane.b32.xlu0 %v3268, 64
    %v3310 = vpop.permute.xlu0 %3309
    %3311 = vrot.lane.b32.xlu0 %v3272, 64
    %v3312 = vpop.permute.xlu0 %3311
    %3313 = vrot.lane.b32.xlu0 %v3276, 64
    %v3314 = vpop.permute.xlu0 %3313
    %3315 = vrot.lane.b32.xlu0 %v3280, 64
    %v3316 = vpop.permute.xlu0 %3315
    %3317 = vrot.lane.b32.xlu0 %v3284, 64
    %v3318 = vpop.permute.xlu0 %3317
    %3319 = vrot.lane.b32.xlu0 %v3288, 64
    %v3320 = vpop.permute.xlu0 %3319
    %3337 = vst.msk [vmem:[#allocation2 + $0x5] sm:$0x1] %vm1011, %v3290
    %3338 = vst.msk [vmem:[#allocation2 + $0xd] sm:$0x1] %vm1011, %v3292
    %3339 = vst.msk [vmem:[#allocation2 + $0x15] sm:$0x1] %vm1011, %v3294
    %3340 = vst.msk [vmem:[#allocation2 + $0x1d] sm:$0x1] %vm1011, %v3296
    %3341 = vst.msk [vmem:[#allocation2 + $0x25] sm:$0x1] %vm1011, %v3298
    %3342 = vst.msk [vmem:[#allocation2 + $0x2d] sm:$0x1] %vm1011, %v3300
    %3343 = vst.msk [vmem:[#allocation2 + $0x35] sm:$0x1] %vm1011, %v3302
    %3344 = vst.msk [vmem:[#allocation2 + $0x3d] sm:$0x1] %vm1011, %v3304
    %3345 = vst.msk [vmem:[#allocation2 + $0x45] sm:$0x1] %vm1011, %v3306
    %3346 = vst.msk [vmem:[#allocation2 + $0x4d] sm:$0x1] %vm1011, %v3308
    %3347 = vst.msk [vmem:[#allocation2 + $0x55] sm:$0x1] %vm1011, %v3310
    %3348 = vst.msk [vmem:[#allocation2 + $0x5d] sm:$0x1] %vm1011, %v3312
    %3349 = vst.msk [vmem:[#allocation2 + $0x65] sm:$0x1] %vm1011, %v3314
    %3350 = vst.msk [vmem:[#allocation2 + $0x6d] sm:$0x1] %vm1011, %v3316
    %3351 = vst.msk [vmem:[#allocation2 + $0x75] sm:$0x1] %vm1011, %v3318
    %3352 = vst.msk [vmem:[#allocation2 + $0x7d] sm:$0x1] %vm1011, %v3320
    %v3353 = vpack.c.bf16 %v3124, %v3123
    %v3354 = vpack.c.bf16 %v3076, %v3075
    %3356 = vrot.lane.b32.xlu0 %v3354, 64
    %v3357 = vpop.permute.xlu0 %3356
    %v3359 = vsel %vm216, %v3357, 0
    %3361 = vmatprep.subr.bf16.mxu0 0
    %3362 = vmatpush1.bf16.msra.mxu0 %v441
    %3363 = vmatprep.subr.bf16.mxu0 0
    %3364 = vmatpush1.bf16.msra.mxu0 %v442
    %3365 = vmatprep.subr.bf16.mxu0 0
    %3366 = vmatpush1.bf16.msra.mxu0 0
    %3367 = vmatprep.subr.bf16.mxu0 0
    %3368 = vmatpush1.bf16.msra.mxu0 0
    %3369 = vmatprep.subr.bf16.mxu0 0
    %3370 = vmatpush1.bf16.msra.mxu0 0
    %3371 = vmatprep.subr.bf16.mxu0 0
    %3372 = vmatpush1.bf16.msra.mxu0 0
    %3373 = vmatprep.subr.bf16.mxu0 0
    %3374 = vmatpush1.bf16.msra.mxu0 0
    %3375 = vmatprep.subr.bf16.mxu0 0
    %3376 = vmatpush1.bf16.msra.mxu0 0
    %3377 = vmatprep.subr.bf16.mxu0 0
    %3378 = vmatpush1.bf16.msra.mxu0 0
    %3379 = vmatprep.subr.bf16.mxu0 0
    %3380 = vmatpush1.bf16.msra.mxu0 0
    %3381 = vmatprep.subr.bf16.mxu0 0
    %3382 = vmatpush1.bf16.msra.mxu0 0
    %3383 = vmatprep.subr.bf16.mxu0 0
    %3384 = vmatpush1.bf16.msra.mxu0 0
    %3385 = vmatprep.subr.bf16.mxu0 0
    %3386 = vmatpush1.bf16.msra.mxu0 0
    %3387 = vmatprep.subr.bf16.mxu0 0
    %3388 = vmatpush1.bf16.msra.mxu0 0
    %3389 = vmatprep.subr.bf16.mxu0 0
    %3390 = vmatpush1.bf16.msra.mxu0 0
    %3391 = vmatprep.subr.bf16.mxu0 0
    %3392 = vmatpush1.bf16.msra.mxu0 0
    %3393 = vmatprep.mubr.bf16.mxu0 0
    %3394 = vmatmul.mubr.bf16.gmra.mrb[0].mxu0 %v3359
    %v3395 = vpop.f32.mrb[0].mxu0
    %v3396 = vadd.f32 0.0, %v3395
    %v3397 = vpop.f32.mrb[0].mxu0
    %v3398 = vpop.f32.mrb[0].mxu0
    %v3399 = vadd.f32 0.0, %v3398
    %v3400 = vpop.f32.mrb[0].mxu0
    %3401 = vdwg.mxu0
    %v3402 = vadd.f32 %v414, %v3396
    %v3403 = vadd.f32 %v417, %v3399
    %3405 = vrot.lane.b32.xlu0 %v3353, 64
    %v3406 = vpop.permute.xlu0 %3405
    %v3408 = vsel %vm216, %v3406, 0
    %3410 = vmatprep.subr.bf16.mxu0 0
    %3411 = vmatpush1.bf16.msra.mxu0 %v597
    %3412 = vmatprep.subr.bf16.mxu0 0
    %3413 = vmatpush1.bf16.msra.mxu0 %v598
    %3414 = vmatprep.subr.bf16.mxu0 0
    %3415 = vmatpush1.bf16.msra.mxu0 0
    %3416 = vmatprep.subr.bf16.mxu0 0
    %3417 = vmatpush1.bf16.msra.mxu0 0
    %3418 = vmatprep.subr.bf16.mxu0 0
    %3419 = vmatpush1.bf16.msra.mxu0 0
    %3420 = vmatprep.subr.bf16.mxu0 0
    %3421 = vmatpush1.bf16.msra.mxu0 0
    %3422 = vmatprep.subr.bf16.mxu0 0
    %3423 = vmatpush1.bf16.msra.mxu0 0
    %3424 = vmatprep.subr.bf16.mxu0 0
    %3425 = vmatpush1.bf16.msra.mxu0 0
    %3426 = vmatprep.subr.bf16.mxu0 0
    %3427 = vmatpush1.bf16.msra.mxu0 0
    %3428 = vmatprep.subr.bf16.mxu0 0
    %3429 = vmatpush1.bf16.msra.mxu0 0
    %3430 = vmatprep.subr.bf16.mxu0 0
    %3431 = vmatpush1.bf16.msra.mxu0 0
    %3432 = vmatprep.subr.bf16.mxu0 0
    %3433 = vmatpush1.bf16.msra.mxu0 0
    %3434 = vmatprep.subr.bf16.mxu0 0
    %3435 = vmatpush1.bf16.msra.mxu0 0
    %3436 = vmatprep.subr.bf16.mxu0 0
    %3437 = vmatpush1.bf16.msra.mxu0 0
    %3438 = vmatprep.subr.bf16.mxu0 0
    %3439 = vmatpush1.bf16.msra.mxu0 0
    %3440 = vmatprep.subr.bf16.mxu0 0
    %3441 = vmatpush1.bf16.msra.mxu0 0
    %3442 = vmatprep.mubr.bf16.mxu0 0
    %3443 = vmatmul.mubr.bf16.gmra.mrb[0].mxu0 %v3408
    %v3444 = vpop.f32.mrb[0].mxu0
    %v3445 = vadd.f32 0.0, %v3444
    %v3446 = vpop.f32.mrb[0].mxu0
    %v3447 = vpop.f32.mrb[0].mxu0
    %v3448 = vadd.f32 0.0, %v3447
    %v3449 = vpop.f32.mrb[0].mxu0
    %3450 = vdwg.mxu0
    %3451 = vmatprep.subr.bf16.mxu0 0
    %3452 = vmatpush1.bf16.msra.mxu0 %v650
    %3453 = vmatprep.subr.bf16.mxu0 0
    %3454 = vmatpush1.bf16.msra.mxu0 %v651
    %3455 = vmatprep.subr.bf16.mxu0 0
    %3456 = vmatpush1.bf16.msra.mxu0 0
    %3457 = vmatprep.subr.bf16.mxu0 0
    %3458 = vmatpush1.bf16.msra.mxu0 0
    %3459 = vmatprep.subr.bf16.mxu0 0
    %3460 = vmatpush1.bf16.msra.mxu0 0
    %3461 = vmatprep.subr.bf16.mxu0 0
    %3462 = vmatpush1.bf16.msra.mxu0 0
    %3463 = vmatprep.subr.bf16.mxu0 0
    %3464 = vmatpush1.bf16.msra.mxu0 0
    %3465 = vmatprep.subr.bf16.mxu0 0
    %3466 = vmatpush1.bf16.msra.mxu0 0
    %3467 = vmatprep.subr.bf16.mxu0 0
    %3468 = vmatpush1.bf16.msra.mxu0 0
    %3469 = vmatprep.subr.bf16.mxu0 0
    %3470 = vmatpush1.bf16.msra.mxu0 0
    %3471 = vmatprep.subr.bf16.mxu0 0
    %3472 = vmatpush1.bf16.msra.mxu0 0
    %3473 = vmatprep.subr.bf16.mxu0 0
    %3474 = vmatpush1.bf16.msra.mxu0 0
    %3475 = vmatprep.subr.bf16.mxu0 0
    %3476 = vmatpush1.bf16.msra.mxu0 0
    %3477 = vmatprep.subr.bf16.mxu0 0
    %3478 = vmatpush1.bf16.msra.mxu0 0
    %3479 = vmatprep.subr.bf16.mxu0 0
    %3480 = vmatpush1.bf16.msra.mxu0 0
    %3481 = vmatprep.subr.bf16.mxu0 0
    %3482 = vmatpush1.bf16.msra.mxu0 0
    %3483 = vmatprep.mubr.bf16.mxu0 0
    %3484 = vmatmul.mubr.bf16.gmra.mrb[0].mxu0 %v3359
    %v3485 = vpop.f32.mrb[0].mxu0
    %v3486 = vadd.f32 %v3445, %v3485
    %v3487 = vpop.f32.mrb[0].mxu0
    %v3488 = vpop.f32.mrb[0].mxu0
    %v3489 = vadd.f32 %v3448, %v3488
    %v3490 = vpop.f32.mrb[0].mxu0
    %3491 = vdwg.mxu0
    %v3492 = vadd.f32 %v3486, %v699
    %v3493 = vadd.f32 %v3489, %v699
    %v3494 = vxor.u32 %v3402, 2147483648
    %v3495 = vxor.u32 %v3403, 2147483648
    %v3496 = vmul.f32 %v3494, 1.442695
    %v3497 = vpow.pop %v3496
    %v3498 = vmul.f32 %v3495, 1.442695
    %v3499 = vpow.pop %v3498
    %v3500 = vadd.f32 %v3497, 1.0
    %v3501 = vadd.f32 %v3499, 1.0
    %v3502 = vrcp.pop %v3500
    %v3503 = vmul.f32 1.0, %v3502
    %v3504 = vrcp.pop %v3501
    %v3505 = vmul.f32 1.0, %v3504
    %v3506 = vtanh.pop %v3402
    %v3507 = vtanh.pop %v3403
    %v3508 = vmul.f32 %v3503, %v3063
    %v3509 = vmul.f32 %v3505, %v3064
    %3512 = vrot.lane.b32.xlu0 %v3506, 32
    %v3513 = vpop.permute.xlu0 %3512
    %3514 = vrot.lane.b32.xlu0 %v3507, 32
    %v3515 = vpop.permute.xlu0 %3514
    %v3518 = vmul.f32 %v3503, %v3513
    %v3519 = vmul.f32 %v3505, %v3515
    %3522 = vrot.lane.b32.xlu0 %v3518, 32
    %v3523 = vpop.permute.xlu0 %3522
    %3524 = vrot.lane.b32.xlu0 %v3519, 32
    %v3525 = vpop.permute.xlu0 %3524
    %v3528 = vadd.f32 %v3508, %v3523
    %v3529 = vadd.f32 %v3509, %v3525
    %v3530 = vtanh.pop %v3528
    %v3531 = vtanh.pop %v3529
    %3534 = vrot.lane.b32.xlu0 %v3530, 32
    %v3535 = vpop.permute.xlu0 %3534
    %3536 = vrot.lane.b32.xlu0 %v3531, 32
    %v3537 = vpop.permute.xlu0 %3536
    %v3540 = vmul.f32 %v3503, %v3535
    %v3541 = vmul.f32 %v3505, %v3537
    %v3542 = vxor.u32 %v3492, 2147483648
    %v3543 = vxor.u32 %v3493, 2147483648
    %v3544 = vmul.f32 %v3542, 1.442695
    %v3545 = vpow.pop %v3544
    %v3546 = vmul.f32 %v3543, 1.442695
    %v3547 = vpow.pop %v3546
    %v3548 = vadd.f32 %v3545, 1.0
    %v3549 = vadd.f32 %v3547, 1.0
    %v3550 = vrcp.pop %v3548
    %v3551 = vmul.f32 1.0, %v3550
    %v3552 = vrcp.pop %v3549
    %v3553 = vmul.f32 1.0, %v3552
    %v3554 = vtanh.pop %v3492
    %v3555 = vtanh.pop %v3493
    %v3556 = vmul.f32 %v3551, %v3111
    %v3557 = vmul.f32 %v3553, %v3112
    %3560 = vrot.lane.b32.xlu0 %v3554, 32
    %v3561 = vpop.permute.xlu0 %3560
    %3562 = vrot.lane.b32.xlu0 %v3555, 32
    %v3563 = vpop.permute.xlu0 %3562
    %v3566 = vmul.f32 %v3551, %v3561
    %v3567 = vmul.f32 %v3553, %v3563
    %3570 = vrot.lane.b32.xlu0 %v3566, 32
    %v3571 = vpop.permute.xlu0 %3570
    %3572 = vrot.lane.b32.xlu0 %v3567, 32
    %v3573 = vpop.permute.xlu0 %3572
    %v3576 = vadd.f32 %v3556, %v3571
    %v3577 = vadd.f32 %v3557, %v3573
    %v3578 = vtanh.pop %v3576
    %v3579 = vtanh.pop %v3577
    %3582 = vrot.lane.b32.xlu0 %v3578, 32
    %v3583 = vpop.permute.xlu0 %3582
    %3584 = vrot.lane.b32.xlu0 %v3579, 32
    %v3585 = vpop.permute.xlu0 %3584
    %v3588 = vmul.f32 %v3551, %v3583
    %v3589 = vmul.f32 %v3553, %v3585
    %v3592 = vcombine.high %v3588, %v3588
    %v3594 = vunpack.c.l.s4 1966171168
    %v3595 = vunpack.c.0.s8 %v3594
    %v3596 = vlaneseq
    %v3597 = vshrl.u32 %v3596, 7
    %v3598 = vsub.s32 %v3595, %v3597
    %v3599 = vrot.slane %v3588, %v3598
    %v3601 = vunpack.c.l.s4 1966171168
    %v3602 = vunpack.c.0.s8 %v3601
    %v3603 = vlaneseq
    %v3604 = vshrl.u32 %v3603, 7
    %v3605 = vsub.s32 %v3602, %v3604
    %v3606 = vrot.slane %v3592, %v3605
    %v3607 = vcombine.high %v3599, %v3599
    %v3608 = vcombine.high %v3606, %v3606
    %v3610 = vunpack.c.l.s4 1966171168
    %v3611 = vunpack.c.0.s8 %v3610
    %v3612 = vlaneseq
    %v3613 = vshrl.u32 %v3612, 7
    %v3614 = vsub.s32 %v3611, %v3613
    %v3615 = vrot.slane %v3599, %v3614
    %v3617 = vunpack.c.l.s4 1966171168
    %v3618 = vunpack.c.0.s8 %v3617
    %v3619 = vlaneseq
    %v3620 = vshrl.u32 %v3619, 7
    %v3621 = vsub.s32 %v3618, %v3620
    %v3622 = vrot.slane %v3606, %v3621
    %v3624 = vunpack.c.l.s4 1966171168
    %v3625 = vunpack.c.0.s8 %v3624
    %v3626 = vlaneseq
    %v3627 = vshrl.u32 %v3626, 7
    %v3628 = vsub.s32 %v3625, %v3627
    %v3629 = vrot.slane %v3607, %v3628
    %v3631 = vunpack.c.l.s4 1966171168
    %v3632 = vunpack.c.0.s8 %v3631
    %v3633 = vlaneseq
    %v3634 = vshrl.u32 %v3633, 7
    %v3635 = vsub.s32 %v3632, %v3634
    %v3636 = vrot.slane %v3608, %v3635
    %v3637 = vcombine.high %v3615, %v3615
    %v3638 = vcombine.high %v3622, %v3622
    %v3639 = vcombine.high %v3629, %v3629
    %v3640 = vcombine.high %v3636, %v3636
    %v3641 = vcombine.high %v3589, %v3589
    %v3643 = vunpack.c.l.s4 1966171168
    %v3644 = vunpack.c.0.s8 %v3643
    %v3645 = vlaneseq
    %v3646 = vshrl.u32 %v3645, 7
    %v3647 = vsub.s32 %v3644, %v3646
    %v3648 = vrot.slane %v3589, %v3647
    %v3650 = vunpack.c.l.s4 1966171168
    %v3651 = vunpack.c.0.s8 %v3650
    %v3652 = vlaneseq
    %v3653 = vshrl.u32 %v3652, 7
    %v3654 = vsub.s32 %v3651, %v3653
    %v3655 = vrot.slane %v3641, %v3654
    %v3656 = vcombine.high %v3648, %v3648
    %v3657 = vcombine.high %v3655, %v3655
    %v3659 = vunpack.c.l.s4 1966171168
    %v3660 = vunpack.c.0.s8 %v3659
    %v3661 = vlaneseq
    %v3662 = vshrl.u32 %v3661, 7
    %v3663 = vsub.s32 %v3660, %v3662
    %v3664 = vrot.slane %v3648, %v3663
    %v3666 = vunpack.c.l.s4 1966171168
    %v3667 = vunpack.c.0.s8 %v3666
    %v3668 = vlaneseq
    %v3669 = vshrl.u32 %v3668, 7
    %v3670 = vsub.s32 %v3667, %v3669
    %v3671 = vrot.slane %v3655, %v3670
    %v3673 = vunpack.c.l.s4 1966171168
    %v3674 = vunpack.c.0.s8 %v3673
    %v3675 = vlaneseq
    %v3676 = vshrl.u32 %v3675, 7
    %v3677 = vsub.s32 %v3674, %v3676
    %v3678 = vrot.slane %v3656, %v3677
    %v3680 = vunpack.c.l.s4 1966171168
    %v3681 = vunpack.c.0.s8 %v3680
    %v3682 = vlaneseq
    %v3683 = vshrl.u32 %v3682, 7
    %v3684 = vsub.s32 %v3681, %v3683
    %v3685 = vrot.slane %v3657, %v3684
    %v3686 = vcombine.high %v3664, %v3664
    %v3687 = vcombine.high %v3671, %v3671
    %v3688 = vcombine.high %v3678, %v3678
    %v3689 = vcombine.high %v3685, %v3685
    %v3690 = vlaneseq
    %v3691 = vshrl.u32 %v3690, 7
    %v3692 = vsub.s32 0, %v3691
    %v3693 = vrot.slane %v3615, %v3692
    %v3694 = vlaneseq
    %v3695 = vshrl.u32 %v3694, 7
    %v3696 = vsub.s32 0, %v3695
    %v3697 = vrot.slane %v3629, %v3696
    %v3698 = vlaneseq
    %v3699 = vshrl.u32 %v3698, 7
    %v3700 = vsub.s32 0, %v3699
    %v3701 = vrot.slane %v3637, %v3700
    %v3702 = vlaneseq
    %v3703 = vshrl.u32 %v3702, 7
    %v3704 = vsub.s32 0, %v3703
    %v3705 = vrot.slane %v3639, %v3704
    %v3706 = vlaneseq
    %v3707 = vshrl.u32 %v3706, 7
    %v3708 = vsub.s32 0, %v3707
    %v3709 = vrot.slane %v3622, %v3708
    %v3710 = vlaneseq
    %v3711 = vshrl.u32 %v3710, 7
    %v3712 = vsub.s32 0, %v3711
    %v3713 = vrot.slane %v3636, %v3712
    %v3714 = vlaneseq
    %v3715 = vshrl.u32 %v3714, 7
    %v3716 = vsub.s32 0, %v3715
    %v3717 = vrot.slane %v3638, %v3716
    %v3718 = vlaneseq
    %v3719 = vshrl.u32 %v3718, 7
    %v3720 = vsub.s32 0, %v3719
    %v3721 = vrot.slane %v3640, %v3720
    %v3722 = vlaneseq
    %v3723 = vshrl.u32 %v3722, 7
    %v3724 = vsub.s32 0, %v3723
    %v3725 = vrot.slane %v3664, %v3724
    %v3726 = vlaneseq
    %v3727 = vshrl.u32 %v3726, 7
    %v3728 = vsub.s32 0, %v3727
    %v3729 = vrot.slane %v3678, %v3728
    %v3730 = vlaneseq
    %v3731 = vshrl.u32 %v3730, 7
    %v3732 = vsub.s32 0, %v3731
    %v3733 = vrot.slane %v3686, %v3732
    %v3734 = vlaneseq
    %v3735 = vshrl.u32 %v3734, 7
    %v3736 = vsub.s32 0, %v3735
    %v3737 = vrot.slane %v3688, %v3736
    %v3738 = vlaneseq
    %v3739 = vshrl.u32 %v3738, 7
    %v3740 = vsub.s32 0, %v3739
    %v3741 = vrot.slane %v3671, %v3740
    %v3742 = vlaneseq
    %v3743 = vshrl.u32 %v3742, 7
    %v3744 = vsub.s32 0, %v3743
    %v3745 = vrot.slane %v3685, %v3744
    %v3746 = vlaneseq
    %v3747 = vshrl.u32 %v3746, 7
    %v3748 = vsub.s32 0, %v3747
    %v3749 = vrot.slane %v3687, %v3748
    %v3750 = vlaneseq
    %v3751 = vshrl.u32 %v3750, 7
    %v3752 = vsub.s32 0, %v3751
    %v3753 = vrot.slane %v3689, %v3752
    %3754 = vrot.lane.b32.xlu0 %v3693, 64
    %v3755 = vpop.permute.xlu0 %3754
    %3756 = vrot.lane.b32.xlu0 %v3697, 64
    %v3757 = vpop.permute.xlu0 %3756
    %3758 = vrot.lane.b32.xlu0 %v3701, 64
    %v3759 = vpop.permute.xlu0 %3758
    %3760 = vrot.lane.b32.xlu0 %v3705, 64
    %v3761 = vpop.permute.xlu0 %3760
    %3762 = vrot.lane.b32.xlu0 %v3709, 64
    %v3763 = vpop.permute.xlu0 %3762
    %3764 = vrot.lane.b32.xlu0 %v3713, 64
    %v3765 = vpop.permute.xlu0 %3764
    %3766 = vrot.lane.b32.xlu0 %v3717, 64
    %v3767 = vpop.permute.xlu0 %3766
    %3768 = vrot.lane.b32.xlu0 %v3721, 64
    %v3769 = vpop.permute.xlu0 %3768
    %3770 = vrot.lane.b32.xlu0 %v3725, 64
    %v3771 = vpop.permute.xlu0 %3770
    %3772 = vrot.lane.b32.xlu0 %v3729, 64
    %v3773 = vpop.permute.xlu0 %3772
    %3774 = vrot.lane.b32.xlu0 %v3733, 64
    %v3775 = vpop.permute.xlu0 %3774
    %3776 = vrot.lane.b32.xlu0 %v3737, 64
    %v3777 = vpop.permute.xlu0 %3776
    %3778 = vrot.lane.b32.xlu0 %v3741, 64
    %v3779 = vpop.permute.xlu0 %3778
    %3780 = vrot.lane.b32.xlu0 %v3745, 64
    %v3781 = vpop.permute.xlu0 %3780
    %3782 = vrot.lane.b32.xlu0 %v3749, 64
    %v3783 = vpop.permute.xlu0 %3782
    %3784 = vrot.lane.b32.xlu0 %v3753, 64
    %v3785 = vpop.permute.xlu0 %3784
    %3802 = vst.msk [vmem:[#allocation2 + $0x6] sm:$0x1] %vm1011, %v3755
    %3803 = vst.msk [vmem:[#allocation2 + $0xe] sm:$0x1] %vm1011, %v3757
    %3804 = vst.msk [vmem:[#allocation2 + $0x16] sm:$0x1] %vm1011, %v3759
    %3805 = vst.msk [vmem:[#allocation2 + $0x1e] sm:$0x1] %vm1011, %v3761
    %3806 = vst.msk [vmem:[#allocation2 + $0x26] sm:$0x1] %vm1011, %v3763
    %3807 = vst.msk [vmem:[#allocation2 + $0x2e] sm:$0x1] %vm1011, %v3765
    %3808 = vst.msk [vmem:[#allocation2 + $0x36] sm:$0x1] %vm1011, %v3767
    %3809 = vst.msk [vmem:[#allocation2 + $0x3e] sm:$0x1] %vm1011, %v3769
    %3810 = vst.msk [vmem:[#allocation2 + $0x46] sm:$0x1] %vm1011, %v3771
    %3811 = vst.msk [vmem:[#allocation2 + $0x4e] sm:$0x1] %vm1011, %v3773
    %3812 = vst.msk [vmem:[#allocation2 + $0x56] sm:$0x1] %vm1011, %v3775
    %3813 = vst.msk [vmem:[#allocation2 + $0x5e] sm:$0x1] %vm1011, %v3777
    %3814 = vst.msk [vmem:[#allocation2 + $0x66] sm:$0x1] %vm1011, %v3779
    %3815 = vst.msk [vmem:[#allocation2 + $0x6e] sm:$0x1] %vm1011, %v3781
    %3816 = vst.msk [vmem:[#allocation2 + $0x76] sm:$0x1] %vm1011, %v3783
    %3817 = vst.msk [vmem:[#allocation2 + $0x7e] sm:$0x1] %vm1011, %v3785
    %v3818 = vpack.c.bf16 %v3589, %v3588
    %v3819 = vpack.c.bf16 %v3541, %v3540
    %3821 = vrot.lane.b32.xlu0 %v3818, 64
    %v3822 = vpop.permute.xlu0 %3821
    %v3824 = vsel %vm216, %v3822, 0
    %3826 = vmatprep.subr.bf16.mxu0 0
    %3827 = vmatpush1.bf16.msra.mxu0 %v597
    %3828 = vmatprep.subr.bf16.mxu0 0
    %3829 = vmatpush1.bf16.msra.mxu0 %v598
    %3830 = vmatprep.subr.bf16.mxu0 0
    %3831 = vmatpush1.bf16.msra.mxu0 0
    %3832 = vmatprep.subr.bf16.mxu0 0
    %3833 = vmatpush1.bf16.msra.mxu0 0
    %3834 = vmatprep.subr.bf16.mxu0 0
    %3835 = vmatpush1.bf16.msra.mxu0 0
    %3836 = vmatprep.subr.bf16.mxu0 0
    %3837 = vmatpush1.bf16.msra.mxu0 0
    %3838 = vmatprep.subr.bf16.mxu0 0
    %3839 = vmatpush1.bf16.msra.mxu0 0
    %3840 = vmatprep.subr.bf16.mxu0 0
    %3841 = vmatpush1.bf16.msra.mxu0 0
    %3842 = vmatprep.subr.bf16.mxu0 0
    %3843 = vmatpush1.bf16.msra.mxu0 0
    %3844 = vmatprep.subr.bf16.mxu0 0
    %3845 = vmatpush1.bf16.msra.mxu0 0
    %3846 = vmatprep.subr.bf16.mxu0 0
    %3847 = vmatpush1.bf16.msra.mxu0 0
    %3848 = vmatprep.subr.bf16.mxu0 0
    %3849 = vmatpush1.bf16.msra.mxu0 0
    %3850 = vmatprep.subr.bf16.mxu0 0
    %3851 = vmatpush1.bf16.msra.mxu0 0
    %3852 = vmatprep.subr.bf16.mxu0 0
    %3853 = vmatpush1.bf16.msra.mxu0 0
    %3854 = vmatprep.subr.bf16.mxu0 0
    %3855 = vmatpush1.bf16.msra.mxu0 0
    %3856 = vmatprep.subr.bf16.mxu0 0
    %3857 = vmatpush1.bf16.msra.mxu0 0
    %3858 = vmatprep.mubr.bf16.mxu0 0
    %3859 = vmatmul.mubr.bf16.gmra.mrb[0].mxu0 %v3824
    %v3860 = vpop.f32.mrb[0].mxu0
    %v3861 = vadd.f32 0.0, %v3860
    %v3862 = vpop.f32.mrb[0].mxu0
    %v3863 = vpop.f32.mrb[0].mxu0
    %v3864 = vadd.f32 0.0, %v3863
    %v3865 = vpop.f32.mrb[0].mxu0
    %3866 = vdwg.mxu0
    %3868 = vrot.lane.b32.xlu0 %v3819, 64
    %v3869 = vpop.permute.xlu0 %3868
    %v3871 = vsel %vm216, %v3869, 0
    %3873 = vmatprep.subr.bf16.mxu0 0
    %3874 = vmatpush1.bf16.msra.mxu0 %v650
    %3875 = vmatprep.subr.bf16.mxu0 0
    %3876 = vmatpush1.bf16.msra.mxu0 %v651
    %3877 = vmatprep.subr.bf16.mxu0 0
    %3878 = vmatpush1.bf16.msra.mxu0 0
    %3879 = vmatprep.subr.bf16.mxu0 0
    %3880 = vmatpush1.bf16.msra.mxu0 0
    %3881 = vmatprep.subr.bf16.mxu0 0
    %3882 = vmatpush1.bf16.msra.mxu0 0
    %3883 = vmatprep.subr.bf16.mxu0 0
    %3884 = vmatpush1.bf16.msra.mxu0 0
    %3885 = vmatprep.subr.bf16.mxu0 0
    %3886 = vmatpush1.bf16.msra.mxu0 0
    %3887 = vmatprep.subr.bf16.mxu0 0
    %3888 = vmatpush1.bf16.msra.mxu0 0
    %3889 = vmatprep.subr.bf16.mxu0 0
    %3890 = vmatpush1.bf16.msra.mxu0 0
    %3891 = vmatprep.subr.bf16.mxu0 0
    %3892 = vmatpush1.bf16.msra.mxu0 0
    %3893 = vmatprep.subr.bf16.mxu0 0
    %3894 = vmatpush1.bf16.msra.mxu0 0
    %3895 = vmatprep.subr.bf16.mxu0 0
    %3896 = vmatpush1.bf16.msra.mxu0 0
    %3897 = vmatprep.subr.bf16.mxu0 0
    %3898 = vmatpush1.bf16.msra.mxu0 0
    %3899 = vmatprep.subr.bf16.mxu0 0
    %3900 = vmatpush1.bf16.msra.mxu0 0
    %3901 = vmatprep.subr.bf16.mxu0 0
    %3902 = vmatpush1.bf16.msra.mxu0 0
    %3903 = vmatprep.subr.bf16.mxu0 0
    %3904 = vmatpush1.bf16.msra.mxu0 0
    %3905 = vmatprep.mubr.bf16.mxu0 0
    %3906 = vmatmul.mubr.bf16.gmra.mrb[0].mxu0 %v3871
    %v3907 = vpop.f32.mrb[0].mxu0
    %v3908 = vadd.f32 %v3861, %v3907
    %v3909 = vpop.f32.mrb[0].mxu0
    %v3910 = vpop.f32.mrb[0].mxu0
    %v3911 = vadd.f32 %v3864, %v3910
    %v3912 = vpop.f32.mrb[0].mxu0
    %3913 = vdwg.mxu0
    %v3914 = vadd.f32 %v3908, %v699
    %v3915 = vadd.f32 %v3911, %v699
    %v3916 = vxor.u32 %v3914, 2147483648
    %v3917 = vxor.u32 %v3915, 2147483648
    %v3918 = vmul.f32 %v3916, 1.442695
    %v3919 = vpow.pop %v3918
    %v3920 = vmul.f32 %v3917, 1.442695
    %v3921 = vpow.pop %v3920
    %v3922 = vadd.f32 %v3919, 1.0
    %v3923 = vadd.f32 %v3921, 1.0
    %v3924 = vrcp.pop %v3922
    %v3925 = vmul.f32 1.0, %v3924
    %v3926 = vrcp.pop %v3923
    %v3927 = vmul.f32 1.0, %v3926
    %v3928 = vtanh.pop %v3914
    %v3929 = vtanh.pop %v3915
    %v3930 = vmul.f32 %v3925, %v3576
    %v3931 = vmul.f32 %v3927, %v3577
    %3934 = vrot.lane.b32.xlu0 %v3928, 32
    %v3935 = vpop.permute.xlu0 %3934
    %3936 = vrot.lane.b32.xlu0 %v3929, 32
    %v3937 = vpop.permute.xlu0 %3936
    %v3940 = vmul.f32 %v3925, %v3935
    %v3941 = vmul.f32 %v3927, %v3937
    %3944 = vrot.lane.b32.xlu0 %v3940, 32
    %v3945 = vpop.permute.xlu0 %3944
    %3946 = vrot.lane.b32.xlu0 %v3941, 32
    %v3947 = vpop.permute.xlu0 %3946
    %v3950 = vadd.f32 %v3930, %v3945
    %v3951 = vadd.f32 %v3931, %v3947
    %v3952 = vtanh.pop %v3950
    %v3953 = vtanh.pop %v3951
    %3956 = vrot.lane.b32.xlu0 %v3952, 32
    %v3957 = vpop.permute.xlu0 %3956
    %3958 = vrot.lane.b32.xlu0 %v3953, 32
    %v3959 = vpop.permute.xlu0 %3958
    %v3962 = vmul.f32 %v3925, %v3957
    %v3963 = vmul.f32 %v3927, %v3959
    %v3966 = vcombine.high %v3962, %v3962
    %v3968 = vunpack.c.l.s4 1966171168
    %v3969 = vunpack.c.0.s8 %v3968
    %v3970 = vlaneseq
    %v3971 = vshrl.u32 %v3970, 7
    %v3972 = vsub.s32 %v3969, %v3971
    %v3973 = vrot.slane %v3962, %v3972
    %v3975 = vunpack.c.l.s4 1966171168
    %v3976 = vunpack.c.0.s8 %v3975
    %v3977 = vlaneseq
    %v3978 = vshrl.u32 %v3977, 7
    %v3979 = vsub.s32 %v3976, %v3978
    %v3980 = vrot.slane %v3966, %v3979
    %v3981 = vcombine.high %v3973, %v3973
    %v3982 = vcombine.high %v3980, %v3980
    %v3984 = vunpack.c.l.s4 1966171168
    %v3985 = vunpack.c.0.s8 %v3984
    %v3986 = vlaneseq
    %v3987 = vshrl.u32 %v3986, 7
    %v3988 = vsub.s32 %v3985, %v3987
    %v3989 = vrot.slane %v3973, %v3988
    %v3991 = vunpack.c.l.s4 1966171168
    %v3992 = vunpack.c.0.s8 %v3991
    %v3993 = vlaneseq
    %v3994 = vshrl.u32 %v3993, 7
    %v3995 = vsub.s32 %v3992, %v3994
    %v3996 = vrot.slane %v3980, %v3995
    %v3998 = vunpack.c.l.s4 1966171168
    %v3999 = vunpack.c.0.s8 %v3998
    %v4000 = vlaneseq
    %v4001 = vshrl.u32 %v4000, 7
    %v4002 = vsub.s32 %v3999, %v4001
    %v4003 = vrot.slane %v3981, %v4002
    %v4005 = vunpack.c.l.s4 1966171168
    %v4006 = vunpack.c.0.s8 %v4005
    %v4007 = vlaneseq
    %v4008 = vshrl.u32 %v4007, 7
    %v4009 = vsub.s32 %v4006, %v4008
    %v4010 = vrot.slane %v3982, %v4009
    %v4011 = vcombine.high %v3989, %v3989
    %v4012 = vcombine.high %v3996, %v3996
    %v4013 = vcombine.high %v4003, %v4003
    %v4014 = vcombine.high %v4010, %v4010
    %v4015 = vcombine.high %v3963, %v3963
    %v4017 = vunpack.c.l.s4 1966171168
    %v4018 = vunpack.c.0.s8 %v4017
    %v4019 = vlaneseq
    %v4020 = vshrl.u32 %v4019, 7
    %v4021 = vsub.s32 %v4018, %v4020
    %v4022 = vrot.slane %v3963, %v4021
    %v4024 = vunpack.c.l.s4 1966171168
    %v4025 = vunpack.c.0.s8 %v4024
    %v4026 = vlaneseq
    %v4027 = vshrl.u32 %v4026, 7
    %v4028 = vsub.s32 %v4025, %v4027
    %v4029 = vrot.slane %v4015, %v4028
    %v4030 = vcombine.high %v4022, %v4022
    %v4031 = vcombine.high %v4029, %v4029
    %v4033 = vunpack.c.l.s4 1966171168
    %v4034 = vunpack.c.0.s8 %v4033
    %v4035 = vlaneseq
    %v4036 = vshrl.u32 %v4035, 7
    %v4037 = vsub.s32 %v4034, %v4036
    %v4038 = vrot.slane %v4022, %v4037
    %v4040 = vunpack.c.l.s4 1966171168
    %v4041 = vunpack.c.0.s8 %v4040
    %v4042 = vlaneseq
    %v4043 = vshrl.u32 %v4042, 7
    %v4044 = vsub.s32 %v4041, %v4043
    %v4045 = vrot.slane %v4029, %v4044
    %v4047 = vunpack.c.l.s4 1966171168
    %v4048 = vunpack.c.0.s8 %v4047
    %v4049 = vlaneseq
    %v4050 = vshrl.u32 %v4049, 7
    %v4051 = vsub.s32 %v4048, %v4050
    %v4052 = vrot.slane %v4030, %v4051
    %v4054 = vunpack.c.l.s4 1966171168
    %v4055 = vunpack.c.0.s8 %v4054
    %v4056 = vlaneseq
    %v4057 = vshrl.u32 %v4056, 7
    %v4058 = vsub.s32 %v4055, %v4057
    %v4059 = vrot.slane %v4031, %v4058
    %v4060 = vcombine.high %v4038, %v4038
    %v4061 = vcombine.high %v4045, %v4045
    %v4062 = vcombine.high %v4052, %v4052
    %v4063 = vcombine.high %v4059, %v4059
    %v4064 = vlaneseq
    %v4065 = vshrl.u32 %v4064, 7
    %v4066 = vsub.s32 0, %v4065
    %v4067 = vrot.slane %v3989, %v4066
    %v4068 = vlaneseq
    %v4069 = vshrl.u32 %v4068, 7
    %v4070 = vsub.s32 0, %v4069
    %v4071 = vrot.slane %v4003, %v4070
    %v4072 = vlaneseq
    %v4073 = vshrl.u32 %v4072, 7
    %v4074 = vsub.s32 0, %v4073
    %v4075 = vrot.slane %v4011, %v4074
    %v4076 = vlaneseq
    %v4077 = vshrl.u32 %v4076, 7
    %v4078 = vsub.s32 0, %v4077
    %v4079 = vrot.slane %v4013, %v4078
    %v4080 = vlaneseq
    %v4081 = vshrl.u32 %v4080, 7
    %v4082 = vsub.s32 0, %v4081
    %v4083 = vrot.slane %v3996, %v4082
    %v4084 = vlaneseq
    %v4085 = vshrl.u32 %v4084, 7
    %v4086 = vsub.s32 0, %v4085
    %v4087 = vrot.slane %v4010, %v4086
    %v4088 = vlaneseq
    %v4089 = vshrl.u32 %v4088, 7
    %v4090 = vsub.s32 0, %v4089
    %v4091 = vrot.slane %v4012, %v4090
    %v4092 = vlaneseq
    %v4093 = vshrl.u32 %v4092, 7
    %v4094 = vsub.s32 0, %v4093
    %v4095 = vrot.slane %v4014, %v4094
    %v4096 = vlaneseq
    %v4097 = vshrl.u32 %v4096, 7
    %v4098 = vsub.s32 0, %v4097
    %v4099 = vrot.slane %v4038, %v4098
    %v4100 = vlaneseq
    %v4101 = vshrl.u32 %v4100, 7
    %v4102 = vsub.s32 0, %v4101
    %v4103 = vrot.slane %v4052, %v4102
    %v4104 = vlaneseq
    %v4105 = vshrl.u32 %v4104, 7
    %v4106 = vsub.s32 0, %v4105
    %v4107 = vrot.slane %v4060, %v4106
    %v4108 = vlaneseq
    %v4109 = vshrl.u32 %v4108, 7
    %v4110 = vsub.s32 0, %v4109
    %v4111 = vrot.slane %v4062, %v4110
    %v4112 = vlaneseq
    %v4113 = vshrl.u32 %v4112, 7
    %v4114 = vsub.s32 0, %v4113
    %v4115 = vrot.slane %v4045, %v4114
    %v4116 = vlaneseq
    %v4117 = vshrl.u32 %v4116, 7
    %v4118 = vsub.s32 0, %v4117
    %v4119 = vrot.slane %v4059, %v4118
    %v4120 = vlaneseq
    %v4121 = vshrl.u32 %v4120, 7
    %v4122 = vsub.s32 0, %v4121
    %v4123 = vrot.slane %v4061, %v4122
    %v4124 = vlaneseq
    %v4125 = vshrl.u32 %v4124, 7
    %v4126 = vsub.s32 0, %v4125
    %v4127 = vrot.slane %v4063, %v4126
    %4128 = vrot.lane.b32.xlu0 %v4067, 64
    %v4129 = vpop.permute.xlu0 %4128
    %4130 = vrot.lane.b32.xlu0 %v4071, 64
    %v4131 = vpop.permute.xlu0 %4130
    %4132 = vrot.lane.b32.xlu0 %v4075, 64
    %v4133 = vpop.permute.xlu0 %4132
    %4134 = vrot.lane.b32.xlu0 %v4079, 64
    %v4135 = vpop.permute.xlu0 %4134
    %4136 = vrot.lane.b32.xlu0 %v4083, 64
    %v4137 = vpop.permute.xlu0 %4136
    %4138 = vrot.lane.b32.xlu0 %v4087, 64
    %v4139 = vpop.permute.xlu0 %4138
    %4140 = vrot.lane.b32.xlu0 %v4091, 64
    %v4141 = vpop.permute.xlu0 %4140
    %4142 = vrot.lane.b32.xlu0 %v4095, 64
    %v4143 = vpop.permute.xlu0 %4142
    %4144 = vrot.lane.b32.xlu0 %v4099, 64
    %v4145 = vpop.permute.xlu0 %4144
    %4146 = vrot.lane.b32.xlu0 %v4103, 64
    %v4147 = vpop.permute.xlu0 %4146
    %4148 = vrot.lane.b32.xlu0 %v4107, 64
    %v4149 = vpop.permute.xlu0 %4148
    %4150 = vrot.lane.b32.xlu0 %v4111, 64
    %v4151 = vpop.permute.xlu0 %4150
    %4152 = vrot.lane.b32.xlu0 %v4115, 64
    %v4153 = vpop.permute.xlu0 %4152
    %4154 = vrot.lane.b32.xlu0 %v4119, 64
    %v4155 = vpop.permute.xlu0 %4154
    %4156 = vrot.lane.b32.xlu0 %v4123, 64
    %v4157 = vpop.permute.xlu0 %4156
    %4158 = vrot.lane.b32.xlu0 %v4127, 64
    %v4159 = vpop.permute.xlu0 %4158
    %4176 = vst.msk [vmem:[#allocation2 + $0x7] sm:$0x1] %vm1011, %v4129
    %4177 = vst.msk [vmem:[#allocation2 + $0xf] sm:$0x1] %vm1011, %v4131
    %4178 = vst.msk [vmem:[#allocation2 + $0x17] sm:$0x1] %vm1011, %v4133
    %4179 = vst.msk [vmem:[#allocation2 + $0x1f] sm:$0x1] %vm1011, %v4135
    %4180 = vst.msk [vmem:[#allocation2 + $0x27] sm:$0x1] %vm1011, %v4137
    %4181 = vst.msk [vmem:[#allocation2 + $0x2f] sm:$0x1] %vm1011, %v4139
    %4182 = vst.msk [vmem:[#allocation2 + $0x37] sm:$0x1] %vm1011, %v4141
    %4183 = vst.msk [vmem:[#allocation2 + $0x3f] sm:$0x1] %vm1011, %v4143
    %4184 = vst.msk [vmem:[#allocation2 + $0x47] sm:$0x1] %vm1011, %v4145
    %4185 = vst.msk [vmem:[#allocation2 + $0x4f] sm:$0x1] %vm1011, %v4147
    %4186 = vst.msk [vmem:[#allocation2 + $0x57] sm:$0x1] %vm1011, %v4149
    %4187 = vst.msk [vmem:[#allocation2 + $0x5f] sm:$0x1] %vm1011, %v4151
    %4188 = vst.msk [vmem:[#allocation2 + $0x67] sm:$0x1] %vm1011, %v4153
    %4189 = vst.msk [vmem:[#allocation2 + $0x6f] sm:$0x1] %vm1011, %v4155
    %4190 = vst.msk [vmem:[#allocation2 + $0x77] sm:$0x1] %vm1011, %v4157
    %4191 = vst.msk [vmem:[#allocation2 + $0x7f] sm:$0x1] %vm1011, %v4159
    %v4192 = vld [vmem:[%s0] sm:$0xff]
    %v4193 = vld [vmem:[%s0 + $0x8] sm:$0xff]
    %v4194 = vlaneseq
    %v4195 = vand.u32 %v4194, 127
    %4196 = vset.pattern.permute.xlu0 0
    %4197 = vperm.xlu0 %4196, %v4192
    %v4198 = vpop.permute.xlu0 %4197
    %4199 = vset.pattern.permute.xlu0 0
    %4200 = vperm.xlu0 %4199, %v4193
    %v4201 = vpop.permute.xlu0 %4200
    %vm4202 = vcmp.lt.s32.totalorder %v4195, %v4198
    %vm4203 = vcmp.lt.s32.totalorder %v4195, %v4201
    %v4204 = vsel %vm4202, 1, 0
    %v4205 = vsel %vm4203, 1, 0
    %v4206 = vcvt.s32.f32 %v4204
    %v4207 = vcvt.s32.f32 %v4205
    %v4208 = vld [vmem:[#allocation2] sm:$0xff]
    %v4209 = vld [vmem:[#allocation2 + $0x8] sm:$0xff]
    %v4210 = vld [vmem:[#allocation2 + $0x10] sm:$0xff]
    %v4211 = vld [vmem:[#allocation2 + $0x18] sm:$0xff]
    %v4212 = vld [vmem:[#allocation2 + $0x20] sm:$0xff]
    %v4213 = vld [vmem:[#allocation2 + $0x28] sm:$0xff]
    %v4214 = vld [vmem:[#allocation2 + $0x30] sm:$0xff]
    %v4215 = vld [vmem:[#allocation2 + $0x38] sm:$0xff]
    %v4216 = vld [vmem:[#allocation2 + $0x40] sm:$0xff]
    %v4217 = vld [vmem:[#allocation2 + $0x48] sm:$0xff]
    %v4218 = vld [vmem:[#allocation2 + $0x50] sm:$0xff]
    %v4219 = vld [vmem:[#allocation2 + $0x58] sm:$0xff]
    %v4220 = vld [vmem:[#allocation2 + $0x60] sm:$0xff]
    %v4221 = vld [vmem:[#allocation2 + $0x68] sm:$0xff]
    %v4222 = vld [vmem:[#allocation2 + $0x70] sm:$0xff]
    %v4223 = vld [vmem:[#allocation2 + $0x78] sm:$0xff]
    %v4224 = vlaneseq
    %v4225 = vshrl.u32 %v4224, 7
    %v4226 = vsub.s32 0, %v4225
    %v4227 = vrot.slane %v4206, %v4226
    %4229 = vbcast.lane.b32.xlu0 %v4227, 256
    %v4230 = vpop.permute.xlu0 %4229
    %v4231 = vlaneseq
    %v4232 = vshrl.u32 %v4231, 7
    %v4233 = vsub.s32 1, %v4232
    %v4234 = vrot.slane %v4206, %v4233
    %4236 = vbcast.lane.b32.xlu0 %v4234, 256
    %v4237 = vpop.permute.xlu0 %4236
    %v4238 = vlaneseq
    %v4239 = vshrl.u32 %v4238, 7
    %v4240 = vsub.s32 2, %v4239
    %v4241 = vrot.slane %v4206, %v4240
    %4243 = vbcast.lane.b32.xlu0 %v4241, 256
    %v4244 = vpop.permute.xlu0 %4243
    %v4245 = vlaneseq
    %v4246 = vshrl.u32 %v4245, 7
    %v4247 = vsub.s32 3, %v4246
    %v4248 = vrot.slane %v4206, %v4247
    %4250 = vbcast.lane.b32.xlu0 %v4248, 256
    %v4251 = vpop.permute.xlu0 %4250
    %v4252 = vlaneseq
    %v4253 = vshrl.u32 %v4252, 7
    %v4254 = vsub.s32 4, %v4253
    %v4255 = vrot.slane %v4206, %v4254
    %4257 = vbcast.lane.b32.xlu0 %v4255, 256
    %v4258 = vpop.permute.xlu0 %4257
    %v4259 = vlaneseq
    %v4260 = vshrl.u32 %v4259, 7
    %v4261 = vsub.s32 5, %v4260
    %v4262 = vrot.slane %v4206, %v4261
    %4264 = vbcast.lane.b32.xlu0 %v4262, 256
    %v4265 = vpop.permute.xlu0 %4264
    %v4266 = vlaneseq
    %v4267 = vshrl.u32 %v4266, 7
    %v4268 = vsub.s32 6, %v4267
    %v4269 = vrot.slane %v4206, %v4268
    %4271 = vbcast.lane.b32.xlu0 %v4269, 256
    %v4272 = vpop.permute.xlu0 %4271
    %v4273 = vlaneseq
    %v4274 = vshrl.u32 %v4273, 7
    %v4275 = vsub.s32 7, %v4274
    %v4276 = vrot.slane %v4206, %v4275
    %4278 = vbcast.lane.b32.xlu0 %v4276, 256
    %v4279 = vpop.permute.xlu0 %4278
    %v4280 = vlaneseq
    %v4281 = vshrl.u32 %v4280, 7
    %v4282 = vsub.s32 0, %v4281
    %v4283 = vrot.slane %v4207, %v4282
    %4285 = vbcast.lane.b32.xlu0 %v4283, 256
    %v4286 = vpop.permute.xlu0 %4285
    %v4287 = vlaneseq
    %v4288 = vshrl.u32 %v4287, 7
    %v4289 = vsub.s32 1, %v4288
    %v4290 = vrot.slane %v4207, %v4289
    %4292 = vbcast.lane.b32.xlu0 %v4290, 256
    %v4293 = vpop.permute.xlu0 %4292
    %v4294 = vlaneseq
    %v4295 = vshrl.u32 %v4294, 7
    %v4296 = vsub.s32 2, %v4295
    %v4297 = vrot.slane %v4207, %v4296
    %4299 = vbcast.lane.b32.xlu0 %v4297, 256
    %v4300 = vpop.permute.xlu0 %4299
    %v4301 = vlaneseq
    %v4302 = vshrl.u32 %v4301, 7
    %v4303 = vsub.s32 3, %v4302
    %v4304 = vrot.slane %v4207, %v4303
    %4306 = vbcast.lane.b32.xlu0 %v4304, 256
    %v4307 = vpop.permute.xlu0 %4306
    %v4308 = vlaneseq
    %v4309 = vshrl.u32 %v4308, 7
    %v4310 = vsub.s32 4, %v4309
    %v4311 = vrot.slane %v4207, %v4310
    %4313 = vbcast.lane.b32.xlu0 %v4311, 256
    %v4314 = vpop.permute.xlu0 %4313
    %v4315 = vlaneseq
    %v4316 = vshrl.u32 %v4315, 7
    %v4317 = vsub.s32 5, %v4316
    %v4318 = vrot.slane %v4207, %v4317
    %4320 = vbcast.lane.b32.xlu0 %v4318, 256
    %v4321 = vpop.permute.xlu0 %4320
    %v4322 = vlaneseq
    %v4323 = vshrl.u32 %v4322, 7
    %v4324 = vsub.s32 6, %v4323
    %v4325 = vrot.slane %v4207, %v4324
    %4327 = vbcast.lane.b32.xlu0 %v4325, 256
    %v4328 = vpop.permute.xlu0 %4327
    %v4329 = vlaneseq
    %v4330 = vshrl.u32 %v4329, 7
    %v4331 = vsub.s32 7, %v4330
    %v4332 = vrot.slane %v4207, %v4331
    %4334 = vbcast.lane.b32.xlu0 %v4332, 256
    %v4335 = vpop.permute.xlu0 %4334
    %v4336 = vmul.f32 %v4208, %v4230
    %v4337 = vmul.f32 %v4209, %v4237
    %v4338 = vmul.f32 %v4210, %v4244
    %v4339 = vmul.f32 %v4211, %v4251
    %v4340 = vmul.f32 %v4212, %v4258
    %v4341 = vmul.f32 %v4213, %v4265
    %v4342 = vmul.f32 %v4214, %v4272
    %v4343 = vmul.f32 %v4215, %v4279
    %v4344 = vmul.f32 %v4216, %v4286
    %v4345 = vmul.f32 %v4217, %v4293
    %v4346 = vmul.f32 %v4218, %v4300
    %v4347 = vmul.f32 %v4219, %v4307
    %v4348 = vmul.f32 %v4220, %v4314
    %v4349 = vmul.f32 %v4221, %v4321
    %v4350 = vmul.f32 %v4222, %v4328
    %v4351 = vmul.f32 %v4223, %v4335
    %v4352 = vpack.c.bf16 %v4337, %v4336
    %v4353 = vpack.c.bf16 %v4339, %v4338
    %v4354 = vpack.c.bf16 %v4341, %v4340
    %v4355 = vpack.c.bf16 %v4343, %v4342
    %v4356 = vpack.c.bf16 %v4345, %v4344
    %v4357 = vpack.c.bf16 %v4347, %v4346
    %v4358 = vpack.c.bf16 %v4349, %v4348
    %v4359 = vpack.c.bf16 %v4351, %v4350
    %v4360 = vld [vmem:[%s11] sm:$0xf]
    %v4361 = vld [vmem:[%s11 + $0x4] sm:$0xf]
    %v4362 = vld [vmem:[%s11 + $0x8] sm:$0xf]
    %v4363 = vld [vmem:[%s11 + $0xc] sm:$0xf]
    %v4364 = vld [vmem:[%s12] sm:$0x1]
    %v4366 = vlaneseq
    %v4367 = vshrl.u32 %v4366, 7
    %v4368 = vsub.s32 0, %v4367
    %v4369 = vrot.slane %v4364, %v4368
    %v4375 = vunpack.c.l.b16 %v4360
    %v4376 = vunpack.c.l.b16 %v4361
    %v4377 = vunpack.c.l.b16 %v4362
    %v4378 = vunpack.c.l.b16 %v4363
    %v4379 = vpack.c.b16 %v4376, %v4375
    %v4380 = vpack.c.b16 %v4378, %v4377
    %v4384 = vsel %vm216, %v4352, 0
    %v4387 = vsel %vm216, %v4353, 0
    %v4390 = vsel %vm216, %v4354, 0
    %v4393 = vsel %vm216, %v4355, 0
    %v4396 = vsel %vm216, %v4356, 0
    %v4399 = vsel %vm216, %v4357, 0
    %v4402 = vsel %vm216, %v4358, 0
    %v4405 = vsel %vm216, %v4359, 0
    %4407 = vmatprep.subr.bf16.mxu0 0
    %4408 = vmatpush1.bf16.msra.mxu0 %v4379
    %4409 = vmatprep.subr.bf16.mxu0 0
    %4410 = vmatpush1.bf16.msra.mxu0 %v4380
    %4411 = vmatprep.subr.bf16.mxu0 0
    %4412 = vmatpush1.bf16.msra.mxu0 0
    %4413 = vmatprep.subr.bf16.mxu0 0
    %4414 = vmatpush1.bf16.msra.mxu0 0
    %4415 = vmatprep.subr.bf16.mxu0 0
    %4416 = vmatpush1.bf16.msra.mxu0 0
    %4417 = vmatprep.subr.bf16.mxu0 0
    %4418 = vmatpush1.bf16.msra.mxu0 0
    %4419 = vmatprep.subr.bf16.mxu0 0
    %4420 = vmatpush1.bf16.msra.mxu0 0
    %4421 = vmatprep.subr.bf16.mxu0 0
    %4422 = vmatpush1.bf16.msra.mxu0 0
    %4423 = vmatprep.subr.bf16.mxu0 0
    %4424 = vmatpush1.bf16.msra.mxu0 0
    %4425 = vmatprep.subr.bf16.mxu0 0
    %4426 = vmatpush1.bf16.msra.mxu0 0
    %4427 = vmatprep.subr.bf16.mxu0 0
    %4428 = vmatpush1.bf16.msra.mxu0 0
    %4429 = vmatprep.subr.bf16.mxu0 0
    %4430 = vmatpush1.bf16.msra.mxu0 0
    %4431 = vmatprep.subr.bf16.mxu0 0
    %4432 = vmatpush1.bf16.msra.mxu0 0
    %4433 = vmatprep.subr.bf16.mxu0 0
    %4434 = vmatpush1.bf16.msra.mxu0 0
    %4435 = vmatprep.subr.bf16.mxu0 0
    %4436 = vmatpush1.bf16.msra.mxu0 0
    %4437 = vmatprep.subr.bf16.mxu0 0
    %4438 = vmatpush1.bf16.msra.mxu0 0
    %4439 = vmatprep.mubr.bf16.mxu0 0
    %4440 = vmatmul.mubr.bf16.gmra.mrb[0].mxu0 %v4384
    %v4441 = vpop.f32.mrb[0].mxu0
    %v4442 = vadd.f32 %v4369, %v4441
    %v4443 = vpop.f32.mrb[0].mxu0
    %v4444 = vpop.f32.mrb[0].mxu0
    %v4445 = vadd.f32 %v4369, %v4444
    %v4446 = vpop.f32.mrb[0].mxu0
    %4447 = vmatprep.mubr.bf16.mxu0 0
    %4448 = vmatmul.mubr.bf16.gmra.mrb[0].mxu0 %v4387
    %v4449 = vpop.f32.mrb[0].mxu0
    %v4450 = vadd.f32 %v4369, %v4449
    %v4451 = vpop.f32.mrb[0].mxu0
    %v4452 = vpop.f32.mrb[0].mxu0
    %v4453 = vadd.f32 %v4369, %v4452
    %v4454 = vpop.f32.mrb[0].mxu0
    %4455 = vmatprep.mubr.bf16.mxu0 0
    %4456 = vmatmul.mubr.bf16.gmra.mrb[0].mxu0 %v4390
    %v4457 = vpop.f32.mrb[0].mxu0
    %v4458 = vadd.f32 %v4369, %v4457
    %v4459 = vpop.f32.mrb[0].mxu0
    %v4460 = vpop.f32.mrb[0].mxu0
    %v4461 = vadd.f32 %v4369, %v4460
    %v4462 = vpop.f32.mrb[0].mxu0
    %4463 = vmatprep.mubr.bf16.mxu0 0
    %4464 = vmatmul.mubr.bf16.gmra.mrb[0].mxu0 %v4393
    %v4465 = vpop.f32.mrb[0].mxu0
    %v4466 = vadd.f32 %v4369, %v4465
    %v4467 = vpop.f32.mrb[0].mxu0
    %v4468 = vpop.f32.mrb[0].mxu0
    %v4469 = vadd.f32 %v4369, %v4468
    %v4470 = vpop.f32.mrb[0].mxu0
    %4471 = vmatprep.mubr.bf16.mxu0 0
    %4472 = vmatmul.mubr.bf16.gmra.mrb[0].mxu0 %v4396
    %v4473 = vpop.f32.mrb[0].mxu0
    %v4474 = vadd.f32 %v4369, %v4473
    %v4475 = vpop.f32.mrb[0].mxu0
    %v4476 = vpop.f32.mrb[0].mxu0
    %v4477 = vadd.f32 %v4369, %v4476
    %v4478 = vpop.f32.mrb[0].mxu0
    %4479 = vmatprep.mubr.bf16.mxu0 0
    %4480 = vmatmul.mubr.bf16.gmra.mrb[0].mxu0 %v4399
    %v4481 = vpop.f32.mrb[0].mxu0
    %v4482 = vadd.f32 %v4369, %v4481
    %v4483 = vpop.f32.mrb[0].mxu0
    %v4484 = vpop.f32.mrb[0].mxu0
    %v4485 = vadd.f32 %v4369, %v4484
    %v4486 = vpop.f32.mrb[0].mxu0
    %4487 = vmatprep.mubr.bf16.mxu0 0
    %4488 = vmatmul.mubr.bf16.gmra.mrb[0].mxu0 %v4402
    %v4489 = vpop.f32.mrb[0].mxu0
    %v4490 = vadd.f32 %v4369, %v4489
    %v4491 = vpop.f32.mrb[0].mxu0
    %v4492 = vpop.f32.mrb[0].mxu0
    %v4493 = vadd.f32 %v4369, %v4492
    %v4494 = vpop.f32.mrb[0].mxu0
    %4495 = vmatprep.mubr.bf16.mxu0 0
    %4496 = vmatmul.mubr.bf16.gmra.mrb[0].mxu0 %v4405
    %v4497 = vpop.f32.mrb[0].mxu0
    %v4498 = vadd.f32 %v4369, %v4497
    %v4499 = vpop.f32.mrb[0].mxu0
    %v4500 = vpop.f32.mrb[0].mxu0
    %v4501 = vadd.f32 %v4369, %v4500
    %v4502 = vpop.f32.mrb[0].mxu0
    %4503 = vdwg.mxu0
    %4504 = vmax.xlane.f32.xlu0 %v4442
    %v4505 = vpop.xlane.xlu0 %4504
    %4506 = vmax.xlane.f32.xlu0 %v4445
    %v4507 = vpop.xlane.xlu0 %4506
    %4508 = vmax.xlane.f32.xlu0 %v4450
    %v4509 = vpop.xlane.xlu0 %4508
    %4510 = vmax.xlane.f32.xlu0 %v4453
    %v4511 = vpop.xlane.xlu0 %4510
    %4512 = vmax.xlane.f32.xlu0 %v4458
    %v4513 = vpop.xlane.xlu0 %4512
    %4514 = vmax.xlane.f32.xlu0 %v4461
    %v4515 = vpop.xlane.xlu0 %4514
    %4516 = vmax.xlane.f32.xlu0 %v4466
    %v4517 = vpop.xlane.xlu0 %4516
    %4518 = vmax.xlane.f32.xlu0 %v4469
    %v4519 = vpop.xlane.xlu0 %4518
    %4520 = vmax.xlane.f32.xlu0 %v4474
    %v4521 = vpop.xlane.xlu0 %4520
    %4522 = vmax.xlane.f32.xlu0 %v4477
    %v4523 = vpop.xlane.xlu0 %4522
    %4524 = vmax.xlane.f32.xlu0 %v4482
    %v4525 = vpop.xlane.xlu0 %4524
    %4526 = vmax.xlane.f32.xlu0 %v4485
    %v4527 = vpop.xlane.xlu0 %4526
    %4528 = vmax.xlane.f32.xlu0 %v4490
    %v4529 = vpop.xlane.xlu0 %4528
    %4530 = vmax.xlane.f32.xlu0 %v4493
    %v4531 = vpop.xlane.xlu0 %4530
    %4532 = vmax.xlane.f32.xlu0 %v4498
    %v4533 = vpop.xlane.xlu0 %4532
    %4534 = vmax.xlane.f32.xlu0 %v4501
    %v4535 = vpop.xlane.xlu0 %4534
    %v4536 = vsub.f32 %v4442, %v4505
    %v4537 = vsub.f32 %v4445, %v4507
    %v4538 = vsub.f32 %v4450, %v4509
    %v4539 = vsub.f32 %v4453, %v4511
    %v4540 = vsub.f32 %v4458, %v4513
    %v4541 = vsub.f32 %v4461, %v4515
    %v4542 = vsub.f32 %v4466, %v4517
    %v4543 = vsub.f32 %v4469, %v4519
    %v4544 = vsub.f32 %v4474, %v4521
    %v4545 = vsub.f32 %v4477, %v4523
    %v4546 = vsub.f32 %v4482, %v4525
    %v4547 = vsub.f32 %v4485, %v4527
    %v4548 = vsub.f32 %v4490, %v4529
    %v4549 = vsub.f32 %v4493, %v4531
    %v4550 = vsub.f32 %v4498, %v4533
    %v4551 = vsub.f32 %v4501, %v4535
    %v4552 = vmul.f32 %v4536, 1.442695
    %v4553 = vpow.pop %v4552
    %v4554 = vmul.f32 %v4537, 1.442695
    %v4555 = vpow.pop %v4554
    %v4556 = vmul.f32 %v4538, 1.442695
    %v4557 = vpow.pop %v4556
    %v4558 = vmul.f32 %v4539, 1.442695
    %v4559 = vpow.pop %v4558
    %v4560 = vmul.f32 %v4540, 1.442695
    %v4561 = vpow.pop %v4560
    %v4562 = vmul.f32 %v4541, 1.442695
    %v4563 = vpow.pop %v4562
    %v4564 = vmul.f32 %v4542, 1.442695
    %v4565 = vpow.pop %v4564
    %v4566 = vmul.f32 %v4543, 1.442695
    %v4567 = vpow.pop %v4566
    %v4568 = vmul.f32 %v4544, 1.442695
    %v4569 = vpow.pop %v4568
    %v4570 = vmul.f32 %v4545, 1.442695
    %v4571 = vpow.pop %v4570
    %v4572 = vmul.f32 %v4546, 1.442695
    %v4573 = vpow.pop %v4572
    %v4574 = vmul.f32 %v4547, 1.442695
    %v4575 = vpow.pop %v4574
    %v4576 = vmul.f32 %v4548, 1.442695
    %v4577 = vpow.pop %v4576
    %v4578 = vmul.f32 %v4549, 1.442695
    %v4579 = vpow.pop %v4578
    %v4580 = vmul.f32 %v4550, 1.442695
    %v4581 = vpow.pop %v4580
    %v4582 = vmul.f32 %v4551, 1.442695
    %v4583 = vpow.pop %v4582
    %4584 = vadd.xlane.f32.xlu0 %v4553
    %v4585 = vpop.xlane.xlu0 %4584
    %4586 = vadd.xlane.f32.xlu0 %v4555
    %v4587 = vpop.xlane.xlu0 %4586
    %4588 = vadd.xlane.f32.xlu0 %v4557
    %v4589 = vpop.xlane.xlu0 %4588
    %4590 = vadd.xlane.f32.xlu0 %v4559
    %v4591 = vpop.xlane.xlu0 %4590
    %4592 = vadd.xlane.f32.xlu0 %v4561
    %v4593 = vpop.xlane.xlu0 %4592
    %4594 = vadd.xlane.f32.xlu0 %v4563
    %v4595 = vpop.xlane.xlu0 %4594
    %4596 = vadd.xlane.f32.xlu0 %v4565
    %v4597 = vpop.xlane.xlu0 %4596
    %4598 = vadd.xlane.f32.xlu0 %v4567
    %v4599 = vpop.xlane.xlu0 %4598
    %4600 = vadd.xlane.f32.xlu0 %v4569
    %v4601 = vpop.xlane.xlu0 %4600
    %4602 = vadd.xlane.f32.xlu0 %v4571
    %v4603 = vpop.xlane.xlu0 %4602
    %4604 = vadd.xlane.f32.xlu0 %v4573
    %v4605 = vpop.xlane.xlu0 %4604
    %4606 = vadd.xlane.f32.xlu0 %v4575
    %v4607 = vpop.xlane.xlu0 %4606
    %4608 = vadd.xlane.f32.xlu0 %v4577
    %v4609 = vpop.xlane.xlu0 %4608
    %4610 = vadd.xlane.f32.xlu0 %v4579
    %v4611 = vpop.xlane.xlu0 %4610
    %4612 = vadd.xlane.f32.xlu0 %v4581
    %v4613 = vpop.xlane.xlu0 %4612
    %4614 = vadd.xlane.f32.xlu0 %v4583
    %v4615 = vpop.xlane.xlu0 %4614
    %v4616 = vlog2.pop %v4585
    %v4617 = vmul.f32 %v4616, 0.6931472
    %v4618 = vlog2.pop %v4587
    %v4619 = vmul.f32 %v4618, 0.6931472
    %v4620 = vlog2.pop %v4589
    %v4621 = vmul.f32 %v4620, 0.6931472
    %v4622 = vlog2.pop %v4591
    %v4623 = vmul.f32 %v4622, 0.6931472
    %v4624 = vlog2.pop %v4593
    %v4625 = vmul.f32 %v4624, 0.6931472
    %v4626 = vlog2.pop %v4595
    %v4627 = vmul.f32 %v4626, 0.6931472
    %v4628 = vlog2.pop %v4597
    %v4629 = vmul.f32 %v4628, 0.6931472
    %v4630 = vlog2.pop %v4599
    %v4631 = vmul.f32 %v4630, 0.6931472
    %v4632 = vlog2.pop %v4601
    %v4633 = vmul.f32 %v4632, 0.6931472
    %v4634 = vlog2.pop %v4603
    %v4635 = vmul.f32 %v4634, 0.6931472
    %v4636 = vlog2.pop %v4605
    %v4637 = vmul.f32 %v4636, 0.6931472
    %v4638 = vlog2.pop %v4607
    %v4639 = vmul.f32 %v4638, 0.6931472
    %v4640 = vlog2.pop %v4609
    %v4641 = vmul.f32 %v4640, 0.6931472
    %v4642 = vlog2.pop %v4611
    %v4643 = vmul.f32 %v4642, 0.6931472
    %v4644 = vlog2.pop %v4613
    %v4645 = vmul.f32 %v4644, 0.6931472
    %v4646 = vlog2.pop %v4615
    %v4647 = vmul.f32 %v4646, 0.6931472
    %v4648 = vsub.f32 %v4536, %v4617
    %v4649 = vsub.f32 %v4537, %v4619
    %v4650 = vsub.f32 %v4538, %v4621
    %v4651 = vsub.f32 %v4539, %v4623
    %v4652 = vsub.f32 %v4540, %v4625
    %v4653 = vsub.f32 %v4541, %v4627
    %v4654 = vsub.f32 %v4542, %v4629
    %v4655 = vsub.f32 %v4543, %v4631
    %v4656 = vsub.f32 %v4544, %v4633
    %v4657 = vsub.f32 %v4545, %v4635
    %v4658 = vsub.f32 %v4546, %v4637
    %v4659 = vsub.f32 %v4547, %v4639
    %v4660 = vsub.f32 %v4548, %v4641
    %v4661 = vsub.f32 %v4549, %v4643
    %v4662 = vsub.f32 %v4550, %v4645
    %v4663 = vsub.f32 %v4551, %v4647
    %4664 = vst [vmem:[#allocation11] sm:$0xff] %v4648
    %4665 = vst [vmem:[#allocation11 + $0x8] sm:$0xff] %v4649
    %4666 = vst [vmem:[#allocation11 + $0x10] sm:$0xff] %v4650
    %4667 = vst [vmem:[#allocation11 + $0x18] sm:$0xff] %v4651
    %4668 = vst [vmem:[#allocation11 + $0x20] sm:$0xff] %v4652
    %4669 = vst [vmem:[#allocation11 + $0x28] sm:$0xff] %v4653
    %4670 = vst [vmem:[#allocation11 + $0x30] sm:$0xff] %v4654
    %4671 = vst [vmem:[#allocation11 + $0x38] sm:$0xff] %v4655
    %4672 = vst [vmem:[#allocation11 + $0x40] sm:$0xff] %v4656
    %4673 = vst [vmem:[#allocation11 + $0x48] sm:$0xff] %v4657
    %4674 = vst [vmem:[#allocation11 + $0x50] sm:$0xff] %v4658
    %4675 = vst [vmem:[#allocation11 + $0x58] sm:$0xff] %v4659
    %4676 = vst [vmem:[#allocation11 + $0x60] sm:$0xff] %v4660
    %4677 = vst [vmem:[#allocation11 + $0x68] sm:$0xff] %v4661
    %4678 = vst [vmem:[#allocation11 + $0x70] sm:$0xff] %v4662
    %4679 = vst [vmem:[#allocation11 + $0x78] sm:$0xff] %v4663
    %4680 = vmax.xlane.f32.xlu0 %v4648
    %v4681 = vpop.xlane.xlu0 %4680
    %4682 = vmax.xlane.f32.xlu0 %v4649
    %v4683 = vpop.xlane.xlu0 %4682
    %4684 = vmax.xlane.f32.xlu0 %v4650
    %v4685 = vpop.xlane.xlu0 %4684
    %4686 = vmax.xlane.f32.xlu0 %v4651
    %v4687 = vpop.xlane.xlu0 %4686
    %4688 = vmax.xlane.f32.xlu0 %v4652
    %v4689 = vpop.xlane.xlu0 %4688
    %4690 = vmax.xlane.f32.xlu0 %v4653
    %v4691 = vpop.xlane.xlu0 %4690
    %4692 = vmax.xlane.f32.xlu0 %v4654
    %v4693 = vpop.xlane.xlu0 %4692
    %4694 = vmax.xlane.f32.xlu0 %v4655
    %v4695 = vpop.xlane.xlu0 %4694
    %4696 = vmax.xlane.f32.xlu0 %v4656
    %v4697 = vpop.xlane.xlu0 %4696
    %4698 = vmax.xlane.f32.xlu0 %v4657
    %v4699 = vpop.xlane.xlu0 %4698
    %4700 = vmax.xlane.f32.xlu0 %v4658
    %v4701 = vpop.xlane.xlu0 %4700
    %4702 = vmax.xlane.f32.xlu0 %v4659
    %v4703 = vpop.xlane.xlu0 %4702
    %4704 = vmax.xlane.f32.xlu0 %v4660
    %v4705 = vpop.xlane.xlu0 %4704
    %4706 = vmax.xlane.f32.xlu0 %v4661
    %v4707 = vpop.xlane.xlu0 %4706
    %4708 = vmax.xlane.f32.xlu0 %v4662
    %v4709 = vpop.xlane.xlu0 %4708
    %4710 = vmax.xlane.f32.xlu0 %v4663
    %v4711 = vpop.xlane.xlu0 %4710
    %vm4712 = vcmp.eq.f32.partialorder %v4648, %v4681
    %vm4713 = vcmp.eq.f32.partialorder %v4649, %v4683
    %vm4714 = vcmp.eq.f32.partialorder %v4650, %v4685
    %vm4715 = vcmp.eq.f32.partialorder %v4651, %v4687
    %vm4716 = vcmp.eq.f32.partialorder %v4652, %v4689
    %vm4717 = vcmp.eq.f32.partialorder %v4653, %v4691
    %vm4718 = vcmp.eq.f32.partialorder %v4654, %v4693
    %vm4719 = vcmp.eq.f32.partialorder %v4655, %v4695
    %vm4720 = vcmp.eq.f32.partialorder %v4656, %v4697
    %vm4721 = vcmp.eq.f32.partialorder %v4657, %v4699
    %vm4722 = vcmp.eq.f32.partialorder %v4658, %v4701
    %vm4723 = vcmp.eq.f32.partialorder %v4659, %v4703
    %vm4724 = vcmp.eq.f32.partialorder %v4660, %v4705
    %vm4725 = vcmp.eq.f32.partialorder %v4661, %v4707
    %vm4726 = vcmp.eq.f32.partialorder %v4662, %v4709
    %vm4727 = vcmp.eq.f32.partialorder %v4663, %v4711
    %v4728 = vsel %vm4712, %v4195, 128
    %v4729 = vsel %vm4713, %v4195, 128
    %v4730 = vsel %vm4714, %v4195, 128
    %v4731 = vsel %vm4715, %v4195, 128
    %v4732 = vsel %vm4716, %v4195, 128
    %v4733 = vsel %vm4717, %v4195, 128
    %v4734 = vsel %vm4718, %v4195, 128
    %v4735 = vsel %vm4719, %v4195, 128
    %v4736 = vsel %vm4720, %v4195, 128
    %v4737 = vsel %vm4721, %v4195, 128
    %v4738 = vsel %vm4722, %v4195, 128
    %v4739 = vsel %vm4723, %v4195, 128
    %v4740 = vsel %vm4724, %v4195, 128
    %v4741 = vsel %vm4725, %v4195, 128
    %v4742 = vsel %vm4726, %v4195, 128
    %v4743 = vsel %vm4727, %v4195, 128
    %v4744 = vand.u32 %v4728, 65535
    %v4745 = vshra.s32 %v4728, 16
    %v4746 = vcvt.s32.f32 %v4744
    %v4747 = vcvt.s32.f32 %v4745
    %4748 = vmin.xlane.f32.xlu0 %v4747
    %v4749 = vpop.xlane.xlu0 %4748
    %vm4750 = vcmp.eq.f32.partialorder %v4747, %v4749
    %v4751 = vsel %vm4750, %v4746, inf
    %4752 = vmin.xlane.f32.xlu0 %v4751
    %v4753 = vpop.xlane.xlu0 %4752
    %v4754 = vcvt.f32.s32 %v4753
    %v4755 = vcvt.f32.s32 %v4749
    %v4756 = vshll.u32 %v4755, 16
    %v4757 = vadd.s32 %v4756, %v4754
    %v4758 = vand.u32 %v4729, 65535
    %v4759 = vshra.s32 %v4729, 16
    %v4760 = vcvt.s32.f32 %v4758
    %v4761 = vcvt.s32.f32 %v4759
    %4762 = vmin.xlane.f32.xlu0 %v4761
    %v4763 = vpop.xlane.xlu0 %4762
    %vm4764 = vcmp.eq.f32.partialorder %v4761, %v4763
    %v4765 = vsel %vm4764, %v4760, inf
    %4766 = vmin.xlane.f32.xlu0 %v4765
    %v4767 = vpop.xlane.xlu0 %4766
    %v4768 = vcvt.f32.s32 %v4767
    %v4769 = vcvt.f32.s32 %v4763
    %v4770 = vshll.u32 %v4769, 16
    %v4771 = vadd.s32 %v4770, %v4768
    %v4772 = vand.u32 %v4730, 65535
    %v4773 = vshra.s32 %v4730, 16
    %v4774 = vcvt.s32.f32 %v4772
    %v4775 = vcvt.s32.f32 %v4773
    %4776 = vmin.xlane.f32.xlu0 %v4775
    %v4777 = vpop.xlane.xlu0 %4776
    %vm4778 = vcmp.eq.f32.partialorder %v4775, %v4777
    %v4779 = vsel %vm4778, %v4774, inf
    %4780 = vmin.xlane.f32.xlu0 %v4779
    %v4781 = vpop.xlane.xlu0 %4780
    %v4782 = vcvt.f32.s32 %v4781
    %v4783 = vcvt.f32.s32 %v4777
    %v4784 = vshll.u32 %v4783, 16
    %v4785 = vadd.s32 %v4784, %v4782
    %v4786 = vand.u32 %v4731, 65535
    %v4787 = vshra.s32 %v4731, 16
    %v4788 = vcvt.s32.f32 %v4786
    %v4789 = vcvt.s32.f32 %v4787
    %4790 = vmin.xlane.f32.xlu0 %v4789
    %v4791 = vpop.xlane.xlu0 %4790
    %vm4792 = vcmp.eq.f32.partialorder %v4789, %v4791
    %v4793 = vsel %vm4792, %v4788, inf
    %4794 = vmin.xlane.f32.xlu0 %v4793
    %v4795 = vpop.xlane.xlu0 %4794
    %v4796 = vcvt.f32.s32 %v4795
    %v4797 = vcvt.f32.s32 %v4791
    %v4798 = vshll.u32 %v4797, 16
    %v4799 = vadd.s32 %v4798, %v4796
    %v4800 = vand.u32 %v4732, 65535
    %v4801 = vshra.s32 %v4732, 16
    %v4802 = vcvt.s32.f32 %v4800
    %v4803 = vcvt.s32.f32 %v4801
    %4804 = vmin.xlane.f32.xlu0 %v4803
    %v4805 = vpop.xlane.xlu0 %4804
    %vm4806 = vcmp.eq.f32.partialorder %v4803, %v4805
    %v4807 = vsel %vm4806, %v4802, inf
    %4808 = vmin.xlane.f32.xlu0 %v4807
    %v4809 = vpop.xlane.xlu0 %4808
    %v4810 = vcvt.f32.s32 %v4809
    %v4811 = vcvt.f32.s32 %v4805
    %v4812 = vshll.u32 %v4811, 16
    %v4813 = vadd.s32 %v4812, %v4810
    %v4814 = vand.u32 %v4733, 65535
    %v4815 = vshra.s32 %v4733, 16
    %v4816 = vcvt.s32.f32 %v4814
    %v4817 = vcvt.s32.f32 %v4815
    %4818 = vmin.xlane.f32.xlu0 %v4817
    %v4819 = vpop.xlane.xlu0 %4818
    %vm4820 = vcmp.eq.f32.partialorder %v4817, %v4819
    %v4821 = vsel %vm4820, %v4816, inf
    %4822 = vmin.xlane.f32.xlu0 %v4821
    %v4823 = vpop.xlane.xlu0 %4822
    %v4824 = vcvt.f32.s32 %v4823
    %v4825 = vcvt.f32.s32 %v4819
    %v4826 = vshll.u32 %v4825, 16
    %v4827 = vadd.s32 %v4826, %v4824
    %v4828 = vand.u32 %v4734, 65535
    %v4829 = vshra.s32 %v4734, 16
    %v4830 = vcvt.s32.f32 %v4828
    %v4831 = vcvt.s32.f32 %v4829
    %4832 = vmin.xlane.f32.xlu0 %v4831
    %v4833 = vpop.xlane.xlu0 %4832
    %vm4834 = vcmp.eq.f32.partialorder %v4831, %v4833
    %v4835 = vsel %vm4834, %v4830, inf
    %4836 = vmin.xlane.f32.xlu0 %v4835
    %v4837 = vpop.xlane.xlu0 %4836
    %v4838 = vcvt.f32.s32 %v4837
    %v4839 = vcvt.f32.s32 %v4833
    %v4840 = vshll.u32 %v4839, 16
    %v4841 = vadd.s32 %v4840, %v4838
    %v4842 = vand.u32 %v4735, 65535
    %v4843 = vshra.s32 %v4735, 16
    %v4844 = vcvt.s32.f32 %v4842
    %v4845 = vcvt.s32.f32 %v4843
    %4846 = vmin.xlane.f32.xlu0 %v4845
    %v4847 = vpop.xlane.xlu0 %4846
    %vm4848 = vcmp.eq.f32.partialorder %v4845, %v4847
    %v4849 = vsel %vm4848, %v4844, inf
    %4850 = vmin.xlane.f32.xlu0 %v4849
    %v4851 = vpop.xlane.xlu0 %4850
    %v4852 = vcvt.f32.s32 %v4851
    %v4853 = vcvt.f32.s32 %v4847
    %v4854 = vshll.u32 %v4853, 16
    %v4855 = vadd.s32 %v4854, %v4852
    %v4856 = vand.u32 %v4736, 65535
    %v4857 = vshra.s32 %v4736, 16
    %v4858 = vcvt.s32.f32 %v4856
    %v4859 = vcvt.s32.f32 %v4857
    %4860 = vmin.xlane.f32.xlu0 %v4859
    %v4861 = vpop.xlane.xlu0 %4860
    %vm4862 = vcmp.eq.f32.partialorder %v4859, %v4861
    %v4863 = vsel %vm4862, %v4858, inf
    %4864 = vmin.xlane.f32.xlu0 %v4863
    %v4865 = vpop.xlane.xlu0 %4864
    %v4866 = vcvt.f32.s32 %v4865
    %v4867 = vcvt.f32.s32 %v4861
    %v4868 = vshll.u32 %v4867, 16
    %v4869 = vadd.s32 %v4868, %v4866
    %v4870 = vand.u32 %v4737, 65535
    %v4871 = vshra.s32 %v4737, 16
    %v4872 = vcvt.s32.f32 %v4870
    %v4873 = vcvt.s32.f32 %v4871
    %4874 = vmin.xlane.f32.xlu0 %v4873
    %v4875 = vpop.xlane.xlu0 %4874
    %vm4876 = vcmp.eq.f32.partialorder %v4873, %v4875
    %v4877 = vsel %vm4876, %v4872, inf
    %4878 = vmin.xlane.f32.xlu0 %v4877
    %v4879 = vpop.xlane.xlu0 %4878
    %v4880 = vcvt.f32.s32 %v4879
    %v4881 = vcvt.f32.s32 %v4875
    %v4882 = vshll.u32 %v4881, 16
    %v4883 = vadd.s32 %v4882, %v4880
    %v4884 = vand.u32 %v4738, 65535
    %v4885 = vshra.s32 %v4738, 16
    %v4886 = vcvt.s32.f32 %v4884
    %v4887 = vcvt.s32.f32 %v4885
    %4888 = vmin.xlane.f32.xlu0 %v4887
    %v4889 = vpop.xlane.xlu0 %4888
    %vm4890 = vcmp.eq.f32.partialorder %v4887, %v4889
    %v4891 = vsel %vm4890, %v4886, inf
    %4892 = vmin.xlane.f32.xlu0 %v4891
    %v4893 = vpop.xlane.xlu0 %4892
    %v4894 = vcvt.f32.s32 %v4893
    %v4895 = vcvt.f32.s32 %v4889
    %v4896 = vshll.u32 %v4895, 16
    %v4897 = vadd.s32 %v4896, %v4894
    %v4898 = vand.u32 %v4739, 65535
    %v4899 = vshra.s32 %v4739, 16
    %v4900 = vcvt.s32.f32 %v4898
    %v4901 = vcvt.s32.f32 %v4899
    %4902 = vmin.xlane.f32.xlu0 %v4901
    %v4903 = vpop.xlane.xlu0 %4902
    %vm4904 = vcmp.eq.f32.partialorder %v4901, %v4903
    %v4905 = vsel %vm4904, %v4900, inf
    %4906 = vmin.xlane.f32.xlu0 %v4905
    %v4907 = vpop.xlane.xlu0 %4906
    %v4908 = vcvt.f32.s32 %v4907
    %v4909 = vcvt.f32.s32 %v4903
    %v4910 = vshll.u32 %v4909, 16
    %v4911 = vadd.s32 %v4910, %v4908
    %v4912 = vand.u32 %v4740, 65535
    %v4913 = vshra.s32 %v4740, 16
    %v4914 = vcvt.s32.f32 %v4912
    %v4915 = vcvt.s32.f32 %v4913
    %4916 = vmin.xlane.f32.xlu0 %v4915
    %v4917 = vpop.xlane.xlu0 %4916
    %vm4918 = vcmp.eq.f32.partialorder %v4915, %v4917
    %v4919 = vsel %vm4918, %v4914, inf
    %4920 = vmin.xlane.f32.xlu0 %v4919
    %v4921 = vpop.xlane.xlu0 %4920
    %v4922 = vcvt.f32.s32 %v4921
    %v4923 = vcvt.f32.s32 %v4917
    %v4924 = vshll.u32 %v4923, 16
    %v4925 = vadd.s32 %v4924, %v4922
    %v4926 = vand.u32 %v4741, 65535
    %v4927 = vshra.s32 %v4741, 16
    %v4928 = vcvt.s32.f32 %v4926
    %v4929 = vcvt.s32.f32 %v4927
    %4930 = vmin.xlane.f32.xlu0 %v4929
    %v4931 = vpop.xlane.xlu0 %4930
    %vm4932 = vcmp.eq.f32.partialorder %v4929, %v4931
    %v4933 = vsel %vm4932, %v4928, inf
    %4934 = vmin.xlane.f32.xlu0 %v4933
    %v4935 = vpop.xlane.xlu0 %4934
    %v4936 = vcvt.f32.s32 %v4935
    %v4937 = vcvt.f32.s32 %v4931
    %v4938 = vshll.u32 %v4937, 16
    %v4939 = vadd.s32 %v4938, %v4936
    %v4940 = vand.u32 %v4742, 65535
    %v4941 = vshra.s32 %v4742, 16
    %v4942 = vcvt.s32.f32 %v4940
    %v4943 = vcvt.s32.f32 %v4941
    %4944 = vmin.xlane.f32.xlu0 %v4943
    %v4945 = vpop.xlane.xlu0 %4944
    %vm4946 = vcmp.eq.f32.partialorder %v4943, %v4945
    %v4947 = vsel %vm4946, %v4942, inf
    %4948 = vmin.xlane.f32.xlu0 %v4947
    %v4949 = vpop.xlane.xlu0 %4948
    %v4950 = vcvt.f32.s32 %v4949
    %v4951 = vcvt.f32.s32 %v4945
    %v4952 = vshll.u32 %v4951, 16
    %v4953 = vadd.s32 %v4952, %v4950
    %v4954 = vand.u32 %v4743, 65535
    %v4955 = vshra.s32 %v4743, 16
    %v4956 = vcvt.s32.f32 %v4954
    %v4957 = vcvt.s32.f32 %v4955
    %4958 = vmin.xlane.f32.xlu0 %v4957
    %v4959 = vpop.xlane.xlu0 %4958
    %vm4960 = vcmp.eq.f32.partialorder %v4957, %v4959
    %v4961 = vsel %vm4960, %v4956, inf
    %4962 = vmin.xlane.f32.xlu0 %v4961
    %v4963 = vpop.xlane.xlu0 %4962
    %v4964 = vcvt.f32.s32 %v4963
    %v4965 = vcvt.f32.s32 %v4959
    %v4966 = vshll.u32 %v4965, 16
    %v4967 = vadd.s32 %v4966, %v4964
    %v4968 = vlaneseq
    %v4969 = vshrl.u32 %v4968, 7
    %v4970 = vsub.s32 %v4195, %v4969
    %v4971 = vrot.slane %v4757, %v4970
    %v4972 = vlaneseq
    %v4973 = vshrl.u32 %v4972, 7
    %v4974 = vsub.s32 %v4195, %v4973
    %v4975 = vrot.slane %v4771, %v4974
    %v4976 = vlaneseq
    %v4977 = vshrl.u32 %v4976, 7
    %v4978 = vsub.s32 %v4195, %v4977
    %v4979 = vrot.slane %v4785, %v4978
    %v4980 = vlaneseq
    %v4981 = vshrl.u32 %v4980, 7
    %v4982 = vsub.s32 %v4195, %v4981
    %v4983 = vrot.slane %v4799, %v4982
    %v4984 = vlaneseq
    %v4985 = vshrl.u32 %v4984, 7
    %v4986 = vsub.s32 %v4195, %v4985
    %v4987 = vrot.slane %v4813, %v4986
    %v4988 = vlaneseq
    %v4989 = vshrl.u32 %v4988, 7
    %v4990 = vsub.s32 %v4195, %v4989
    %v4991 = vrot.slane %v4827, %v4990
    %v4992 = vlaneseq
    %v4993 = vshrl.u32 %v4992, 7
    %v4994 = vsub.s32 %v4195, %v4993
    %v4995 = vrot.slane %v4841, %v4994
    %v4996 = vlaneseq
    %v4997 = vshrl.u32 %v4996, 7
    %v4998 = vsub.s32 %v4195, %v4997
    %v4999 = vrot.slane %v4855, %v4998
    %v5000 = vlaneseq
    %v5001 = vshrl.u32 %v5000, 7
    %v5002 = vsub.s32 %v4195, %v5001
    %v5003 = vrot.slane %v4869, %v5002
    %v5004 = vlaneseq
    %v5005 = vshrl.u32 %v5004, 7
    %v5006 = vsub.s32 %v4195, %v5005
    %v5007 = vrot.slane %v4883, %v5006
    %v5008 = vlaneseq
    %v5009 = vshrl.u32 %v5008, 7
    %v5010 = vsub.s32 %v4195, %v5009
    %v5011 = vrot.slane %v4897, %v5010
    %v5012 = vlaneseq
    %v5013 = vshrl.u32 %v5012, 7
    %v5014 = vsub.s32 %v4195, %v5013
    %v5015 = vrot.slane %v4911, %v5014
    %v5016 = vlaneseq
    %v5017 = vshrl.u32 %v5016, 7
    %v5018 = vsub.s32 %v4195, %v5017
    %v5019 = vrot.slane %v4925, %v5018
    %v5020 = vlaneseq
    %v5021 = vshrl.u32 %v5020, 7
    %v5022 = vsub.s32 %v4195, %v5021
    %v5023 = vrot.slane %v4939, %v5022
    %v5024 = vlaneseq
    %v5025 = vshrl.u32 %v5024, 7
    %v5026 = vsub.s32 %v4195, %v5025
    %v5027 = vrot.slane %v4953, %v5026
    %v5028 = vlaneseq
    %v5029 = vshrl.u32 %v5028, 7
    %v5030 = vsub.s32 %v4195, %v5029
    %v5031 = vrot.slane %v4967, %v5030
    %vm5032 = vcmask 1041409
    %v5033 = vsel %vm5032, %v4975, %v4971
    %vm5034 = vcmask 1042434
    %v5035 = vsel %vm5034, %v4979, %v5033
    %vm5036 = vcmask 1043459
    %v5037 = vsel %vm5036, %v4983, %v5035
    %vm5038 = vcmask 1044484
    %v5039 = vsel %vm5038, %v4987, %v5037
    %vm5040 = vcmask 1045509
    %v5041 = vsel %vm5040, %v4991, %v5039
    %vm5042 = vcmask 1046534
    %v5043 = vsel %vm5042, %v4995, %v5041
    %vm5044 = vcmask 1047559
    %v5045 = vsel %vm5044, %v4999, %v5043
    %v5046 = vsel %vm5032, %v5007, %v5003
    %v5047 = vsel %vm5034, %v5011, %v5046
    %v5048 = vsel %vm5036, %v5015, %v5047
    %v5049 = vsel %vm5038, %v5019, %v5048
    %v5050 = vsel %vm5040, %v5023, %v5049
    %v5051 = vsel %vm5042, %v5027, %v5050
    %v5052 = vsel %vm5044, %v5031, %v5051
    %vm5053 = vcmask 64512
    %5054 = vst.msk [vmem:[%s14] sm:$0xff] %vm5053, %v5045
    %5055 = vst.msk [vmem:[%s14 + $0x8] sm:$0xff] %vm5053, %v5052
    // Predicated region
    $region70: #{tpu_custom_call.1} parent=1 // pred_check
      _
    $region71: #{tpu_custom_call.1} parent=1 // pred_check_branch
      %5057 = sbr.rel (0) target = $region73
    $region72: #{tpu_custom_call.1} parent=1 // pred_region
      %s5059 = ssub.s32 2048, 2048
      %5060 = vsyncadd [#allocation5], %s5059
      %s5061 = sshll.u32 [#allocation11], 4
      %s5062 = int_to_ptr.vmem [resolvable:$true] %s5061
      %5067 = dma.vmem_to_hbm [thread:$0]  %s5062, 2048, %s13, [#allocation5], 128, 128, 8
    $region73: #{tpu_custom_call.1} parent=1 // pred_fallthru
      _
    // Predicated region
    $region74: #{tpu_custom_call.1} parent=1 // pred_check
      _
    $region75: #{tpu_custom_call.1} parent=1 // pred_check_branch
      %5069 = sbr.rel (0) target = $region77
    $region76: #{tpu_custom_call.1} parent=1 // pred_region
      _
    $region77: #{tpu_custom_call.1} parent=1 // pred_fallthru
      _
    // Predicated region
    $region78: #{tpu_custom_call.1} parent=1 // pred_check
      _
    $region79: #{tpu_custom_call.1} parent=1 // pred_check_branch
      %5071 = sbr.rel (0) target = $region81
    $region80: #{tpu_custom_call.1} parent=1 // pred_region
      %5072 = dma.done [#allocation5], 2048
    $region81: #{tpu_custom_call.1} parent=1 // pred_fallthru
      _
    // Predicated region
    $region82: #{tpu_custom_call.1} parent=1 // pred_check
      _
    $region83: #{tpu_custom_call.1} parent=1 // pred_check_branch
      %5074 = sbr.rel (0) target = $region85
    $region84: #{tpu_custom_call.1} parent=1 // pred_region
      _
    $region85: #{tpu_custom_call.1} parent=1 // pred_fallthru
      _
    %5075 = vsyncpa [#allocation4], 1
    %5076 = vsyncpa [#allocation7], 1
    %5077 = vsyncpa [#allocation10], 1
    %5078 = vsyncpa [#allocation5], 1

</llo_original>
